<compile_context>
chip_gen: v6e
topology: v6e:2x2x1
jax: 0.10.0
libtpu: 0.0.40
codegen_flags: <defaults>
</compile_context>

<pallas_src>
import functools

import jax
import jax.numpy as jnp
from jax.experimental import pallas as pl
from jax.experimental.pallas import tpu as pltpu


def _round_up(x, m):
    return ((x + m - 1) // m) * m


def _cdiv(a, b):
    return (a + b - 1) // b


# ------------------------------ Pallas kernel -------------------------------

def _bottleneck_kernel(x_ref, mask_ref, w1_ref, w2_ref, w3_ref,
                       b1_ref, b2_ref, b3_ref, o_ref, h1_ref, col_ref, *,
                       nblk, tb, tbo, taps, res_off, p1):
    """Fused bottleneck for one batch element; row-block inner loop.

    Rows of x_ref / h1_ref index the zero-padded (Hpad, Wpad) image
    row-major; rows of o_ref index the (H, Wpad) output domain (the last
    2*pad columns of each output row are junk, dropped on the host).
    All slices below are static (Python ints), so stores are aligned and
    lane-dense.
    """
    for blk in range(nblk):
        r0 = blk * tb

        # ---- conv1 (1x1) + bn1 + relu over tb + halo rows ----------------
        xb = x_ref[r0:r0 + tbo, :].astype(jnp.bfloat16)
        a1 = jnp.dot(xb, w1_ref[...], preferred_element_type=jnp.float32)
        # mask zeroes the halo rows so they act as conv2's zero padding.
        y1 = jnp.maximum(a1 + b1_ref[...], 0.0) * mask_ref[r0:r0 + tbo, :]
        h1_ref[...] = y1.astype(jnp.bfloat16)

        # ---- conv2 (3x3, dilation) as ONE K = 9*p1 MXU dot ---------------
        # In-kernel im2col: each tap is a contiguous flat slab of h1.
        for t, off in enumerate(taps):
            col_ref[:, t * p1:(t + 1) * p1] = h1_ref[off:off + tb, :]
        a2 = jnp.dot(col_ref[...], w2_ref[...],
                     preferred_element_type=jnp.float32)
        y2 = jnp.maximum(a2 + b2_ref[...], 0.0).astype(jnp.bfloat16)

        # ---- conv3 (1x1) + bn3 + identity residual + relu ----------------
        a3 = jnp.dot(y2, w3_ref[...], preferred_element_type=jnp.float32)
        res = x_ref[r0 + res_off:r0 + res_off + tb, :]
        o_ref[r0:r0 + tb, :] = jnp.maximum(
            a3 + b3_ref[...] + res, 0.0).astype(o_ref.dtype)


# ------------------------------- wrapper ------------------------------------

def bn_fold(gamma, beta, mean, var, eps=1e-5):
    scale = gamma / jnp.sqrt(var + eps)
    shift = beta - mean * scale
    return scale, shift


def bottleneck_forward(x_nchw, params, *, stride=1, dilation=1):
    """Pallas-backed Bottleneck forward (downsample=None => identity skip)."""
    n, cin, h, w = x_nchw.shape
    w1 = params["conv1_w"]                            # (planes, inplanes, 1, 1)
    w2 = params["conv2_w"]                            # (planes, planes, 3, 3)
    w3 = params["conv3_w"]                            # (planes*4, planes, 1, 1)
    planes = w1.shape[0]
    cout = w3.shape[0]

    if stride != 1 or cout != cin:
        # TODO(synk): strided conv2 + downsample projection skip not supported.
        raise NotImplementedError(
            "Bottleneck Pallas kernel supports stride=1 with identity skip")

    pad = dilation
    hpad, wpad = h + 2 * pad, w + 2 * pad

    p1 = _round_up(planes, 128)   # lane-dense intermediate channel width
    c3 = _round_up(cout, 128)     # lane-dense input/output channel width

    # Row-block tiling over the flat (h, wpad) output domain.
    m2 = h * wpad                               # valid output rows (w/ junk cols)
    nblk = _cdiv(m2, 512)
    tb = _round_up(_cdiv(m2, nblk), 16)         # output rows per block
    m2p = nblk * tb                             # padded output-row count
    max_off = 2 * pad * wpad + 2 * pad          # largest 3x3 tap offset
    tbo = _round_up(tb + max_off, 16)           # conv1 rows per block (w/ halo)
    m1 = m2p - tb + tbo                         # padded flat input rows
    res_off = pad * wpad + pad                  # output row -> input row shift
    taps = tuple(kh * dilation * wpad + kw * dilation
                 for kh in range(3) for kw in range(3))

    # ---- fold BN (running stats) into weights & per-channel shifts ----
    s1, b1 = bn_fold(*params["bn1"])
    s2, b2 = bn_fold(*params["bn2"])
    s3, b3 = bn_fold(*params["bn3"])

    w1m = (w1[:, :, 0, 0] * s1[:, None]).T                      # (cin, planes)
    w1p = jnp.pad(w1m, ((0, c3 - cin), (0, p1 - planes))).astype(jnp.bfloat16)
    b1p = jnp.pad(b1, (0, p1 - planes)).reshape(1, p1).astype(jnp.float32)

    w2m = jnp.transpose(w2 * s2[:, None, None, None], (2, 3, 1, 0))  # (3,3,i,o)
    w2p = jnp.pad(w2m, ((0, 0), (0, 0),
                        (0, p1 - planes), (0, p1 - planes)))
    w2p = w2p.reshape(9 * p1, p1).astype(jnp.bfloat16)
    b2p = jnp.pad(b2, (0, p1 - planes)).reshape(1, p1).astype(jnp.float32)

    w3m = (w3[:, :, 0, 0] * s3[:, None]).T                       # (planes, cout)
    w3p = jnp.pad(w3m, ((0, p1 - planes), (0, c3 - cout))).astype(jnp.bfloat16)
    b3p = jnp.pad(b3, (0, c3 - cout)).reshape(1, c3).astype(jnp.float32)

    # ---- spatially zero-padded, channel-padded, flat NHWC input ----
    x_nhwc = jnp.transpose(x_nchw, (0, 2, 3, 1)).astype(jnp.float32)
    xp = jnp.zeros((n, hpad, wpad, c3), jnp.float32)
    xp = xp.at[:, pad:pad + h, pad:pad + w, :cin].set(x_nhwc)
    xp = xp.reshape(n, hpad * wpad, c3)
    xp = jnp.pad(xp, ((0, 0), (0, m1 - hpad * wpad), (0, 0)))

    # Interior mask (1 at real pixels, 0 at padding rows/cols & tail).
    msk = jnp.zeros((hpad, wpad), jnp.float32)
    msk = msk.at[pad:pad + h, pad:pad + w].set(1.0)
    msk = jnp.pad(msk.reshape(hpad * wpad), (0, m1 - hpad * wpad))
    msk = msk.reshape(m1, 1)

    kernel = functools.partial(
        _bottleneck_kernel, nblk=nblk, tb=tb, tbo=tbo, taps=taps,
        res_off=res_off, p1=p1)

    # Generation-aware VMEM budget: actual working set + headroom, capped at
    # 40 MiB so it fits comfortably on v7x (64 MiB) as well as v5e/v6e.
    need = (2 * (m1 * c3 * 4 + m1 * 128 * 4 + m2p * c3 * 4)      # x, mask, out (dbl-buf)
            + 2 * 2 * (c3 * p1 + 9 * p1 * p1 + p1 * c3)          # bf16 weights (dbl-buf)
            + tbo * p1 * 2 + tb * 9 * p1 * 2                     # scratches
            + 4 * tbo * max(p1, c3) * 4)                         # f32 temporaries
    vmem_limit = int(min(40 * 1024 * 1024, need + 16 * 1024 * 1024))

    out = pl.pallas_call(
        kernel,
        grid=(n,),
        in_specs=[
            pl.BlockSpec((None, m1, c3), lambda i: (i, 0, 0)),   # x (padded)
            pl.BlockSpec((m1, 1), lambda i: (0, 0)),             # interior mask
            pl.BlockSpec((c3, p1), lambda i: (0, 0)),            # w1 (BN folded)
            pl.BlockSpec((9 * p1, p1), lambda i: (0, 0)),        # w2 (BN folded)
            pl.BlockSpec((p1, c3), lambda i: (0, 0)),            # w3 (BN folded)
            pl.BlockSpec((1, p1), lambda i: (0, 0)),             # shift1
            pl.BlockSpec((1, p1), lambda i: (0, 0)),             # shift2
            pl.BlockSpec((1, c3), lambda i: (0, 0)),             # shift3
        ],
        out_specs=pl.BlockSpec((None, m2p, c3), lambda i: (i, 0, 0)),
        out_shape=jax.ShapeDtypeStruct((n, m2p, c3), jnp.float32),
        scratch_shapes=[
            pltpu.VMEM((tbo, p1), jnp.bfloat16),       # conv1 output + halo
            pltpu.VMEM((tb, 9 * p1), jnp.bfloat16),    # im2col block
        ],
        compiler_params=pltpu.CompilerParams(
            dimension_semantics=("parallel",),
            vmem_limit_bytes=vmem_limit),
    )(xp, msk, w1p, w2p, w3p, b1p, b2p, b3p)

    # Drop junk rows/cols/channels and restore NCHW (layout plumbing only).
    out = out[:, :m2, :cout].reshape(n, h, wpad, cout)[:, :, :w, :]
    return jnp.transpose(out, (0, 3, 1, 2))


# ----------------------------- pure-JAX reference ---------------------------

def bottleneck_reference(x, params, *, stride=1, dilation=1, eps=1e-5):
    def conv(x, w, stride=1, padding=0, dilation=1):
        return jax.lax.conv_general_dilated(
            x, w, window_strides=(stride, stride),
            padding=((padding, padding), (padding, padding)),
            rhs_dilation=(dilation, dilation),
            dimension_numbers=("NCHW", "OIHW", "NCHW"),
            precision=jax.lax.Precision.HIGHEST)

    def bn(x, p):
        g, b, m, v = p
        inv = g / jnp.sqrt(v + eps)
        return (x - m[None, :, None, None]) * inv[None, :, None, None] \
            + b[None, :, None, None]

    relu = lambda t: jnp.maximum(t, 0.0)
    identity = x
    out = relu(bn(conv(x, params["conv1_w"]), params["bn1"]))
    out = relu(bn(conv(out, params["conv2_w"], stride=stride,
                       padding=dilation, dilation=dilation), params["bn2"]))
    out = bn(conv(out, params["conv3_w"]), params["bn3"])
    return relu(out + identity)


# ---------------------------------- main ------------------------------------

if __name__ == "__main__":
    # Small shapes: inplanes = planes * expansion so the identity skip is valid
    # (downsample=None in the module).
    inplanes, planes, expansion = 16, 4, 4
    stride, dilation = 1, 1
    N, H, W = 2, 16, 16

    key = jax.random.PRNGKey(0)
    ks = jax.random.split(key, 16)

    def bn_params(k, c):
        k1, k2, k3, k4 = jax.random.split(k, 4)
        gamma = 0.5 + jax.random.uniform(k1, (c,), jnp.float32)
        beta = 0.1 * jax.random.normal(k2, (c,), jnp.float32)
        mean = 0.1 * jax.random.normal(k3, (c,), jnp.float32)
        var = 0.5 + jax.random.uniform(k4, (c,), jnp.float32)
        return (gamma, beta, mean, var)

    params = {
        "conv1_w": 0.1 * jax.random.normal(ks[0], (planes, inplanes, 1, 1),
                                           jnp.float32),
        "conv2_w": 0.1 * jax.random.normal(ks[1], (planes, planes, 3, 3),
                                           jnp.float32),
        "conv3_w": 0.1 * jax.random.normal(
            ks[2], (planes * expansion, planes, 1, 1), jnp.float32),
        "bn1": bn_params(ks[3], planes),
        "bn2": bn_params(ks[4], planes),
        "bn3": bn_params(ks[5], planes * expansion),
    }

    x = jax.random.normal(ks[6], (N, inplanes, H, W), jnp.float32)

    out = bottleneck_forward(x, params, stride=stride, dilation=dilation)
    out = jax.block_until_ready(out)

    ref = jax.block_until_ready(
        bottleneck_reference(x, params, stride=stride, dilation=dilation))

    assert out.shape == (N, planes * expansion, H, W), out.shape
    # Tolerance reflects bf16 MXU matmuls (f32 accumulation) vs the f32
    # HIGHEST-precision reference; any structural bug shows errors O(0.5+).
    max_err = float(jnp.max(jnp.abs(out - ref)))
    assert jnp.allclose(out, ref, rtol=5e-2, atol=8e-2), max_err

    print("KERNEL_OK")
</pallas_src>

<mosaic_0001>
module attributes {stable_mosaic.version = 11 : i64} {
  func.func @_bottleneck_kernel(%arg0: i32, %arg1: memref<1x336x128xf32, #tpu.memory_space<vmem>>, %arg2: memref<336x1xf32, #tpu.memory_space<vmem>>, %arg3: memref<128x128xbf16, #tpu.memory_space<vmem>>, %arg4: memref<1152x128xbf16, #tpu.memory_space<vmem>>, %arg5: memref<128x128xbf16, #tpu.memory_space<vmem>>, %arg6: memref<1x128xf32, #tpu.memory_space<vmem>>, %arg7: memref<1x128xf32, #tpu.memory_space<vmem>>, %arg8: memref<1x128xf32, #tpu.memory_space<vmem>>, %arg9: memref<1x288x128xf32, #tpu.memory_space<vmem>>, %arg10: memref<336x128xbf16, #tpu.memory_space<vmem>>, %arg11: memref<288x1152xbf16, #tpu.memory_space<vmem>>) attributes {dimension_semantics = [#tpu.dimension_semantics<parallel>], iteration_bounds = array<i64: 2>, scalar_prefetch = 0 : i64, scratch_operands = 2 : i64, tpu.core_type = #tpu.core_type<tc>, window_params = [{transform_indices = @transform_0, window_bounds = array<i64: 1, 336, 128>}, {pipeline_mode = #tpu.pipeline_mode<synchronous>, transform_indices = @transform_1, window_bounds = array<i64: 336, 1>}, {pipeline_mode = #tpu.pipeline_mode<synchronous>, transform_indices = @transform_2, window_bounds = array<i64: 128, 128>}, {pipeline_mode = #tpu.pipeline_mode<synchronous>, transform_indices = @transform_3, window_bounds = array<i64: 1152, 128>}, {pipeline_mode = #tpu.pipeline_mode<synchronous>, transform_indices = @transform_4, window_bounds = array<i64: 128, 128>}, {pipeline_mode = #tpu.pipeline_mode<synchronous>, transform_indices = @transform_5, window_bounds = array<i64: 1, 128>}, {pipeline_mode = #tpu.pipeline_mode<synchronous>, transform_indices = @transform_6, window_bounds = array<i64: 1, 128>}, {pipeline_mode = #tpu.pipeline_mode<synchronous>, transform_indices = @transform_7, window_bounds = array<i64: 1, 128>}, {transform_indices = @transform_8, window_bounds = array<i64: 1, 288, 128>}]} {
    %c0 = arith.constant 0 : index
    %c0_0 = arith.constant 0 : index
    %c0_1 = arith.constant 0 : index
    %0 = vector.load %arg1[%c0, %c0_0, %c0_1] : memref<1x336x128xf32, #tpu.memory_space<vmem>>, vector<1x336x128xf32>
    %1 = vector.shape_cast %0 : vector<1x336x128xf32> to vector<336x128xf32>
    %2 = arith.truncf %1 : vector<336x128xf32> to vector<336x128xbf16>
    %c0_2 = arith.constant 0 : index
    %c0_3 = arith.constant 0 : index
    %3 = vector.load %arg3[%c0_2, %c0_3] : memref<128x128xbf16, #tpu.memory_space<vmem>>, vector<128x128xbf16>
    %cst = arith.constant dense<0.000000e+00> : vector<336x128xf32>
    %4 = tpu.matmul %2, %3, %cst {dimension_numbers = #tpu.dot_dimension_numbers<[1], [0], [0], [1], [0, 0, 1, 1], [], []>} : vector<336x128xbf16>, vector<128x128xbf16>, vector<336x128xf32> -> vector<336x128xf32>
    %c0_4 = arith.constant 0 : index
    %c0_5 = arith.constant 0 : index
    %5 = vector.load %arg6[%c0_4, %c0_5] : memref<1x128xf32, #tpu.memory_space<vmem>>, vector<1x128xf32>
    %6 = vector.broadcast %5 : vector<1x128xf32> to vector<336x128xf32>
    %7 = arith.addf %4, %6 : vector<336x128xf32>
    %cst_6 = arith.constant 0.000000e+00 : f32
    %8 = vector.broadcast %cst_6 : f32 to vector<336x128xf32>
    %9 = arith.maximumf %7, %8 : vector<336x128xf32>
    %c0_7 = arith.constant 0 : index
    %c0_8 = arith.constant 0 : index
    %10 = vector.load %arg2[%c0_7, %c0_8] : memref<336x1xf32, #tpu.memory_space<vmem>>, vector<336x1xf32>
    %11 = vector.broadcast %10 : vector<336x1xf32> to vector<336x128xf32>
    %12 = arith.mulf %9, %11 : vector<336x128xf32>
    %13 = arith.truncf %12 : vector<336x128xf32> to vector<336x128xbf16>
    %c0_9 = arith.constant 0 : index
    %c0_10 = arith.constant 0 : index
    %14 = vector.load %arg10[%c0_9, %c0_10] : memref<336x128xbf16, #tpu.memory_space<vmem>>, vector<336x128xbf16>
    tpu.vector_store %arg10[%c0_9, %c0_10], %13 {strides = array<i32>} : memref<336x128xbf16, #tpu.memory_space<vmem>>, vector<336x128xbf16>,
    %c0_11 = arith.constant 0 : index
    %c0_12 = arith.constant 0 : index
    %15 = vector.load %arg10[%c0_11, %c0_12] : memref<336x128xbf16, #tpu.memory_space<vmem>>, vector<288x128xbf16>
    %c0_13 = arith.constant 0 : index
    %c0_14 = arith.constant 0 : index
    %16 = vector.load %arg11[%c0_13, %c0_14] : memref<288x1152xbf16, #tpu.memory_space<vmem>>, vector<288x128xbf16>
    tpu.vector_store %arg11[%c0_13, %c0_14], %15 {strides = array<i32>} : memref<288x1152xbf16, #tpu.memory_space<vmem>>, vector<288x128xbf16>,
    %c1 = arith.constant 1 : index
    %c0_15 = arith.constant 0 : index
    %17 = vector.load %arg10[%c1, %c0_15] : memref<336x128xbf16, #tpu.memory_space<vmem>>, vector<288x128xbf16>
    %c0_16 = arith.constant 0 : index
    %c128 = arith.constant 128 : index
    %18 = vector.load %arg11[%c0_16, %c128] : memref<288x1152xbf16, #tpu.memory_space<vmem>>, vector<288x128xbf16>
    tpu.vector_store %arg11[%c0_16, %c128], %17 {strides = array<i32>} : memref<288x1152xbf16, #tpu.memory_space<vmem>>, vector<288x128xbf16>,
    %c2 = arith.constant 2 : index
    %c0_17 = arith.constant 0 : index
    %19 = vector.load %arg10[%c2, %c0_17] : memref<336x128xbf16, #tpu.memory_space<vmem>>, vector<288x128xbf16>
    %c0_18 = arith.constant 0 : index
    %c256 = arith.constant 256 : index
    %20 = vector.load %arg11[%c0_18, %c256] : memref<288x1152xbf16, #tpu.memory_space<vmem>>, vector<288x128xbf16>
    tpu.vector_store %arg11[%c0_18, %c256], %19 {strides = array<i32>} : memref<288x1152xbf16, #tpu.memory_space<vmem>>, vector<288x128xbf16>,
    %c18 = arith.constant 18 : index
    %c0_19 = arith.constant 0 : index
    %21 = vector.load %arg10[%c18, %c0_19] : memref<336x128xbf16, #tpu.memory_space<vmem>>, vector<288x128xbf16>
    %c0_20 = arith.constant 0 : index
    %c384 = arith.constant 384 : index
    %22 = vector.load %arg11[%c0_20, %c384] : memref<288x1152xbf16, #tpu.memory_space<vmem>>, vector<288x128xbf16>
    tpu.vector_store %arg11[%c0_20, %c384], %21 {strides = array<i32>} : memref<288x1152xbf16, #tpu.memory_space<vmem>>, vector<288x128xbf16>,
    %c19 = arith.constant 19 : index
    %c0_21 = arith.constant 0 : index
    %23 = vector.load %arg10[%c19, %c0_21] : memref<336x128xbf16, #tpu.memory_space<vmem>>, vector<288x128xbf16>
    %c0_22 = arith.constant 0 : index
    %c512 = arith.constant 512 : index
    %24 = vector.load %arg11[%c0_22, %c512] : memref<288x1152xbf16, #tpu.memory_space<vmem>>, vector<288x128xbf16>
    tpu.vector_store %arg11[%c0_22, %c512], %23 {strides = array<i32>} : memref<288x1152xbf16, #tpu.memory_space<vmem>>, vector<288x128xbf16>,
    %c20 = arith.constant 20 : index
    %c0_23 = arith.constant 0 : index
    %25 = vector.load %arg10[%c20, %c0_23] : memref<336x128xbf16, #tpu.memory_space<vmem>>, vector<288x128xbf16>
    %c0_24 = arith.constant 0 : index
    %c640 = arith.constant 640 : index
    %26 = vector.load %arg11[%c0_24, %c640] : memref<288x1152xbf16, #tpu.memory_space<vmem>>, vector<288x128xbf16>
    tpu.vector_store %arg11[%c0_24, %c640], %25 {strides = array<i32>} : memref<288x1152xbf16, #tpu.memory_space<vmem>>, vector<288x128xbf16>,
    %c36 = arith.constant 36 : index
    %c0_25 = arith.constant 0 : index
    %27 = vector.load %arg10[%c36, %c0_25] : memref<336x128xbf16, #tpu.memory_space<vmem>>, vector<288x128xbf16>
    %c0_26 = arith.constant 0 : index
    %c768 = arith.constant 768 : index
    %28 = vector.load %arg11[%c0_26, %c768] : memref<288x1152xbf16, #tpu.memory_space<vmem>>, vector<288x128xbf16>
    tpu.vector_store %arg11[%c0_26, %c768], %27 {strides = array<i32>} : memref<288x1152xbf16, #tpu.memory_space<vmem>>, vector<288x128xbf16>,
    %c37 = arith.constant 37 : index
    %c0_27 = arith.constant 0 : index
    %29 = vector.load %arg10[%c37, %c0_27] : memref<336x128xbf16, #tpu.memory_space<vmem>>, vector<288x128xbf16>
    %c0_28 = arith.constant 0 : index
    %c896 = arith.constant 896 : index
    %30 = vector.load %arg11[%c0_28, %c896] : memref<288x1152xbf16, #tpu.memory_space<vmem>>, vector<288x128xbf16>
    tpu.vector_store %arg11[%c0_28, %c896], %29 {strides = array<i32>} : memref<288x1152xbf16, #tpu.memory_space<vmem>>, vector<288x128xbf16>,
    %c38 = arith.constant 38 : index
    %c0_29 = arith.constant 0 : index
    %31 = vector.load %arg10[%c38, %c0_29] : memref<336x128xbf16, #tpu.memory_space<vmem>>, vector<288x128xbf16>
    %c0_30 = arith.constant 0 : index
    %c1024 = arith.constant 1024 : index
    %32 = vector.load %arg11[%c0_30, %c1024] : memref<288x1152xbf16, #tpu.memory_space<vmem>>, vector<288x128xbf16>
    tpu.vector_store %arg11[%c0_30, %c1024], %31 {strides = array<i32>} : memref<288x1152xbf16, #tpu.memory_space<vmem>>, vector<288x128xbf16>,
    %c0_31 = arith.constant 0 : index
    %c0_32 = arith.constant 0 : index
    %33 = vector.load %arg11[%c0_31, %c0_32] : memref<288x1152xbf16, #tpu.memory_space<vmem>>, vector<288x1152xbf16>
    %c0_33 = arith.constant 0 : index
    %c0_34 = arith.constant 0 : index
    %34 = vector.load %arg4[%c0_33, %c0_34] : memref<1152x128xbf16, #tpu.memory_space<vmem>>, vector<1152x128xbf16>
    %cst_35 = arith.constant dense<0.000000e+00> : vector<288x128xf32>
    %35 = tpu.matmul %33, %34, %cst_35 {dimension_numbers = #tpu.dot_dimension_numbers<[1], [0], [0], [1], [0, 0, 1, 1], [], []>} : vector<288x1152xbf16>, vector<1152x128xbf16>, vector<288x128xf32> -> vector<288x128xf32>
    %c0_36 = arith.constant 0 : index
    %c0_37 = arith.constant 0 : index
    %36 = vector.load %arg7[%c0_36, %c0_37] : memref<1x128xf32, #tpu.memory_space<vmem>>, vector<1x128xf32>
    %37 = vector.broadcast %36 : vector<1x128xf32> to vector<288x128xf32>
    %38 = arith.addf %35, %37 : vector<288x128xf32>
    %cst_38 = arith.constant 0.000000e+00 : f32
    %39 = vector.broadcast %cst_38 : f32 to vector<288x128xf32>
    %40 = arith.maximumf %38, %39 : vector<288x128xf32>
    %41 = arith.truncf %40 : vector<288x128xf32> to vector<288x128xbf16>
    %c0_39 = arith.constant 0 : index
    %c0_40 = arith.constant 0 : index
    %42 = vector.load %arg5[%c0_39, %c0_40] : memref<128x128xbf16, #tpu.memory_space<vmem>>, vector<128x128xbf16>
    %cst_41 = arith.constant dense<0.000000e+00> : vector<288x128xf32>
    %43 = tpu.matmul %41, %42, %cst_41 {dimension_numbers = #tpu.dot_dimension_numbers<[1], [0], [0], [1], [0, 0, 1, 1], [], []>} : vector<288x128xbf16>, vector<128x128xbf16>, vector<288x128xf32> -> vector<288x128xf32>
    %c0_42 = arith.constant 0 : index
    %c19_43 = arith.constant 19 : index
    %c0_44 = arith.constant 0 : index
    %44 = vector.load %arg1[%c0_42, %c19_43, %c0_44] : memref<1x336x128xf32, #tpu.memory_space<vmem>>, vector<1x288x128xf32>
    %45 = vector.shape_cast %44 : vector<1x288x128xf32> to vector<288x128xf32>
    %c0_45 = arith.constant 0 : index
    %c0_46 = arith.constant 0 : index
    %46 = vector.load %arg8[%c0_45, %c0_46] : memref<1x128xf32, #tpu.memory_space<vmem>>, vector<1x128xf32>
    %47 = vector.broadcast %46 : vector<1x128xf32> to vector<288x128xf32>
    %48 = arith.addf %43, %47 : vector<288x128xf32>
    %49 = arith.addf %48, %45 : vector<288x128xf32>
    %cst_47 = arith.constant 0.000000e+00 : f32
    %50 = vector.broadcast %cst_47 : f32 to vector<288x128xf32>
    %51 = arith.maximumf %49, %50 : vector<288x128xf32>
    %c0_48 = arith.constant 0 : index
    %c0_49 = arith.constant 0 : index
    %c0_50 = arith.constant 0 : index
    %52 = vector.load %arg9[%c0_48, %c0_49, %c0_50] : memref<1x288x128xf32, #tpu.memory_space<vmem>>, vector<1x288x128xf32>
    %53 = vector.shape_cast %52 : vector<1x288x128xf32> to vector<288x128xf32>
    %54 = vector.shape_cast %51 : vector<288x128xf32> to vector<1x288x128xf32>
    tpu.vector_store %arg9[%c0_48, %c0_49, %c0_50], %54 {strides = array<i32>} : memref<1x288x128xf32, #tpu.memory_space<vmem>>, vector<1x288x128xf32>,
    return
  }
  func.func @transform_0(%arg0: i32) -> (i32, i32, i32) {
    %c0_i32 = arith.constant 0 : i32
    %c0_i32_0 = arith.constant 0 : i32
    %c0_i32_1 = arith.constant 0 : i32
    return %arg0, %c0_i32, %c0_i32_0 : i32, i32, i32
  }
  func.func @transform_1(%arg0: i32) -> (i32, i32) {
    %c0_i32 = arith.constant 0 : i32
    %c0_i32_0 = arith.constant 0 : i32
    %c0_i32_1 = arith.constant 0 : i32
    return %c0_i32, %c0_i32_0 : i32, i32
  }
  func.func @transform_2(%arg0: i32) -> (i32, i32) {
    %c0_i32 = arith.constant 0 : i32
    %c0_i32_0 = arith.constant 0 : i32
    %c0_i32_1 = arith.constant 0 : i32
    return %c0_i32, %c0_i32_0 : i32, i32
  }
  func.func @transform_3(%arg0: i32) -> (i32, i32) {
    %c0_i32 = arith.constant 0 : i32
    %c0_i32_0 = arith.constant 0 : i32
    %c0_i32_1 = arith.constant 0 : i32
    return %c0_i32, %c0_i32_0 : i32, i32
  }
  func.func @transform_4(%arg0: i32) -> (i32, i32) {
    %c0_i32 = arith.constant 0 : i32
    %c0_i32_0 = arith.constant 0 : i32
    %c0_i32_1 = arith.constant 0 : i32
    return %c0_i32, %c0_i32_0 : i32, i32
  }
  func.func @transform_5(%arg0: i32) -> (i32, i32) {
    %c0_i32 = arith.constant 0 : i32
    %c0_i32_0 = arith.constant 0 : i32
    %c0_i32_1 = arith.constant 0 : i32
    return %c0_i32, %c0_i32_0 : i32, i32
  }
  func.func @transform_6(%arg0: i32) -> (i32, i32) {
    %c0_i32 = arith.constant 0 : i32
    %c0_i32_0 = arith.constant 0 : i32
    %c0_i32_1 = arith.constant 0 : i32
    return %c0_i32, %c0_i32_0 : i32, i32
  }
  func.func @transform_7(%arg0: i32) -> (i32, i32) {
    %c0_i32 = arith.constant 0 : i32
    %c0_i32_0 = arith.constant 0 : i32
    %c0_i32_1 = arith.constant 0 : i32
    return %c0_i32, %c0_i32_0 : i32, i32
  }
  func.func @transform_8(%arg0: i32) -> (i32, i32, i32) {
    %c0_i32 = arith.constant 0 : i32
    %c0_i32_0 = arith.constant 0 : i32
    %c0_i32_1 = arith.constant 0 : i32
    return %arg0, %c0_i32, %c0_i32_0 : i32, i32, i32
  }
}

</mosaic_0001>

<llo_original>
// kernel: tpu_custom_call.1
$region0: #{tpu_custom_call.1}
  #allocation0 [shape = 'u32[]', space=smem, size = 0x4, offset = 0x4, fixed_abs, tag = 'smem constant byte address 0x4 - core index']
  #allocation1 [shape = 'u32[144,128]{1,0:T(1,128)}', space=vmem, size = 0x12000, scoped, tag = 'internal scratch']
  #allocation2 [shape = 'bf16[336,128]{1,0:T(8,128)(2,1)}', space=vmem, size = 0x15000, scoped, tag = 'scratch operand']
  #allocation3 [shape = 'bf16[288,1152]{1,0:T(8,128)(2,1)}', space=vmem, size = 0xa2000, scoped, tag = 'scratch operand']
  %s0 = inlined_call_operand.hbm [shape: f32[2,336,128], index: 0, kind: input, shape index: {}]
  %s1 = inlined_call_operand.vmem [shape: f32[336,1], index: 1, kind: input, shape index: {}]
  %s2 = inlined_call_operand.vmem [shape: bf16[128,128], index: 2, kind: input, shape index: {}]
  %s3 = inlined_call_operand.hbm [shape: bf16[1152,128], index: 3, kind: input, shape index: {}]
  %s4 = inlined_call_operand.vmem [shape: bf16[128,128], index: 4, kind: input, shape index: {}]
  %s5 = inlined_call_operand.vmem [shape: f32[1,128], index: 5, kind: input, shape index: {}]
  %s6 = inlined_call_operand.vmem [shape: f32[1,128], index: 6, kind: input, shape index: {}]
  %s7 = inlined_call_operand.vmem [shape: f32[1,128], index: 7, kind: input, shape index: {}]
  %s8 = inlined_call_operand.hbm [shape: f32[2,288,128], index: 8, kind: output, shape index: {}]
  %s9 = sld [smem:[#allocation0]]
  $region73: #{tpu_custom_call.1} parent=0
    _
  %s11 = ssub.s32 1, %s9
  %s12 = scalar_select 0, %s11, %s9
  $region1: #{tpu_custom_call.1} parent=0
    #allocation4 [shape = 'u8[344064]{0}', space=vmem, size = 0x54000, scoped, tag = 'input window, operand 0']
    #allocation5 [shape = 's32[2]{0}', space=sflag, size = 0x8, scoped, tag = 'scoped memory for tpu_custom_call.1']
    #allocation6 [shape = 's32[2]{0}', space=sflag, size = 0x8, scoped, tag = 'scoped memory for tpu_custom_call.1']
    #allocation7 [shape = 'u8[294912]{0}', space=vmem, size = 0x48000, scoped, tag = 'input window, operand 3, single buffered']
    #allocation8 [shape = 's32[1]{0}', space=sflag, size = 0x4, scoped, tag = 'scoped memory for tpu_custom_call.1']
    #allocation9 [shape = 'u8[294912]{0}', space=vmem, size = 0x48000, scoped, tag = 'output window, operand 0']
    %13 = vsyncpa [#allocation5], 0
    %s14 = scalar_lea.sflag [#allocation5], 1
    %15 = vsyncpa %s14, 0
    %16 = vsyncpa [#allocation8], 0
    %17 = vsyncpa [#allocation6], 0
    %s18 = scalar_lea.sflag [#allocation6], 1
    %19 = vsyncpa %s18, 0
    loop: start=0, step=1, limit=4
    $region2: #{tpu_custom_call.1} parent=1 // loop_pre_header
      _
    $region3: #{tpu_custom_call.1} parent=1 // loop_header
      %s21 = sphi 0, %s25
      %p22 = scmp.ge.s32.totalorder %s21, 4
      %s31 = sphi 0, %s33
      %s34 = sphi 0, %s31
      %s35 = sphi 0, %s34
      %s51 = sphi 0, %s35
      %s55 = sphi 0, %s55
      %s57 = sphi 0, %s55
      %s58 = sphi 0, %s57
      %s72 = sphi 0, %s58
      %s76 = sphi 0, %s76
      %s78 = sphi 0, %s76
      %s79 = sphi 0, %s78
      %s93 = sphi 0, %s79
      %s97 = sphi 0, %s97
      %s99 = sphi 0, %s97
      %s100 = sphi 0, %s99
      %s114 = sphi 0, %s100
      %s118 = sphi 0, %s118
      %s120 = sphi 0, %s118
      %s121 = sphi 0, %s120
      %s135 = sphi 0, %s121
      %s139 = sphi 0, %s139
      %s141 = sphi 0, %s139
      %s142 = sphi 0, %s141
      %s156 = sphi 0, %s142
      %s160 = sphi 0, %s160
      %s162 = sphi 0, %s160
      %s163 = sphi 0, %s162
      %s177 = sphi 0, %s163
      %s181 = sphi 0, %s181
      %s183 = sphi 0, %s181
      %s184 = sphi 0, %s183
      %s198 = sphi 0, %s184
      %s204 = sphi 0, %s206
      %s207 = sphi 0, %s204
      %s208 = sphi 0, %s207
      %s224 = sphi 0, %s208
    $region4: #{tpu_custom_call.1} parent=1 // loop_header_branch
      %24 = sbr.rel (%p22) target = $region8
    $region5: #{tpu_custom_call.1} parent=1 // loop_body
      %s26 = ssub.s32 %s21, 1
      %s27 = ssub.s32 %s21, 2
      %s28 = sadd.s32 %s21, 1
      %s29 = ssub.s32 %s21, %s28
      %p30 = scmp.eq.s32.totalorder %s29, 0
      %s32 = sadd.s32 %s31, 1
      %s33 = scalar_select %p30, %s31, %s32
      %p36 = pneg %p30
      %p37 = scmp.eq.s32.totalorder %s21, 1
      %p38 = por %p36, %p37
      %p39 = scmp.ne.s32.totalorder %s31, %s34
      %p40 = scmp.eq.s32.totalorder %s21, 0
      %p41 = por %p39, %p40
      %p42 = scmp.ne.s32.totalorder %s31, %s34
      %p43 = scmp.eq.s32.totalorder %s26, 1
      %p44 = por %p42, %p43
      %p45 = scmp.ne.s32.totalorder %s34, %s35
      %p46 = scmp.eq.s32.totalorder %s26, 0
      %p47 = por %p45, %p46
      %p48 = scmp.ne.s32.totalorder %s34, %s35
      %p49 = scmp.eq.s32.totalorder %s27, 1
      %p50 = por %p48, %p49
      %p52 = scmp.ne.s32.totalorder %s35, %s51
      %p53 = scmp.eq.s32.totalorder %s27, 0
      %p54 = por %p52, %p53
      %s56 = sadd.s32 %s55, 1
      %p59 = scmp.eq.s32.totalorder %s21, 1
      %p60 = scmp.ne.s32.totalorder %s55, %s57
      %p61 = scmp.eq.s32.totalorder %s21, 0
      %p62 = por %p60, %p61
      %p63 = scmp.ne.s32.totalorder %s55, %s57
      %p64 = scmp.eq.s32.totalorder %s26, 1
      %p65 = por %p63, %p64
      %p66 = scmp.ne.s32.totalorder %s57, %s58
      %p67 = scmp.eq.s32.totalorder %s26, 0
      %p68 = por %p66, %p67
      %p69 = scmp.ne.s32.totalorder %s57, %s58
      %p70 = scmp.eq.s32.totalorder %s27, 1
      %p71 = por %p69, %p70
      %p73 = scmp.ne.s32.totalorder %s58, %s72
      %p74 = scmp.eq.s32.totalorder %s27, 0
      %p75 = por %p73, %p74
      %s77 = sadd.s32 %s76, 1
      %p80 = scmp.eq.s32.totalorder %s21, 1
      %p81 = scmp.ne.s32.totalorder %s76, %s78
      %p82 = scmp.eq.s32.totalorder %s21, 0
      %p83 = por %p81, %p82
      %p84 = scmp.ne.s32.totalorder %s76, %s78
      %p85 = scmp.eq.s32.totalorder %s26, 1
      %p86 = por %p84, %p85
      %p87 = scmp.ne.s32.totalorder %s78, %s79
      %p88 = scmp.eq.s32.totalorder %s26, 0
      %p89 = por %p87, %p88
      %p90 = scmp.ne.s32.totalorder %s78, %s79
      %p91 = scmp.eq.s32.totalorder %s27, 1
      %p92 = por %p90, %p91
      %p94 = scmp.ne.s32.totalorder %s79, %s93
      %p95 = scmp.eq.s32.totalorder %s27, 0
      %p96 = por %p94, %p95
      %s98 = sadd.s32 %s97, 1
      %p101 = scmp.eq.s32.totalorder %s21, 1
      %p102 = scmp.ne.s32.totalorder %s97, %s99
      %p103 = scmp.eq.s32.totalorder %s21, 0
      %p104 = por %p102, %p103
      %p105 = scmp.ne.s32.totalorder %s97, %s99
      %p106 = scmp.eq.s32.totalorder %s26, 1
      %p107 = por %p105, %p106
      %p108 = scmp.ne.s32.totalorder %s99, %s100
      %p109 = scmp.eq.s32.totalorder %s26, 0
      %p110 = por %p108, %p109
      %p111 = scmp.ne.s32.totalorder %s99, %s100
      %p112 = scmp.eq.s32.totalorder %s27, 1
      %p113 = por %p111, %p112
      %p115 = scmp.ne.s32.totalorder %s100, %s114
      %p116 = scmp.eq.s32.totalorder %s27, 0
      %p117 = por %p115, %p116
      %s119 = sadd.s32 %s118, 1
      %p122 = scmp.eq.s32.totalorder %s21, 1
      %p123 = scmp.ne.s32.totalorder %s118, %s120
      %p124 = scmp.eq.s32.totalorder %s21, 0
      %p125 = por %p123, %p124
      %p126 = scmp.ne.s32.totalorder %s118, %s120
      %p127 = scmp.eq.s32.totalorder %s26, 1
      %p128 = por %p126, %p127
      %p129 = scmp.ne.s32.totalorder %s120, %s121
      %p130 = scmp.eq.s32.totalorder %s26, 0
      %p131 = por %p129, %p130
      %p132 = scmp.ne.s32.totalorder %s120, %s121
      %p133 = scmp.eq.s32.totalorder %s27, 1
      %p134 = por %p132, %p133
      %p136 = scmp.ne.s32.totalorder %s121, %s135
      %p137 = scmp.eq.s32.totalorder %s27, 0
      %p138 = por %p136, %p137
      %s140 = sadd.s32 %s139, 1
      %p143 = scmp.eq.s32.totalorder %s21, 1
      %p144 = scmp.ne.s32.totalorder %s139, %s141
      %p145 = scmp.eq.s32.totalorder %s21, 0
      %p146 = por %p144, %p145
      %p147 = scmp.ne.s32.totalorder %s139, %s141
      %p148 = scmp.eq.s32.totalorder %s26, 1
      %p149 = por %p147, %p148
      %p150 = scmp.ne.s32.totalorder %s141, %s142
      %p151 = scmp.eq.s32.totalorder %s26, 0
      %p152 = por %p150, %p151
      %p153 = scmp.ne.s32.totalorder %s141, %s142
      %p154 = scmp.eq.s32.totalorder %s27, 1
      %p155 = por %p153, %p154
      %p157 = scmp.ne.s32.totalorder %s142, %s156
      %p158 = scmp.eq.s32.totalorder %s27, 0
      %p159 = por %p157, %p158
      %s161 = sadd.s32 %s160, 1
      %p164 = scmp.eq.s32.totalorder %s21, 1
      %p165 = scmp.ne.s32.totalorder %s160, %s162
      %p166 = scmp.eq.s32.totalorder %s21, 0
      %p167 = por %p165, %p166
      %p168 = scmp.ne.s32.totalorder %s160, %s162
      %p169 = scmp.eq.s32.totalorder %s26, 1
      %p170 = por %p168, %p169
      %p171 = scmp.ne.s32.totalorder %s162, %s163
      %p172 = scmp.eq.s32.totalorder %s26, 0
      %p173 = por %p171, %p172
      %p174 = scmp.ne.s32.totalorder %s162, %s163
      %p175 = scmp.eq.s32.totalorder %s27, 1
      %p176 = por %p174, %p175
      %p178 = scmp.ne.s32.totalorder %s163, %s177
      %p179 = scmp.eq.s32.totalorder %s27, 0
      %p180 = por %p178, %p179
      %s182 = sadd.s32 %s181, 1
      %p185 = scmp.eq.s32.totalorder %s21, 1
      %p186 = scmp.ne.s32.totalorder %s181, %s183
      %p187 = scmp.eq.s32.totalorder %s21, 0
      %p188 = por %p186, %p187
      %p189 = scmp.ne.s32.totalorder %s181, %s183
      %p190 = scmp.eq.s32.totalorder %s26, 1
      %p191 = por %p189, %p190
      %p192 = scmp.ne.s32.totalorder %s183, %s184
      %p193 = scmp.eq.s32.totalorder %s26, 0
      %p194 = por %p192, %p193
      %p195 = scmp.ne.s32.totalorder %s183, %s184
      %p196 = scmp.eq.s32.totalorder %s27, 1
      %p197 = por %p195, %p196
      %p199 = scmp.ne.s32.totalorder %s184, %s198
      %p200 = scmp.eq.s32.totalorder %s27, 0
      %p201 = por %p199, %p200
      %s202 = ssub.s32 %s21, %s28
      %p203 = scmp.eq.s32.totalorder %s202, 0
      %s205 = sadd.s32 %s204, 1
      %s206 = scalar_select %p203, %s204, %s205
      %p209 = pneg %p203
      %p210 = scmp.eq.s32.totalorder %s21, 1
      %p211 = por %p209, %p210
      %p212 = scmp.ne.s32.totalorder %s204, %s207
      %p213 = scmp.eq.s32.totalorder %s21, 0
      %p214 = por %p212, %p213
      %p215 = scmp.ne.s32.totalorder %s204, %s207
      %p216 = scmp.eq.s32.totalorder %s26, 1
      %p217 = por %p215, %p216
      %p218 = scmp.ne.s32.totalorder %s207, %s208
      %p219 = scmp.eq.s32.totalorder %s26, 0
      %p220 = por %p218, %p219
      %p221 = scmp.ne.s32.totalorder %s207, %s208
      %p222 = scmp.eq.s32.totalorder %s27, 1
      %p223 = por %p221, %p222
      %p225 = scmp.ne.s32.totalorder %s208, %s224
      %p226 = scmp.eq.s32.totalorder %s27, 0
      %p227 = por %p225, %p226
      %p228 = scmp.le.s32.totalorder 1, %s21
      %p229 = scmp.lt.s32.totalorder %s21, 3
      %p230 = pnand %p228, %p229
      %p231 = pneg %p230
      // Predicated region
      $region9: #{tpu_custom_call.1} parent=5 // pred_check
        _
      $region10: #{tpu_custom_call.1} parent=5 // pred_check_branch
        %233 = sbr.rel (%p230) target = $region12
      $region11: #{tpu_custom_call.1} parent=5 // pred_region
        %s234 = ssub.s32 %s21, 1
        // Predicated region
        $region13: #{tpu_custom_call.1} parent=11 // pred_check
          %p235 = pneg %p68
        $region14: #{tpu_custom_call.1} parent=11 // pred_check_branch
          %237 = sbr.rel (%p235) target = $region16
        $region15: #{tpu_custom_call.1} parent=11 // pred_region
          _
        $region16: #{tpu_custom_call.1} parent=11 // pred_fallthru
          _
        // Predicated region
        $region17: #{tpu_custom_call.1} parent=11 // pred_check
          %p238 = pneg %p89
        $region18: #{tpu_custom_call.1} parent=11 // pred_check_branch
          %240 = sbr.rel (%p238) target = $region20
        $region19: #{tpu_custom_call.1} parent=11 // pred_region
          _
        $region20: #{tpu_custom_call.1} parent=11 // pred_fallthru
          _
        // Predicated region
        $region21: #{tpu_custom_call.1} parent=11 // pred_check
          %p241 = pneg %p110
        $region22: #{tpu_custom_call.1} parent=11 // pred_check_branch
          %243 = sbr.rel (%p241) target = $region24
        $region23: #{tpu_custom_call.1} parent=11 // pred_region
          %s245 = ssub.s32 9216, 9216
          %246 = vsyncadd [#allocation8], %s245
          %s247 = sshll.u32 [#allocation7], 4
          %s248 = int_to_ptr.vmem [resolvable:$true] %s247
          %253 = dma.hbm_to_vmem [thread:$0]  %s3, 9216, %s248, [#allocation8], 64, 64, 4
        $region24: #{tpu_custom_call.1} parent=11 // pred_fallthru
          _
        // Predicated region
        $region25: #{tpu_custom_call.1} parent=11 // pred_check
          %p254 = pneg %p131
        $region26: #{tpu_custom_call.1} parent=11 // pred_check_branch
          %256 = sbr.rel (%p254) target = $region28
        $region27: #{tpu_custom_call.1} parent=11 // pred_region
          _
        $region28: #{tpu_custom_call.1} parent=11 // pred_fallthru
          _
        // Predicated region
        $region29: #{tpu_custom_call.1} parent=11 // pred_check
          %p257 = pneg %p152
        $region30: #{tpu_custom_call.1} parent=11 // pred_check_branch
          %259 = sbr.rel (%p257) target = $region32
        $region31: #{tpu_custom_call.1} parent=11 // pred_region
          _
        $region32: #{tpu_custom_call.1} parent=11 // pred_fallthru
          _
        // Predicated region
        $region33: #{tpu_custom_call.1} parent=11 // pred_check
          %p260 = pneg %p173
        $region34: #{tpu_custom_call.1} parent=11 // pred_check_branch
          %262 = sbr.rel (%p260) target = $region36
        $region35: #{tpu_custom_call.1} parent=11 // pred_region
          _
        $region36: #{tpu_custom_call.1} parent=11 // pred_fallthru
          _
        // Predicated region
        $region37: #{tpu_custom_call.1} parent=11 // pred_check
          %p263 = pneg %p194
        $region38: #{tpu_custom_call.1} parent=11 // pred_check_branch
          %265 = sbr.rel (%p263) target = $region40
        $region39: #{tpu_custom_call.1} parent=11 // pred_region
          _
        $region40: #{tpu_custom_call.1} parent=11 // pred_fallthru
          _
      $region12: #{tpu_custom_call.1} parent=5 // pred_fallthru
        _
      %p266 = scmp.lt.s32.totalorder %s21, 2
      // Predicated region
      $region41: #{tpu_custom_call.1} parent=5 // pred_check
        %p267 = pneg %p266
      $region42: #{tpu_custom_call.1} parent=5 // pred_check_branch
        %269 = sbr.rel (%p267) target = $region44
      $region43: #{tpu_custom_call.1} parent=5 // pred_region
        // Predicated region
        $region45: #{tpu_custom_call.1} parent=43 // pred_check
          %p270 = pneg %p41
        $region46: #{tpu_custom_call.1} parent=43 // pred_check_branch
          %272 = sbr.rel (%p270) target = $region48
        $region47: #{tpu_custom_call.1} parent=43 // pred_region
          %s273 = sand.u32 %s31, 1
          %s274 = scalar_lea.sflag [#allocation5], %s273
          %s275 = sand.u32 %s31, 1
          %s276 = smul.addr %s275, 336
          %s277 = scalar_lea.vmem [#allocation4], %s276
          %s279 = ssub.s32 5376, 5376
          %280 = vsyncadd %s274, %s279
          %s281 = smul.addr %s21, 42
          %s282 = smul.addr %s281, 128
          %s283 = scalar_lea.hbm %s0, %s282
          %s284 = sshll.u32 %s277, 4
          %s285 = int_to_ptr.vmem [resolvable:$true] %s284
          %290 = dma.hbm_to_vmem [thread:$0]  %s283, 5376, %s285, %s274, 128, 128, 8
        $region48: #{tpu_custom_call.1} parent=43 // pred_fallthru
          _
      $region44: #{tpu_custom_call.1} parent=5 // pred_fallthru
        _
      %p291 = scmp.le.s32.totalorder 1, %s21
      %p292 = scmp.lt.s32.totalorder %s21, 3
      %p293 = pnand %p291, %p292
      %p294 = pneg %p293
      // Predicated region
      $region49: #{tpu_custom_call.1} parent=5 // pred_check
        _
      $region50: #{tpu_custom_call.1} parent=5 // pred_check_branch
        %296 = sbr.rel (%p293) target = $region52
      $region51: #{tpu_custom_call.1} parent=5 // pred_region
        %s297 = ssub.s32 %s21, 1
        %s298 = sand.u32 %s34, 1
        %s299 = scalar_lea.sflag [#allocation5], %s298
        %s300 = sand.u32 %s34, 1
        %s301 = smul.addr %s300, 336
        %s302 = scalar_lea.vmem [#allocation4], %s301
        // Predicated region
        $region53: #{tpu_custom_call.1} parent=51 // pred_check
          %p303 = pneg %p47
        $region54: #{tpu_custom_call.1} parent=51 // pred_check_branch
          %305 = sbr.rel (%p303) target = $region56
        $region55: #{tpu_custom_call.1} parent=51 // pred_region
          %306 = dma.done %s299, 5376
        $region56: #{tpu_custom_call.1} parent=51 // pred_fallthru
          _
        // Predicated region
        $region57: #{tpu_custom_call.1} parent=51 // pred_check
          %p307 = pneg %p110
        $region58: #{tpu_custom_call.1} parent=51 // pred_check_branch
          %309 = sbr.rel (%p307) target = $region60
        $region59: #{tpu_custom_call.1} parent=51 // pred_region
          %310 = dma.done [#allocation8], 9216
        $region60: #{tpu_custom_call.1} parent=51 // pred_fallthru
          _
        %s311 = sand.u32 %s34, 1
        %s312 = scalar_lea.sflag [#allocation5], %s311
        %s313 = sand.u32 %s34, 1
        %s314 = smul.addr %s313, 336
        %s315 = scalar_lea.vmem [#allocation4], %s314
        %p316 = pneg %p47
        %p317 = pneg %p44
        %p318 = pneg %p68
        %p319 = pneg %p65
        %p320 = pneg %p89
        %p321 = pneg %p86
        %p322 = pneg %p110
        %p323 = pneg %p107
        %p324 = pneg %p131
        %p325 = pneg %p128
        %p326 = pneg %p152
        %p327 = pneg %p149
        %p328 = pneg %p173
        %p329 = pneg %p170
        %p330 = pneg %p194
        %p331 = pneg %p191
        %p332 = pneg %p220
        %p333 = pneg %p217
        %s334 = sand.u32 %s207, 1
        %s335 = scalar_lea.sflag [#allocation6], %s334
        %s336 = sand.u32 %s207, 1
        %s337 = smul.addr %s336, 288
        %s338 = scalar_lea.vmem [#allocation9], %s337
        %v340 = vld [vmem:[%s302] sm:$0xff]
        %v341 = vld [vmem:[%s302 + $0x8] sm:$0xff]
        %v342 = vld [vmem:[%s302 + $0x10] sm:$0xff]
        %v343 = vld [vmem:[%s302 + $0x18] sm:$0xff]
        %v344 = vld [vmem:[%s302 + $0x20] sm:$0xff]
        %v345 = vld [vmem:[%s302 + $0x28] sm:$0xff]
        %v346 = vld [vmem:[%s302 + $0x30] sm:$0xff]
        %v347 = vld [vmem:[%s302 + $0x38] sm:$0xff]
        %v348 = vld [vmem:[%s302 + $0x40] sm:$0xff]
        %v349 = vld [vmem:[%s302 + $0x48] sm:$0xff]
        %v350 = vld [vmem:[%s302 + $0x50] sm:$0xff]
        %v351 = vld [vmem:[%s302 + $0x58] sm:$0xff]
        %v352 = vld [vmem:[%s302 + $0x60] sm:$0xff]
        %v353 = vld [vmem:[%s302 + $0x68] sm:$0xff]
        %v354 = vld [vmem:[%s302 + $0x70] sm:$0xff]
        %v355 = vld [vmem:[%s302 + $0x78] sm:$0xff]
        %v356 = vld [vmem:[%s302 + $0x80] sm:$0xff]
        %v357 = vld [vmem:[%s302 + $0x88] sm:$0xff]
        %v358 = vld [vmem:[%s302 + $0x90] sm:$0xff]
        %v359 = vld [vmem:[%s302 + $0x98] sm:$0xff]
        %v360 = vld [vmem:[%s302 + $0xa0] sm:$0xff]
        %v361 = vld [vmem:[%s302 + $0xa8] sm:$0xff]
        %v362 = vld [vmem:[%s302 + $0xb0] sm:$0xff]
        %v363 = vld [vmem:[%s302 + $0xb8] sm:$0xff]
        %v364 = vld [vmem:[%s302 + $0xc0] sm:$0xff]
        %v365 = vld [vmem:[%s302 + $0xc8] sm:$0xff]
        %v366 = vld [vmem:[%s302 + $0xd0] sm:$0xff]
        %v367 = vld [vmem:[%s302 + $0xd8] sm:$0xff]
        %v368 = vld [vmem:[%s302 + $0xe0] sm:$0xff]
        %v369 = vld [vmem:[%s302 + $0xe8] sm:$0xff]
        %v370 = vld [vmem:[%s302 + $0xf0] sm:$0xff]
        %v371 = vld [vmem:[%s302 + $0xf8] sm:$0xff]
        %v372 = vld [vmem:[%s302 + $0x100] sm:$0xff]
        %v373 = vld [vmem:[%s302 + $0x108] sm:$0xff]
        %v374 = vld [vmem:[%s302 + $0x110] sm:$0xff]
        %v375 = vld [vmem:[%s302 + $0x118] sm:$0xff]
        %v376 = vld [vmem:[%s302 + $0x120] sm:$0xff]
        %v377 = vld [vmem:[%s302 + $0x128] sm:$0xff]
        %v378 = vld [vmem:[%s302 + $0x130] sm:$0xff]
        %v379 = vld [vmem:[%s302 + $0x138] sm:$0xff]
        %v380 = vld [vmem:[%s302 + $0x140] sm:$0xff]
        %v381 = vld [vmem:[%s302 + $0x148] sm:$0xff]
        %v382 = vpack.c.bf16 %v341, %v340
        %v383 = vpack.c.bf16 %v343, %v342
        %v384 = vpack.c.bf16 %v345, %v344
        %v385 = vpack.c.bf16 %v347, %v346
        %v386 = vpack.c.bf16 %v349, %v348
        %v387 = vpack.c.bf16 %v351, %v350
        %v388 = vpack.c.bf16 %v353, %v352
        %v389 = vpack.c.bf16 %v355, %v354
        %v390 = vpack.c.bf16 %v357, %v356
        %v391 = vpack.c.bf16 %v359, %v358
        %v392 = vpack.c.bf16 %v361, %v360
        %v393 = vpack.c.bf16 %v363, %v362
        %v394 = vpack.c.bf16 %v365, %v364
        %v395 = vpack.c.bf16 %v367, %v366
        %v396 = vpack.c.bf16 %v369, %v368
        %v397 = vpack.c.bf16 %v371, %v370
        %v398 = vpack.c.bf16 %v373, %v372
        %v399 = vpack.c.bf16 %v375, %v374
        %v400 = vpack.c.bf16 %v377, %v376
        %v401 = vpack.c.bf16 %v379, %v378
        %v402 = vpack.c.bf16 %v381, %v380
        %v403 = vld [vmem:[%s2] sm:$0xf]
        %v404 = vld [vmem:[%s2 + $0x4] sm:$0xf]
        %v405 = vld [vmem:[%s2 + $0x8] sm:$0xf]
        %v406 = vld [vmem:[%s2 + $0xc] sm:$0xf]
        %v407 = vld [vmem:[%s2 + $0x10] sm:$0xf]
        %v408 = vld [vmem:[%s2 + $0x14] sm:$0xf]
        %v409 = vld [vmem:[%s2 + $0x18] sm:$0xf]
        %v410 = vld [vmem:[%s2 + $0x1c] sm:$0xf]
        %v411 = vld [vmem:[%s2 + $0x20] sm:$0xf]
        %v412 = vld [vmem:[%s2 + $0x24] sm:$0xf]
        %v413 = vld [vmem:[%s2 + $0x28] sm:$0xf]
        %v414 = vld [vmem:[%s2 + $0x2c] sm:$0xf]
        %v415 = vld [vmem:[%s2 + $0x30] sm:$0xf]
        %v416 = vld [vmem:[%s2 + $0x34] sm:$0xf]
        %v417 = vld [vmem:[%s2 + $0x38] sm:$0xf]
        %v418 = vld [vmem:[%s2 + $0x3c] sm:$0xf]
        %v419 = vld [vmem:[%s5] sm:$0x1]
        %v421 = vlaneseq
        %v422 = vshrl.u32 %v421, 7
        %v423 = vsub.s32 0, %v422
        %v424 = vrot.slane %v419, %v423
        %v442 = vunpack.c.l.b16 %v403
        %v443 = vunpack.c.l.b16 %v404
        %v444 = vunpack.c.l.b16 %v405
        %v445 = vunpack.c.l.b16 %v406
        %v446 = vunpack.c.l.b16 %v407
        %v447 = vunpack.c.l.b16 %v408
        %v448 = vunpack.c.l.b16 %v409
        %v449 = vunpack.c.l.b16 %v410
        %v450 = vunpack.c.l.b16 %v411
        %v451 = vunpack.c.l.b16 %v412
        %v452 = vunpack.c.l.b16 %v413
        %v453 = vunpack.c.l.b16 %v414
        %v454 = vunpack.c.l.b16 %v415
        %v455 = vunpack.c.l.b16 %v416
        %v456 = vunpack.c.l.b16 %v417
        %v457 = vunpack.c.l.b16 %v418
        %v458 = vpack.c.b16 %v443, %v442
        %v459 = vpack.c.b16 %v445, %v444
        %v460 = vpack.c.b16 %v447, %v446
        %v461 = vpack.c.b16 %v449, %v448
        %v462 = vpack.c.b16 %v451, %v450
        %v463 = vpack.c.b16 %v453, %v452
        %v464 = vpack.c.b16 %v455, %v454
        %v465 = vpack.c.b16 %v457, %v456
        %474 = vmatprep.subr.bf16.mxu0 0
        %475 = vmatpush1.bf16.msra.mxu0 %v465
        %476 = vmatprep.subr.bf16.mxu0 0
        %477 = vmatpush1.bf16.msra.mxu0 %v464
        %478 = vmatprep.subr.bf16.mxu0 0
        %479 = vmatpush1.bf16.msra.mxu0 %v463
        %480 = vmatprep.subr.bf16.mxu0 0
        %481 = vmatpush1.bf16.msra.mxu0 %v462
        %482 = vmatprep.subr.bf16.mxu0 0
        %483 = vmatpush1.bf16.msra.mxu0 %v461
        %484 = vmatprep.subr.bf16.mxu0 0
        %485 = vmatpush1.bf16.msra.mxu0 %v460
        %486 = vmatprep.subr.bf16.mxu0 0
        %487 = vmatpush1.bf16.msra.mxu0 %v459
        %488 = vmatprep.subr.bf16.mxu0 0
        %489 = vmatpush1.bf16.msra.mxu0 %v458
        %490 = vmatprep.subr.bf16.mxu0 0
        %491 = vmatpush2.bf16.msra.mxu0 0
        %492 = vmatprep.subr.bf16.mxu0 0
        %493 = vmatpush2.bf16.msra.mxu0 0
        %494 = vmatprep.subr.bf16.mxu0 0
        %495 = vmatpush2.bf16.msra.mxu0 0
        %496 = vmatprep.subr.bf16.mxu0 0
        %497 = vmatpush2.bf16.msra.mxu0 0
        %498 = vmatprep.subr.bf16.mxu0 0
        %499 = vmatpush2.bf16.msra.mxu0 0
        %500 = vmatprep.subr.bf16.mxu0 0
        %501 = vmatpush2.bf16.msra.mxu0 0
        %502 = vmatprep.subr.bf16.mxu0 0
        %503 = vmatpush2.bf16.msra.mxu0 0
        %504 = vmatprep.subr.bf16.mxu0 0
        %505 = vmatpush2.bf16.msra.mxu0 0
        %506 = vmatprep.mubr.bf16.mxu0 0
        %507 = vmatmul.mubr.bf16.gmra.mxu0 %v382
        %v508 = vpop.f32.mrf.mxu0
        %v509 = vadd.f32 %v424, %v508
        %v510 = vpop.f32.mrf.mxu0
        %v511 = vpop.f32.mrf.mxu0
        %v512 = vadd.f32 %v424, %v511
        %v513 = vpop.f32.mrf.mxu0
        %514 = vmatprep.mubr.bf16.mxu0 0
        %515 = vmatmul.mubr.bf16.gmra.mxu0 %v383
        %v516 = vpop.f32.mrf.mxu0
        %v517 = vadd.f32 %v424, %v516
        %v518 = vpop.f32.mrf.mxu0
        %v519 = vpop.f32.mrf.mxu0
        %v520 = vadd.f32 %v424, %v519
        %v521 = vpop.f32.mrf.mxu0
        %522 = vmatprep.mubr.bf16.mxu0 0
        %523 = vmatmul.mubr.bf16.gmra.mxu0 %v384
        %v524 = vpop.f32.mrf.mxu0
        %v525 = vadd.f32 %v424, %v524
        %v526 = vpop.f32.mrf.mxu0
        %v527 = vpop.f32.mrf.mxu0
        %v528 = vadd.f32 %v424, %v527
        %v529 = vpop.f32.mrf.mxu0
        %530 = vmatprep.mubr.bf16.mxu0 0
        %531 = vmatmul.mubr.bf16.gmra.mxu0 %v385
        %v532 = vpop.f32.mrf.mxu0
        %v533 = vadd.f32 %v424, %v532
        %v534 = vpop.f32.mrf.mxu0
        %v535 = vpop.f32.mrf.mxu0
        %v536 = vadd.f32 %v424, %v535
        %v537 = vpop.f32.mrf.mxu0
        %538 = vmatprep.mubr.bf16.mxu0 0
        %539 = vmatmul.mubr.bf16.gmra.mxu0 %v386
        %v540 = vpop.f32.mrf.mxu0
        %v541 = vadd.f32 %v424, %v540
        %v542 = vpop.f32.mrf.mxu0
        %v543 = vpop.f32.mrf.mxu0
        %v544 = vadd.f32 %v424, %v543
        %v545 = vpop.f32.mrf.mxu0
        %546 = vmatprep.mubr.bf16.mxu0 0
        %547 = vmatmul.mubr.bf16.gmra.mxu0 %v387
        %v548 = vpop.f32.mrf.mxu0
        %v549 = vadd.f32 %v424, %v548
        %v550 = vpop.f32.mrf.mxu0
        %v551 = vpop.f32.mrf.mxu0
        %v552 = vadd.f32 %v424, %v551
        %v553 = vpop.f32.mrf.mxu0
        %554 = vmatprep.mubr.bf16.mxu0 0
        %555 = vmatmul.mubr.bf16.gmra.mxu0 %v388
        %v556 = vpop.f32.mrf.mxu0
        %v557 = vadd.f32 %v424, %v556
        %v558 = vpop.f32.mrf.mxu0
        %v559 = vpop.f32.mrf.mxu0
        %v560 = vadd.f32 %v424, %v559
        %v561 = vpop.f32.mrf.mxu0
        %562 = vmatprep.mubr.bf16.mxu0 0
        %563 = vmatmul.mubr.bf16.gmra.mxu0 %v389
        %v564 = vpop.f32.mrf.mxu0
        %v565 = vadd.f32 %v424, %v564
        %v566 = vpop.f32.mrf.mxu0
        %v567 = vpop.f32.mrf.mxu0
        %v568 = vadd.f32 %v424, %v567
        %v569 = vpop.f32.mrf.mxu0
        %570 = vmatprep.mubr.bf16.mxu0 0
        %571 = vmatmul.mubr.bf16.gmra.mxu0 %v390
        %v572 = vpop.f32.mrf.mxu0
        %v573 = vadd.f32 %v424, %v572
        %v574 = vpop.f32.mrf.mxu0
        %v575 = vpop.f32.mrf.mxu0
        %v576 = vadd.f32 %v424, %v575
        %v577 = vpop.f32.mrf.mxu0
        %578 = vmatprep.mubr.bf16.mxu0 0
        %579 = vmatmul.mubr.bf16.gmra.mxu0 %v391
        %v580 = vpop.f32.mrf.mxu0
        %v581 = vadd.f32 %v424, %v580
        %v582 = vpop.f32.mrf.mxu0
        %v583 = vpop.f32.mrf.mxu0
        %v584 = vadd.f32 %v424, %v583
        %v585 = vpop.f32.mrf.mxu0
        %586 = vmatprep.mubr.bf16.mxu0 0
        %587 = vmatmul.mubr.bf16.gmra.mxu0 %v392
        %v588 = vpop.f32.mrf.mxu0
        %v589 = vadd.f32 %v424, %v588
        %v590 = vpop.f32.mrf.mxu0
        %v591 = vpop.f32.mrf.mxu0
        %v592 = vadd.f32 %v424, %v591
        %v593 = vpop.f32.mrf.mxu0
        %594 = vmatprep.mubr.bf16.mxu0 0
        %595 = vmatmul.mubr.bf16.gmra.mxu0 %v393
        %v596 = vpop.f32.mrf.mxu0
        %v597 = vadd.f32 %v424, %v596
        %v598 = vpop.f32.mrf.mxu0
        %v599 = vpop.f32.mrf.mxu0
        %v600 = vadd.f32 %v424, %v599
        %v601 = vpop.f32.mrf.mxu0
        %602 = vmatprep.mubr.bf16.mxu0 0
        %603 = vmatmul.mubr.bf16.gmra.mxu0 %v394
        %v604 = vpop.f32.mrf.mxu0
        %v605 = vadd.f32 %v424, %v604
        %v606 = vpop.f32.mrf.mxu0
        %v607 = vpop.f32.mrf.mxu0
        %v608 = vadd.f32 %v424, %v607
        %v609 = vpop.f32.mrf.mxu0
        %610 = vmatprep.mubr.bf16.mxu0 0
        %611 = vmatmul.mubr.bf16.gmra.mxu0 %v395
        %v612 = vpop.f32.mrf.mxu0
        %v613 = vadd.f32 %v424, %v612
        %v614 = vpop.f32.mrf.mxu0
        %v615 = vpop.f32.mrf.mxu0
        %v616 = vadd.f32 %v424, %v615
        %v617 = vpop.f32.mrf.mxu0
        %618 = vmatprep.mubr.bf16.mxu0 0
        %619 = vmatmul.mubr.bf16.gmra.mxu0 %v396
        %v620 = vpop.f32.mrf.mxu0
        %v621 = vadd.f32 %v424, %v620
        %v622 = vpop.f32.mrf.mxu0
        %v623 = vpop.f32.mrf.mxu0
        %v624 = vadd.f32 %v424, %v623
        %v625 = vpop.f32.mrf.mxu0
        %626 = vmatprep.mubr.bf16.mxu0 0
        %627 = vmatmul.mubr.bf16.gmra.mxu0 %v397
        %v628 = vpop.f32.mrf.mxu0
        %v629 = vadd.f32 %v424, %v628
        %v630 = vpop.f32.mrf.mxu0
        %v631 = vpop.f32.mrf.mxu0
        %v632 = vadd.f32 %v424, %v631
        %v633 = vpop.f32.mrf.mxu0
        %634 = vmatprep.mubr.bf16.mxu0 0
        %635 = vmatmul.mubr.bf16.gmra.mxu0 %v398
        %v636 = vpop.f32.mrf.mxu0
        %v637 = vadd.f32 %v424, %v636
        %v638 = vpop.f32.mrf.mxu0
        %v639 = vpop.f32.mrf.mxu0
        %v640 = vadd.f32 %v424, %v639
        %v641 = vpop.f32.mrf.mxu0
        %642 = vmatprep.mubr.bf16.mxu0 0
        %643 = vmatmul.mubr.bf16.gmra.mxu0 %v399
        %v644 = vpop.f32.mrf.mxu0
        %v645 = vadd.f32 %v424, %v644
        %v646 = vpop.f32.mrf.mxu0
        %v647 = vpop.f32.mrf.mxu0
        %v648 = vadd.f32 %v424, %v647
        %v649 = vpop.f32.mrf.mxu0
        %650 = vmatprep.mubr.bf16.mxu0 0
        %651 = vmatmul.mubr.bf16.gmra.mxu0 %v400
        %v652 = vpop.f32.mrf.mxu0
        %v653 = vadd.f32 %v424, %v652
        %v654 = vpop.f32.mrf.mxu0
        %v655 = vpop.f32.mrf.mxu0
        %v656 = vadd.f32 %v424, %v655
        %v657 = vpop.f32.mrf.mxu0
        %658 = vmatprep.mubr.bf16.mxu0 0
        %659 = vmatmul.mubr.bf16.gmra.mxu0 %v401
        %v660 = vpop.f32.mrf.mxu0
        %v661 = vadd.f32 %v424, %v660
        %v662 = vpop.f32.mrf.mxu0
        %v663 = vpop.f32.mrf.mxu0
        %v664 = vadd.f32 %v424, %v663
        %v665 = vpop.f32.mrf.mxu0
        %666 = vmatprep.mubr.bf16.mxu0 0
        %667 = vmatmul.mubr.bf16.gmra.mxu0 %v402
        %v668 = vpop.f32.mrf.mxu0
        %v669 = vadd.f32 %v424, %v668
        %v670 = vpop.f32.mrf.mxu0
        %v671 = vpop.f32.mrf.mxu0
        %v672 = vadd.f32 %v424, %v671
        %v673 = vpop.f32.mrf.mxu0
        %674 = vdwg.mxu0
        %v675 = vmax.f32 %v509, 0.0
        %v676 = vmax.f32 %v512, 0.0
        %v677 = vmax.f32 %v517, 0.0
        %v678 = vmax.f32 %v520, 0.0
        %v679 = vmax.f32 %v525, 0.0
        %v680 = vmax.f32 %v528, 0.0
        %v681 = vmax.f32 %v533, 0.0
        %v682 = vmax.f32 %v536, 0.0
        %v683 = vmax.f32 %v541, 0.0
        %v684 = vmax.f32 %v544, 0.0
        %v685 = vmax.f32 %v549, 0.0
        %v686 = vmax.f32 %v552, 0.0
        %v687 = vmax.f32 %v557, 0.0
        %v688 = vmax.f32 %v560, 0.0
        %v689 = vmax.f32 %v565, 0.0
        %v690 = vmax.f32 %v568, 0.0
        %v691 = vmax.f32 %v573, 0.0
        %v692 = vmax.f32 %v576, 0.0
        %v693 = vmax.f32 %v581, 0.0
        %v694 = vmax.f32 %v584, 0.0
        %v695 = vmax.f32 %v589, 0.0
        %v696 = vmax.f32 %v592, 0.0
        %v697 = vmax.f32 %v597, 0.0
        %v698 = vmax.f32 %v600, 0.0
        %v699 = vmax.f32 %v605, 0.0
        %v700 = vmax.f32 %v608, 0.0
        %v701 = vmax.f32 %v613, 0.0
        %v702 = vmax.f32 %v616, 0.0
        %v703 = vmax.f32 %v621, 0.0
        %v704 = vmax.f32 %v624, 0.0
        %v705 = vmax.f32 %v629, 0.0
        %v706 = vmax.f32 %v632, 0.0
        %v707 = vmax.f32 %v637, 0.0
        %v708 = vmax.f32 %v640, 0.0
        %v709 = vmax.f32 %v645, 0.0
        %v710 = vmax.f32 %v648, 0.0
        %v711 = vmax.f32 %v653, 0.0
        %v712 = vmax.f32 %v656, 0.0
        %v713 = vmax.f32 %v661, 0.0
        %v714 = vmax.f32 %v664, 0.0
        %v715 = vmax.f32 %v669, 0.0
        %v716 = vmax.f32 %v672, 0.0
        %v717 = vld [vmem:[%s1] sm:$0xff]
        %v718 = vld [vmem:[%s1 + $0x8] sm:$0xff]
        %v719 = vld [vmem:[%s1 + $0x10] sm:$0xff]
        %v720 = vld [vmem:[%s1 + $0x18] sm:$0xff]
        %v721 = vld [vmem:[%s1 + $0x20] sm:$0xff]
        %v722 = vld [vmem:[%s1 + $0x28] sm:$0xff]
        %v723 = vld [vmem:[%s1 + $0x30] sm:$0xff]
        %v724 = vld [vmem:[%s1 + $0x38] sm:$0xff]
        %v725 = vld [vmem:[%s1 + $0x40] sm:$0xff]
        %v726 = vld [vmem:[%s1 + $0x48] sm:$0xff]
        %v727 = vld [vmem:[%s1 + $0x50] sm:$0xff]
        %v728 = vld [vmem:[%s1 + $0x58] sm:$0xff]
        %v729 = vld [vmem:[%s1 + $0x60] sm:$0xff]
        %v730 = vld [vmem:[%s1 + $0x68] sm:$0xff]
        %v731 = vld [vmem:[%s1 + $0x70] sm:$0xff]
        %v732 = vld [vmem:[%s1 + $0x78] sm:$0xff]
        %v733 = vld [vmem:[%s1 + $0x80] sm:$0xff]
        %v734 = vld [vmem:[%s1 + $0x88] sm:$0xff]
        %v735 = vld [vmem:[%s1 + $0x90] sm:$0xff]
        %v736 = vld [vmem:[%s1 + $0x98] sm:$0xff]
        %v737 = vld [vmem:[%s1 + $0xa0] sm:$0xff]
        %v738 = vld [vmem:[%s1 + $0xa8] sm:$0xff]
        %v739 = vld [vmem:[%s1 + $0xb0] sm:$0xff]
        %v740 = vld [vmem:[%s1 + $0xb8] sm:$0xff]
        %v741 = vld [vmem:[%s1 + $0xc0] sm:$0xff]
        %v742 = vld [vmem:[%s1 + $0xc8] sm:$0xff]
        %v743 = vld [vmem:[%s1 + $0xd0] sm:$0xff]
        %v744 = vld [vmem:[%s1 + $0xd8] sm:$0xff]
        %v745 = vld [vmem:[%s1 + $0xe0] sm:$0xff]
        %v746 = vld [vmem:[%s1 + $0xe8] sm:$0xff]
        %v747 = vld [vmem:[%s1 + $0xf0] sm:$0xff]
        %v748 = vld [vmem:[%s1 + $0xf8] sm:$0xff]
        %v749 = vld [vmem:[%s1 + $0x100] sm:$0xff]
        %v750 = vld [vmem:[%s1 + $0x108] sm:$0xff]
        %v751 = vld [vmem:[%s1 + $0x110] sm:$0xff]
        %v752 = vld [vmem:[%s1 + $0x118] sm:$0xff]
        %v753 = vld [vmem:[%s1 + $0x120] sm:$0xff]
        %v754 = vld [vmem:[%s1 + $0x128] sm:$0xff]
        %v755 = vld [vmem:[%s1 + $0x130] sm:$0xff]
        %v756 = vld [vmem:[%s1 + $0x138] sm:$0xff]
        %v757 = vld [vmem:[%s1 + $0x140] sm:$0xff]
        %v758 = vld [vmem:[%s1 + $0x148] sm:$0xff]
        %760 = vset.pattern.permute.xlu0 0
        %761 = vperm.xlu0 %760, %v717
        %v762 = vpop.permute.xlu0 %761
        %765 = vset.pattern.permute.xlu0 0
        %766 = vperm.xlu0 %765, %v718
        %v767 = vpop.permute.xlu0 %766
        %770 = vset.pattern.permute.xlu0 0
        %771 = vperm.xlu0 %770, %v719
        %v772 = vpop.permute.xlu0 %771
        %775 = vset.pattern.permute.xlu0 0
        %776 = vperm.xlu0 %775, %v720
        %v777 = vpop.permute.xlu0 %776
        %780 = vset.pattern.permute.xlu0 0
        %781 = vperm.xlu0 %780, %v721
        %v782 = vpop.permute.xlu0 %781
        %785 = vset.pattern.permute.xlu0 0
        %786 = vperm.xlu0 %785, %v722
        %v787 = vpop.permute.xlu0 %786
        %790 = vset.pattern.permute.xlu0 0
        %791 = vperm.xlu0 %790, %v723
        %v792 = vpop.permute.xlu0 %791
        %795 = vset.pattern.permute.xlu0 0
        %796 = vperm.xlu0 %795, %v724
        %v797 = vpop.permute.xlu0 %796
        %800 = vset.pattern.permute.xlu0 0
        %801 = vperm.xlu0 %800, %v725
        %v802 = vpop.permute.xlu0 %801
        %805 = vset.pattern.permute.xlu0 0
        %806 = vperm.xlu0 %805, %v726
        %v807 = vpop.permute.xlu0 %806
        %810 = vset.pattern.permute.xlu0 0
        %811 = vperm.xlu0 %810, %v727
        %v812 = vpop.permute.xlu0 %811
        %815 = vset.pattern.permute.xlu0 0
        %816 = vperm.xlu0 %815, %v728
        %v817 = vpop.permute.xlu0 %816
        %820 = vset.pattern.permute.xlu0 0
        %821 = vperm.xlu0 %820, %v729
        %v822 = vpop.permute.xlu0 %821
        %825 = vset.pattern.permute.xlu0 0
        %826 = vperm.xlu0 %825, %v730
        %v827 = vpop.permute.xlu0 %826
        %830 = vset.pattern.permute.xlu0 0
        %831 = vperm.xlu0 %830, %v731
        %v832 = vpop.permute.xlu0 %831
        %835 = vset.pattern.permute.xlu0 0
        %836 = vperm.xlu0 %835, %v732
        %v837 = vpop.permute.xlu0 %836
        %840 = vset.pattern.permute.xlu0 0
        %841 = vperm.xlu0 %840, %v733
        %v842 = vpop.permute.xlu0 %841
        %845 = vset.pattern.permute.xlu0 0
        %846 = vperm.xlu0 %845, %v734
        %v847 = vpop.permute.xlu0 %846
        %850 = vset.pattern.permute.xlu0 0
        %851 = vperm.xlu0 %850, %v735
        %v852 = vpop.permute.xlu0 %851
        %855 = vset.pattern.permute.xlu0 0
        %856 = vperm.xlu0 %855, %v736
        %v857 = vpop.permute.xlu0 %856
        %860 = vset.pattern.permute.xlu0 0
        %861 = vperm.xlu0 %860, %v737
        %v862 = vpop.permute.xlu0 %861
        %865 = vset.pattern.permute.xlu0 0
        %866 = vperm.xlu0 %865, %v738
        %v867 = vpop.permute.xlu0 %866
        %870 = vset.pattern.permute.xlu0 0
        %871 = vperm.xlu0 %870, %v739
        %v872 = vpop.permute.xlu0 %871
        %875 = vset.pattern.permute.xlu0 0
        %876 = vperm.xlu0 %875, %v740
        %v877 = vpop.permute.xlu0 %876
        %880 = vset.pattern.permute.xlu0 0
        %881 = vperm.xlu0 %880, %v741
        %v882 = vpop.permute.xlu0 %881
        %885 = vset.pattern.permute.xlu0 0
        %886 = vperm.xlu0 %885, %v742
        %v887 = vpop.permute.xlu0 %886
        %890 = vset.pattern.permute.xlu0 0
        %891 = vperm.xlu0 %890, %v743
        %v892 = vpop.permute.xlu0 %891
        %895 = vset.pattern.permute.xlu0 0
        %896 = vperm.xlu0 %895, %v744
        %v897 = vpop.permute.xlu0 %896
        %900 = vset.pattern.permute.xlu0 0
        %901 = vperm.xlu0 %900, %v745
        %v902 = vpop.permute.xlu0 %901
        %905 = vset.pattern.permute.xlu0 0
        %906 = vperm.xlu0 %905, %v746
        %v907 = vpop.permute.xlu0 %906
        %910 = vset.pattern.permute.xlu0 0
        %911 = vperm.xlu0 %910, %v747
        %v912 = vpop.permute.xlu0 %911
        %915 = vset.pattern.permute.xlu0 0
        %916 = vperm.xlu0 %915, %v748
        %v917 = vpop.permute.xlu0 %916
        %920 = vset.pattern.permute.xlu0 0
        %921 = vperm.xlu0 %920, %v749
        %v922 = vpop.permute.xlu0 %921
        %925 = vset.pattern.permute.xlu0 0
        %926 = vperm.xlu0 %925, %v750
        %v927 = vpop.permute.xlu0 %926
        %930 = vset.pattern.permute.xlu0 0
        %931 = vperm.xlu0 %930, %v751
        %v932 = vpop.permute.xlu0 %931
        %935 = vset.pattern.permute.xlu0 0
        %936 = vperm.xlu0 %935, %v752
        %v937 = vpop.permute.xlu0 %936
        %940 = vset.pattern.permute.xlu0 0
        %941 = vperm.xlu0 %940, %v753
        %v942 = vpop.permute.xlu0 %941
        %945 = vset.pattern.permute.xlu0 0
        %946 = vperm.xlu0 %945, %v754
        %v947 = vpop.permute.xlu0 %946
        %950 = vset.pattern.permute.xlu0 0
        %951 = vperm.xlu0 %950, %v755
        %v952 = vpop.permute.xlu0 %951
        %955 = vset.pattern.permute.xlu0 0
        %956 = vperm.xlu0 %955, %v756
        %v957 = vpop.permute.xlu0 %956
        %960 = vset.pattern.permute.xlu0 0
        %961 = vperm.xlu0 %960, %v757
        %v962 = vpop.permute.xlu0 %961
        %965 = vset.pattern.permute.xlu0 0
        %966 = vperm.xlu0 %965, %v758
        %v967 = vpop.permute.xlu0 %966
        %v969 = vmul.f32 %v675, %v762
        %v970 = vmul.f32 %v676, %v767
        %v971 = vmul.f32 %v677, %v772
        %v972 = vmul.f32 %v678, %v777
        %v973 = vmul.f32 %v679, %v782
        %v974 = vmul.f32 %v680, %v787
        %v975 = vmul.f32 %v681, %v792
        %v976 = vmul.f32 %v682, %v797
        %v977 = vmul.f32 %v683, %v802
        %v978 = vmul.f32 %v684, %v807
        %v979 = vmul.f32 %v685, %v812
        %v980 = vmul.f32 %v686, %v817
        %v981 = vmul.f32 %v687, %v822
        %v982 = vmul.f32 %v688, %v827
        %v983 = vmul.f32 %v689, %v832
        %v984 = vmul.f32 %v690, %v837
        %v985 = vmul.f32 %v691, %v842
        %v986 = vmul.f32 %v692, %v847
        %v987 = vmul.f32 %v693, %v852
        %v988 = vmul.f32 %v694, %v857
        %v989 = vmul.f32 %v695, %v862
        %v990 = vmul.f32 %v696, %v867
        %v991 = vmul.f32 %v697, %v872
        %v992 = vmul.f32 %v698, %v877
        %v993 = vmul.f32 %v699, %v882
        %v994 = vmul.f32 %v700, %v887
        %v995 = vmul.f32 %v701, %v892
        %v996 = vmul.f32 %v702, %v897
        %v997 = vmul.f32 %v703, %v902
        %v998 = vmul.f32 %v704, %v907
        %v999 = vmul.f32 %v705, %v912
        %v1000 = vmul.f32 %v706, %v917
        %v1001 = vmul.f32 %v707, %v922
        %v1002 = vmul.f32 %v708, %v927
        %v1003 = vmul.f32 %v709, %v932
        %v1004 = vmul.f32 %v710, %v937
        %v1005 = vmul.f32 %v711, %v942
        %v1006 = vmul.f32 %v712, %v947
        %v1007 = vmul.f32 %v713, %v952
        %v1008 = vmul.f32 %v714, %v957
        %v1009 = vmul.f32 %v715, %v962
        %v1010 = vmul.f32 %v716, %v967
        %v1011 = vpack.c.bf16 %v970, %v969
        %v1012 = vpack.c.bf16 %v972, %v971
        %v1013 = vpack.c.bf16 %v974, %v973
        %v1014 = vpack.c.bf16 %v976, %v975
        %v1015 = vpack.c.bf16 %v978, %v977
        %v1016 = vpack.c.bf16 %v980, %v979
        %v1017 = vpack.c.bf16 %v982, %v981
        %v1018 = vpack.c.bf16 %v984, %v983
        %v1019 = vpack.c.bf16 %v986, %v985
        %v1020 = vpack.c.bf16 %v988, %v987
        %v1021 = vpack.c.bf16 %v990, %v989
        %v1022 = vpack.c.bf16 %v992, %v991
        %v1023 = vpack.c.bf16 %v994, %v993
        %v1024 = vpack.c.bf16 %v996, %v995
        %v1025 = vpack.c.bf16 %v998, %v997
        %v1026 = vpack.c.bf16 %v1000, %v999
        %v1027 = vpack.c.bf16 %v1002, %v1001
        %v1028 = vpack.c.bf16 %v1004, %v1003
        %v1029 = vpack.c.bf16 %v1006, %v1005
        %v1030 = vpack.c.bf16 %v1008, %v1007
        %v1031 = vpack.c.bf16 %v1010, %v1009
        %v1053 = vunpack.c.l.b16 %v1011
        %v1054 = vunpack.c.h.b16 %v1011
        %v1055 = vunpack.c.l.b16 %v1012
        %v1056 = vunpack.c.h.b16 %v1012
        %v1057 = vunpack.c.l.b16 %v1013
        %v1058 = vunpack.c.h.b16 %v1013
        %v1059 = vunpack.c.l.b16 %v1014
        %v1060 = vunpack.c.h.b16 %v1014
        %v1061 = vunpack.c.l.b16 %v1015
        %v1062 = vunpack.c.h.b16 %v1015
        %v1063 = vunpack.c.l.b16 %v1016
        %v1064 = vunpack.c.h.b16 %v1016
        %v1065 = vunpack.c.l.b16 %v1017
        %v1066 = vunpack.c.h.b16 %v1017
        %v1067 = vunpack.c.l.b16 %v1018
        %v1068 = vunpack.c.h.b16 %v1018
        %v1069 = vunpack.c.l.b16 %v1019
        %v1070 = vunpack.c.h.b16 %v1019
        %v1071 = vunpack.c.l.b16 %v1020
        %v1072 = vunpack.c.h.b16 %v1020
        %v1073 = vunpack.c.l.b16 %v1021
        %v1074 = vunpack.c.h.b16 %v1021
        %v1075 = vunpack.c.l.b16 %v1022
        %v1076 = vunpack.c.h.b16 %v1022
        %v1077 = vunpack.c.l.b16 %v1023
        %v1078 = vunpack.c.h.b16 %v1023
        %v1079 = vunpack.c.l.b16 %v1024
        %v1080 = vunpack.c.h.b16 %v1024
        %v1081 = vunpack.c.l.b16 %v1025
        %v1082 = vunpack.c.h.b16 %v1025
        %v1083 = vunpack.c.l.b16 %v1026
        %v1084 = vunpack.c.h.b16 %v1026
        %v1085 = vunpack.c.l.b16 %v1027
        %v1086 = vunpack.c.h.b16 %v1027
        %v1087 = vunpack.c.l.b16 %v1028
        %v1088 = vunpack.c.h.b16 %v1028
        %v1089 = vunpack.c.l.b16 %v1029
        %v1090 = vunpack.c.h.b16 %v1029
        %v1091 = vunpack.c.l.b16 %v1030
        %v1092 = vunpack.c.h.b16 %v1030
        %v1093 = vunpack.c.l.b16 %v1031
        %v1094 = vunpack.c.h.b16 %v1031
        %v1095 = vpack.c.b16 %v1053, %v1053
        %v1096 = vpack.c.b16 %v1054, %v1054
        %v1097 = vpack.c.b16 %v1055, %v1055
        %v1098 = vpack.c.b16 %v1056, %v1056
        %v1099 = vpack.c.b16 %v1057, %v1057
        %v1100 = vpack.c.b16 %v1058, %v1058
        %v1101 = vpack.c.b16 %v1059, %v1059
        %v1102 = vpack.c.b16 %v1060, %v1060
        %v1103 = vpack.c.b16 %v1061, %v1061
        %v1104 = vpack.c.b16 %v1062, %v1062
        %v1105 = vpack.c.b16 %v1063, %v1063
        %v1106 = vpack.c.b16 %v1064, %v1064
        %v1107 = vpack.c.b16 %v1065, %v1065
        %v1108 = vpack.c.b16 %v1066, %v1066
        %v1109 = vpack.c.b16 %v1067, %v1067
        %v1110 = vpack.c.b16 %v1068, %v1068
        %v1111 = vpack.c.b16 %v1069, %v1069
        %v1112 = vpack.c.b16 %v1070, %v1070
        %v1113 = vpack.c.b16 %v1071, %v1071
        %v1114 = vpack.c.b16 %v1072, %v1072
        %v1115 = vpack.c.b16 %v1073, %v1073
        %v1116 = vpack.c.b16 %v1074, %v1074
        %v1117 = vpack.c.b16 %v1075, %v1075
        %v1118 = vpack.c.b16 %v1076, %v1076
        %v1119 = vpack.c.b16 %v1077, %v1077
        %v1120 = vpack.c.b16 %v1078, %v1078
        %v1121 = vpack.c.b16 %v1079, %v1079
        %v1122 = vpack.c.b16 %v1080, %v1080
        %v1123 = vpack.c.b16 %v1081, %v1081
        %v1124 = vpack.c.b16 %v1082, %v1082
        %v1125 = vpack.c.b16 %v1083, %v1083
        %v1126 = vpack.c.b16 %v1084, %v1084
        %v1127 = vpack.c.b16 %v1085, %v1085
        %v1128 = vpack.c.b16 %v1086, %v1086
        %v1129 = vpack.c.b16 %v1087, %v1087
        %v1130 = vpack.c.b16 %v1088, %v1088
        %v1131 = vpack.c.b16 %v1089, %v1089
        %v1132 = vpack.c.b16 %v1090, %v1090
        %v1133 = vpack.c.b16 %v1091, %v1091
        %v1134 = vpack.c.b16 %v1092, %v1092
        %v1135 = vpack.c.b16 %v1093, %v1093
        %v1136 = vpack.c.b16 %v1094, %v1094
        %1179 = vst [vmem:[#allocation2] sm:$0xf] %v1095
        %1180 = vst [vmem:[#allocation2 + $0x4] sm:$0xf] %v1096
        %1181 = vst [vmem:[#allocation2 + $0x8] sm:$0xf] %v1097
        %1182 = vst [vmem:[#allocation2 + $0xc] sm:$0xf] %v1098
        %1183 = vst [vmem:[#allocation2 + $0x10] sm:$0xf] %v1099
        %1184 = vst [vmem:[#allocation2 + $0x14] sm:$0xf] %v1100
        %1185 = vst [vmem:[#allocation2 + $0x18] sm:$0xf] %v1101
        %1186 = vst [vmem:[#allocation2 + $0x1c] sm:$0xf] %v1102
        %1187 = vst [vmem:[#allocation2 + $0x20] sm:$0xf] %v1103
        %1188 = vst [vmem:[#allocation2 + $0x24] sm:$0xf] %v1104
        %1189 = vst [vmem:[#allocation2 + $0x28] sm:$0xf] %v1105
        %1190 = vst [vmem:[#allocation2 + $0x2c] sm:$0xf] %v1106
        %1191 = vst [vmem:[#allocation2 + $0x30] sm:$0xf] %v1107
        %1192 = vst [vmem:[#allocation2 + $0x34] sm:$0xf] %v1108
        %1193 = vst [vmem:[#allocation2 + $0x38] sm:$0xf] %v1109
        %1194 = vst [vmem:[#allocation2 + $0x3c] sm:$0xf] %v1110
        %1195 = vst [vmem:[#allocation2 + $0x40] sm:$0xf] %v1111
        %1196 = vst [vmem:[#allocation2 + $0x44] sm:$0xf] %v1112
        %1197 = vst [vmem:[#allocation2 + $0x48] sm:$0xf] %v1113
        %1198 = vst [vmem:[#allocation2 + $0x4c] sm:$0xf] %v1114
        %1199 = vst [vmem:[#allocation2 + $0x50] sm:$0xf] %v1115
        %1200 = vst [vmem:[#allocation2 + $0x54] sm:$0xf] %v1116
        %1201 = vst [vmem:[#allocation2 + $0x58] sm:$0xf] %v1117
        %1202 = vst [vmem:[#allocation2 + $0x5c] sm:$0xf] %v1118
        %1203 = vst [vmem:[#allocation2 + $0x60] sm:$0xf] %v1119
        %1204 = vst [vmem:[#allocation2 + $0x64] sm:$0xf] %v1120
        %1205 = vst [vmem:[#allocation2 + $0x68] sm:$0xf] %v1121
        %1206 = vst [vmem:[#allocation2 + $0x6c] sm:$0xf] %v1122
        %1207 = vst [vmem:[#allocation2 + $0x70] sm:$0xf] %v1123
        %1208 = vst [vmem:[#allocation2 + $0x74] sm:$0xf] %v1124
        %1209 = vst [vmem:[#allocation2 + $0x78] sm:$0xf] %v1125
        %1210 = vst [vmem:[#allocation2 + $0x7c] sm:$0xf] %v1126
        %1211 = vst [vmem:[#allocation2 + $0x80] sm:$0xf] %v1127
        %1212 = vst [vmem:[#allocation2 + $0x84] sm:$0xf] %v1128
        %1213 = vst [vmem:[#allocation2 + $0x88] sm:$0xf] %v1129
        %1214 = vst [vmem:[#allocation2 + $0x8c] sm:$0xf] %v1130
        %1215 = vst [vmem:[#allocation2 + $0x90] sm:$0xf] %v1131
        %1216 = vst [vmem:[#allocation2 + $0x94] sm:$0xf] %v1132
        %1217 = vst [vmem:[#allocation2 + $0x98] sm:$0xf] %v1133
        %1218 = vst [vmem:[#allocation2 + $0x9c] sm:$0xf] %v1134
        %1219 = vst [vmem:[#allocation2 + $0xa0] sm:$0xf] %v1135
        %1220 = vst [vmem:[#allocation2 + $0xa4] sm:$0xf] %v1136
        %v1221 = vld [vmem:[#allocation2] sm:$0xf]
        %v1222 = vld [vmem:[#allocation2 + $0x4] sm:$0xf]
        %v1223 = vld [vmem:[#allocation2 + $0x8] sm:$0xf]
        %v1224 = vld [vmem:[#allocation2 + $0xc] sm:$0xf]
        %v1225 = vld [vmem:[#allocation2 + $0x10] sm:$0xf]
        %v1226 = vld [vmem:[#allocation2 + $0x14] sm:$0xf]
        %v1227 = vld [vmem:[#allocation2 + $0x18] sm:$0xf]
        %v1228 = vld [vmem:[#allocation2 + $0x1c] sm:$0xf]
        %v1229 = vld [vmem:[#allocation2 + $0x20] sm:$0xf]
        %v1230 = vld [vmem:[#allocation2 + $0x24] sm:$0xf]
        %v1231 = vld [vmem:[#allocation2 + $0x28] sm:$0xf]
        %v1232 = vld [vmem:[#allocation2 + $0x2c] sm:$0xf]
        %v1233 = vld [vmem:[#allocation2 + $0x30] sm:$0xf]
        %v1234 = vld [vmem:[#allocation2 + $0x34] sm:$0xf]
        %v1235 = vld [vmem:[#allocation2 + $0x38] sm:$0xf]
        %v1236 = vld [vmem:[#allocation2 + $0x3c] sm:$0xf]
        %v1237 = vld [vmem:[#allocation2 + $0x40] sm:$0xf]
        %v1238 = vld [vmem:[#allocation2 + $0x44] sm:$0xf]
        %v1239 = vld [vmem:[#allocation2 + $0x48] sm:$0xf]
        %v1240 = vld [vmem:[#allocation2 + $0x4c] sm:$0xf]
        %v1241 = vld [vmem:[#allocation2 + $0x50] sm:$0xf]
        %v1242 = vld [vmem:[#allocation2 + $0x54] sm:$0xf]
        %v1243 = vld [vmem:[#allocation2 + $0x58] sm:$0xf]
        %v1244 = vld [vmem:[#allocation2 + $0x5c] sm:$0xf]
        %v1245 = vld [vmem:[#allocation2 + $0x60] sm:$0xf]
        %v1246 = vld [vmem:[#allocation2 + $0x64] sm:$0xf]
        %v1247 = vld [vmem:[#allocation2 + $0x68] sm:$0xf]
        %v1248 = vld [vmem:[#allocation2 + $0x6c] sm:$0xf]
        %v1249 = vld [vmem:[#allocation2 + $0x70] sm:$0xf]
        %v1250 = vld [vmem:[#allocation2 + $0x74] sm:$0xf]
        %v1251 = vld [vmem:[#allocation2 + $0x78] sm:$0xf]
        %v1252 = vld [vmem:[#allocation2 + $0x7c] sm:$0xf]
        %v1253 = vld [vmem:[#allocation2 + $0x80] sm:$0xf]
        %v1254 = vld [vmem:[#allocation2 + $0x84] sm:$0xf]
        %v1255 = vld [vmem:[#allocation2 + $0x88] sm:$0xf]
        %v1256 = vld [vmem:[#allocation2 + $0x8c] sm:$0xf]
        %1257 = vst [vmem:[#allocation3] sm:$0xf] %v1221
        %1258 = vst [vmem:[#allocation3 + $0x24] sm:$0xf] %v1222
        %1259 = vst [vmem:[#allocation3 + $0x48] sm:$0xf] %v1223
        %1260 = vst [vmem:[#allocation3 + $0x6c] sm:$0xf] %v1224
        %1261 = vst [vmem:[#allocation3 + $0x90] sm:$0xf] %v1225
        %1262 = vst [vmem:[#allocation3 + $0xb4] sm:$0xf] %v1226
        %1263 = vst [vmem:[#allocation3 + $0xd8] sm:$0xf] %v1227
        %1264 = vst [vmem:[#allocation3 + $0xfc] sm:$0xf] %v1228
        %1265 = vst [vmem:[#allocation3 + $0x120] sm:$0xf] %v1229
        %1266 = vst [vmem:[#allocation3 + $0x144] sm:$0xf] %v1230
        %1267 = vst [vmem:[#allocation3 + $0x168] sm:$0xf] %v1231
        %1268 = vst [vmem:[#allocation3 + $0x18c] sm:$0xf] %v1232
        %1269 = vst [vmem:[#allocation3 + $0x1b0] sm:$0xf] %v1233
        %1270 = vst [vmem:[#allocation3 + $0x1d4] sm:$0xf] %v1234
        %1271 = vst [vmem:[#allocation3 + $0x1f8] sm:$0xf] %v1235
        %1272 = vst [vmem:[#allocation3 + $0x21c] sm:$0xf] %v1236
        %1273 = vst [vmem:[#allocation3 + $0x240] sm:$0xf] %v1237
        %1274 = vst [vmem:[#allocation3 + $0x264] sm:$0xf] %v1238
        %1275 = vst [vmem:[#allocation3 + $0x288] sm:$0xf] %v1239
        %1276 = vst [vmem:[#allocation3 + $0x2ac] sm:$0xf] %v1240
        %1277 = vst [vmem:[#allocation3 + $0x2d0] sm:$0xf] %v1241
        %1278 = vst [vmem:[#allocation3 + $0x2f4] sm:$0xf] %v1242
        %1279 = vst [vmem:[#allocation3 + $0x318] sm:$0xf] %v1243
        %1280 = vst [vmem:[#allocation3 + $0x33c] sm:$0xf] %v1244
        %1281 = vst [vmem:[#allocation3 + $0x360] sm:$0xf] %v1245
        %1282 = vst [vmem:[#allocation3 + $0x384] sm:$0xf] %v1246
        %1283 = vst [vmem:[#allocation3 + $0x3a8] sm:$0xf] %v1247
        %1284 = vst [vmem:[#allocation3 + $0x3cc] sm:$0xf] %v1248
        %1285 = vst [vmem:[#allocation3 + $0x3f0] sm:$0xf] %v1249
        %1286 = vst [vmem:[#allocation3 + $0x414] sm:$0xf] %v1250
        %1287 = vst [vmem:[#allocation3 + $0x438] sm:$0xf] %v1251
        %1288 = vst [vmem:[#allocation3 + $0x45c] sm:$0xf] %v1252
        %1289 = vst [vmem:[#allocation3 + $0x480] sm:$0xf] %v1253
        %1290 = vst [vmem:[#allocation3 + $0x4a4] sm:$0xf] %v1254
        %1291 = vst [vmem:[#allocation3 + $0x4c8] sm:$0xf] %v1255
        %1292 = vst [vmem:[#allocation3 + $0x4ec] sm:$0xf] %v1256
        %v1293 = vld [vmem:[#allocation2] sm:$0xf]
        %v1294 = vld [vmem:[#allocation2 + $0x4] sm:$0xf]
        %v1295 = vld [vmem:[#allocation2 + $0x8] sm:$0xf]
        %v1296 = vld [vmem:[#allocation2 + $0xc] sm:$0xf]
        %v1297 = vld [vmem:[#allocation2 + $0x10] sm:$0xf]
        %v1298 = vld [vmem:[#allocation2 + $0x14] sm:$0xf]
        %v1299 = vld [vmem:[#allocation2 + $0x18] sm:$0xf]
        %v1300 = vld [vmem:[#allocation2 + $0x1c] sm:$0xf]
        %v1301 = vld [vmem:[#allocation2 + $0x20] sm:$0xf]
        %v1302 = vld [vmem:[#allocation2 + $0x24] sm:$0xf]
        %v1303 = vld [vmem:[#allocation2 + $0x28] sm:$0xf]
        %v1304 = vld [vmem:[#allocation2 + $0x2c] sm:$0xf]
        %v1305 = vld [vmem:[#allocation2 + $0x30] sm:$0xf]
        %v1306 = vld [vmem:[#allocation2 + $0x34] sm:$0xf]
        %v1307 = vld [vmem:[#allocation2 + $0x38] sm:$0xf]
        %v1308 = vld [vmem:[#allocation2 + $0x3c] sm:$0xf]
        %v1309 = vld [vmem:[#allocation2 + $0x40] sm:$0xf]
        %v1310 = vld [vmem:[#allocation2 + $0x44] sm:$0xf]
        %v1311 = vld [vmem:[#allocation2 + $0x48] sm:$0xf]
        %v1312 = vld [vmem:[#allocation2 + $0x4c] sm:$0xf]
        %v1313 = vld [vmem:[#allocation2 + $0x50] sm:$0xf]
        %v1314 = vld [vmem:[#allocation2 + $0x54] sm:$0xf]
        %v1315 = vld [vmem:[#allocation2 + $0x58] sm:$0xf]
        %v1316 = vld [vmem:[#allocation2 + $0x5c] sm:$0xf]
        %v1317 = vld [vmem:[#allocation2 + $0x60] sm:$0xf]
        %v1318 = vld [vmem:[#allocation2 + $0x64] sm:$0xf]
        %v1319 = vld [vmem:[#allocation2 + $0x68] sm:$0xf]
        %v1320 = vld [vmem:[#allocation2 + $0x6c] sm:$0xf]
        %v1321 = vld [vmem:[#allocation2 + $0x70] sm:$0xf]
        %v1322 = vld [vmem:[#allocation2 + $0x74] sm:$0xf]
        %v1323 = vld [vmem:[#allocation2 + $0x78] sm:$0xf]
        %v1324 = vld [vmem:[#allocation2 + $0x7c] sm:$0xf]
        %v1325 = vld [vmem:[#allocation2 + $0x80] sm:$0xf]
        %v1326 = vld [vmem:[#allocation2 + $0x84] sm:$0xf]
        %v1327 = vld [vmem:[#allocation2 + $0x88] sm:$0xf]
        %v1328 = vld [vmem:[#allocation2 + $0x8c] sm:$0xf]
        %v1329 = vld [vmem:[#allocation2 + $0x90] sm:$0x1]
        %vm1330 = vsmask.f32 3328
        %vm1331 = vsmask.f32 7440
        %vm1332 = vmor %vm1330, %vm1331
        %v1334 = vshrl.u32 %v1293, 16
        %v1336 = vrot.slane %v1334, 4
        %v1337 = vshll.u32 %v1293, 16
        %v1339 = vrot.slane %v1337, 5
        %v1340 = vor.u32 %v1336, %v1339
        %v1341 = vrot.slane %v1340, 4
        %v1343 = vshll.u32 %v1294, 16
        %v1345 = vrot.slane %v1343, 5
        %v1346 = vsel %vm1332, %v1341, %v1345
        %v1347 = vshrl.u32 %v1294, 16
        %v1349 = vrot.slane %v1347, 4
        %v1350 = vor.u32 %v1349, %v1345
        %v1351 = vrot.slane %v1350, 4
        %v1353 = vshll.u32 %v1295, 16
        %v1355 = vrot.slane %v1353, 5
        %v1356 = vsel %vm1332, %v1351, %v1355
        %v1357 = vshrl.u32 %v1295, 16
        %v1359 = vrot.slane %v1357, 4
        %v1360 = vor.u32 %v1359, %v1355
        %v1361 = vrot.slane %v1360, 4
        %v1363 = vshll.u32 %v1296, 16
        %v1365 = vrot.slane %v1363, 5
        %v1366 = vsel %vm1332, %v1361, %v1365
        %v1367 = vshrl.u32 %v1296, 16
        %v1369 = vrot.slane %v1367, 4
        %v1370 = vor.u32 %v1369, %v1365
        %v1371 = vrot.slane %v1370, 4
        %v1373 = vshll.u32 %v1297, 16
        %v1375 = vrot.slane %v1373, 5
        %v1376 = vsel %vm1332, %v1371, %v1375
        %v1377 = vshrl.u32 %v1297, 16
        %v1379 = vrot.slane %v1377, 4
        %v1380 = vor.u32 %v1379, %v1375
        %v1381 = vrot.slane %v1380, 4
        %v1383 = vshll.u32 %v1298, 16
        %v1385 = vrot.slane %v1383, 5
        %v1386 = vsel %vm1332, %v1381, %v1385
        %v1387 = vshrl.u32 %v1298, 16
        %v1389 = vrot.slane %v1387, 4
        %v1390 = vor.u32 %v1389, %v1385
        %v1391 = vrot.slane %v1390, 4
        %v1393 = vshll.u32 %v1299, 16
        %v1395 = vrot.slane %v1393, 5
        %v1396 = vsel %vm1332, %v1391, %v1395
        %v1397 = vshrl.u32 %v1299, 16
        %v1399 = vrot.slane %v1397, 4
        %v1400 = vor.u32 %v1399, %v1395
        %v1401 = vrot.slane %v1400, 4
        %v1403 = vshll.u32 %v1300, 16
        %v1405 = vrot.slane %v1403, 5
        %v1406 = vsel %vm1332, %v1401, %v1405
        %v1407 = vshrl.u32 %v1300, 16
        %v1409 = vrot.slane %v1407, 4
        %v1410 = vor.u32 %v1409, %v1405
        %v1411 = vrot.slane %v1410, 4
        %v1413 = vshll.u32 %v1301, 16
        %v1415 = vrot.slane %v1413, 5
        %v1416 = vsel %vm1332, %v1411, %v1415
        %v1417 = vshrl.u32 %v1301, 16
        %v1419 = vrot.slane %v1417, 4
        %v1420 = vor.u32 %v1419, %v1415
        %v1421 = vrot.slane %v1420, 4
        %v1423 = vshll.u32 %v1302, 16
        %v1425 = vrot.slane %v1423, 5
        %v1426 = vsel %vm1332, %v1421, %v1425
        %v1427 = vshrl.u32 %v1302, 16
        %v1429 = vrot.slane %v1427, 4
        %v1430 = vor.u32 %v1429, %v1425
        %v1431 = vrot.slane %v1430, 4
        %v1433 = vshll.u32 %v1303, 16
        %v1435 = vrot.slane %v1433, 5
        %v1436 = vsel %vm1332, %v1431, %v1435
        %v1437 = vshrl.u32 %v1303, 16
        %v1439 = vrot.slane %v1437, 4
        %v1440 = vor.u32 %v1439, %v1435
        %v1441 = vrot.slane %v1440, 4
        %v1443 = vshll.u32 %v1304, 16
        %v1445 = vrot.slane %v1443, 5
        %v1446 = vsel %vm1332, %v1441, %v1445
        %v1447 = vshrl.u32 %v1304, 16
        %v1449 = vrot.slane %v1447, 4
        %v1450 = vor.u32 %v1449, %v1445
        %v1451 = vrot.slane %v1450, 4
        %v1453 = vshll.u32 %v1305, 16
        %v1455 = vrot.slane %v1453, 5
        %v1456 = vsel %vm1332, %v1451, %v1455
        %v1457 = vshrl.u32 %v1305, 16
        %v1459 = vrot.slane %v1457, 4
        %v1460 = vor.u32 %v1459, %v1455
        %v1461 = vrot.slane %v1460, 4
        %v1463 = vshll.u32 %v1306, 16
        %v1465 = vrot.slane %v1463, 5
        %v1466 = vsel %vm1332, %v1461, %v1465
        %v1467 = vshrl.u32 %v1306, 16
        %v1469 = vrot.slane %v1467, 4
        %v1470 = vor.u32 %v1469, %v1465
        %v1471 = vrot.slane %v1470, 4
        %v1473 = vshll.u32 %v1307, 16
        %v1475 = vrot.slane %v1473, 5
        %v1476 = vsel %vm1332, %v1471, %v1475
        %v1477 = vshrl.u32 %v1307, 16
        %v1479 = vrot.slane %v1477, 4
        %v1480 = vor.u32 %v1479, %v1475
        %v1481 = vrot.slane %v1480, 4
        %v1483 = vshll.u32 %v1308, 16
        %v1485 = vrot.slane %v1483, 5
        %v1486 = vsel %vm1332, %v1481, %v1485
        %v1487 = vshrl.u32 %v1308, 16
        %v1489 = vrot.slane %v1487, 4
        %v1490 = vor.u32 %v1489, %v1485
        %v1491 = vrot.slane %v1490, 4
        %v1493 = vshll.u32 %v1309, 16
        %v1495 = vrot.slane %v1493, 5
        %v1496 = vsel %vm1332, %v1491, %v1495
        %v1497 = vshrl.u32 %v1309, 16
        %v1499 = vrot.slane %v1497, 4
        %v1500 = vor.u32 %v1499, %v1495
        %v1501 = vrot.slane %v1500, 4
        %v1503 = vshll.u32 %v1310, 16
        %v1505 = vrot.slane %v1503, 5
        %v1506 = vsel %vm1332, %v1501, %v1505
        %v1507 = vshrl.u32 %v1310, 16
        %v1509 = vrot.slane %v1507, 4
        %v1510 = vor.u32 %v1509, %v1505
        %v1511 = vrot.slane %v1510, 4
        %v1513 = vshll.u32 %v1311, 16
        %v1515 = vrot.slane %v1513, 5
        %v1516 = vsel %vm1332, %v1511, %v1515
        %v1517 = vshrl.u32 %v1311, 16
        %v1519 = vrot.slane %v1517, 4
        %v1520 = vor.u32 %v1519, %v1515
        %v1521 = vrot.slane %v1520, 4
        %v1523 = vshll.u32 %v1312, 16
        %v1525 = vrot.slane %v1523, 5
        %v1526 = vsel %vm1332, %v1521, %v1525
        %v1527 = vshrl.u32 %v1312, 16
        %v1529 = vrot.slane %v1527, 4
        %v1530 = vor.u32 %v1529, %v1525
        %v1531 = vrot.slane %v1530, 4
        %v1533 = vshll.u32 %v1313, 16
        %v1535 = vrot.slane %v1533, 5
        %v1536 = vsel %vm1332, %v1531, %v1535
        %v1537 = vshrl.u32 %v1313, 16
        %v1539 = vrot.slane %v1537, 4
        %v1540 = vor.u32 %v1539, %v1535
        %v1541 = vrot.slane %v1540, 4
        %v1543 = vshll.u32 %v1314, 16
        %v1545 = vrot.slane %v1543, 5
        %v1546 = vsel %vm1332, %v1541, %v1545
        %v1547 = vshrl.u32 %v1314, 16
        %v1549 = vrot.slane %v1547, 4
        %v1550 = vor.u32 %v1549, %v1545
        %v1551 = vrot.slane %v1550, 4
        %v1553 = vshll.u32 %v1315, 16
        %v1555 = vrot.slane %v1553, 5
        %v1556 = vsel %vm1332, %v1551, %v1555
        %v1557 = vshrl.u32 %v1315, 16
        %v1559 = vrot.slane %v1557, 4
        %v1560 = vor.u32 %v1559, %v1555
        %v1561 = vrot.slane %v1560, 4
        %v1563 = vshll.u32 %v1316, 16
        %v1565 = vrot.slane %v1563, 5
        %v1566 = vsel %vm1332, %v1561, %v1565
        %v1567 = vshrl.u32 %v1316, 16
        %v1569 = vrot.slane %v1567, 4
        %v1570 = vor.u32 %v1569, %v1565
        %v1571 = vrot.slane %v1570, 4
        %v1573 = vshll.u32 %v1317, 16
        %v1575 = vrot.slane %v1573, 5
        %v1576 = vsel %vm1332, %v1571, %v1575
        %v1577 = vshrl.u32 %v1317, 16
        %v1579 = vrot.slane %v1577, 4
        %v1580 = vor.u32 %v1579, %v1575
        %v1581 = vrot.slane %v1580, 4
        %v1583 = vshll.u32 %v1318, 16
        %v1585 = vrot.slane %v1583, 5
        %v1586 = vsel %vm1332, %v1581, %v1585
        %v1587 = vshrl.u32 %v1318, 16
        %v1589 = vrot.slane %v1587, 4
        %v1590 = vor.u32 %v1589, %v1585
        %v1591 = vrot.slane %v1590, 4
        %v1593 = vshll.u32 %v1319, 16
        %v1595 = vrot.slane %v1593, 5
        %v1596 = vsel %vm1332, %v1591, %v1595
        %v1597 = vshrl.u32 %v1319, 16
        %v1599 = vrot.slane %v1597, 4
        %v1600 = vor.u32 %v1599, %v1595
        %v1601 = vrot.slane %v1600, 4
        %v1603 = vshll.u32 %v1320, 16
        %v1605 = vrot.slane %v1603, 5
        %v1606 = vsel %vm1332, %v1601, %v1605
        %v1607 = vshrl.u32 %v1320, 16
        %v1609 = vrot.slane %v1607, 4
        %v1610 = vor.u32 %v1609, %v1605
        %v1611 = vrot.slane %v1610, 4
        %v1613 = vshll.u32 %v1321, 16
        %v1615 = vrot.slane %v1613, 5
        %v1616 = vsel %vm1332, %v1611, %v1615
        %v1617 = vshrl.u32 %v1321, 16
        %v1619 = vrot.slane %v1617, 4
        %v1620 = vor.u32 %v1619, %v1615
        %v1621 = vrot.slane %v1620, 4
        %v1623 = vshll.u32 %v1322, 16
        %v1625 = vrot.slane %v1623, 5
        %v1626 = vsel %vm1332, %v1621, %v1625
        %v1627 = vshrl.u32 %v1322, 16
        %v1629 = vrot.slane %v1627, 4
        %v1630 = vor.u32 %v1629, %v1625
        %v1631 = vrot.slane %v1630, 4
        %v1633 = vshll.u32 %v1323, 16
        %v1635 = vrot.slane %v1633, 5
        %v1636 = vsel %vm1332, %v1631, %v1635
        %v1637 = vshrl.u32 %v1323, 16
        %v1639 = vrot.slane %v1637, 4
        %v1640 = vor.u32 %v1639, %v1635
        %v1641 = vrot.slane %v1640, 4
        %v1643 = vshll.u32 %v1324, 16
        %v1645 = vrot.slane %v1643, 5
        %v1646 = vsel %vm1332, %v1641, %v1645
        %v1647 = vshrl.u32 %v1324, 16
        %v1649 = vrot.slane %v1647, 4
        %v1650 = vor.u32 %v1649, %v1645
        %v1651 = vrot.slane %v1650, 4
        %v1653 = vshll.u32 %v1325, 16
        %v1655 = vrot.slane %v1653, 5
        %v1656 = vsel %vm1332, %v1651, %v1655
        %v1657 = vshrl.u32 %v1325, 16
        %v1659 = vrot.slane %v1657, 4
        %v1660 = vor.u32 %v1659, %v1655
        %v1661 = vrot.slane %v1660, 4
        %v1663 = vshll.u32 %v1326, 16
        %v1665 = vrot.slane %v1663, 5
        %v1666 = vsel %vm1332, %v1661, %v1665
        %v1667 = vshrl.u32 %v1326, 16
        %v1669 = vrot.slane %v1667, 4
        %v1670 = vor.u32 %v1669, %v1665
        %v1671 = vrot.slane %v1670, 4
        %v1673 = vshll.u32 %v1327, 16
        %v1675 = vrot.slane %v1673, 5
        %v1676 = vsel %vm1332, %v1671, %v1675
        %v1677 = vshrl.u32 %v1327, 16
        %v1679 = vrot.slane %v1677, 4
        %v1680 = vor.u32 %v1679, %v1675
        %v1681 = vrot.slane %v1680, 4
        %v1683 = vshll.u32 %v1328, 16
        %v1685 = vrot.slane %v1683, 5
        %v1686 = vsel %vm1332, %v1681, %v1685
        %v1687 = vshrl.u32 %v1328, 16
        %v1689 = vrot.slane %v1687, 4
        %v1690 = vor.u32 %v1689, %v1685
        %v1691 = vrot.slane %v1690, 4
        %v1693 = vshll.u32 %v1329, 16
        %v1695 = vrot.slane %v1693, 5
        %v1696 = vsel %vm1332, %v1691, %v1695
        %1733 = vst [vmem:[#allocation3 + $0x4] sm:$0xf] %v1346
        %1734 = vst [vmem:[#allocation3 + $0x28] sm:$0xf] %v1356
        %1735 = vst [vmem:[#allocation3 + $0x4c] sm:$0xf] %v1366
        %1736 = vst [vmem:[#allocation3 + $0x70] sm:$0xf] %v1376
        %1737 = vst [vmem:[#allocation3 + $0x94] sm:$0xf] %v1386
        %1738 = vst [vmem:[#allocation3 + $0xb8] sm:$0xf] %v1396
        %1739 = vst [vmem:[#allocation3 + $0xdc] sm:$0xf] %v1406
        %1740 = vst [vmem:[#allocation3 + $0x100] sm:$0xf] %v1416
        %1741 = vst [vmem:[#allocation3 + $0x124] sm:$0xf] %v1426
        %1742 = vst [vmem:[#allocation3 + $0x148] sm:$0xf] %v1436
        %1743 = vst [vmem:[#allocation3 + $0x16c] sm:$0xf] %v1446
        %1744 = vst [vmem:[#allocation3 + $0x190] sm:$0xf] %v1456
        %1745 = vst [vmem:[#allocation3 + $0x1b4] sm:$0xf] %v1466
        %1746 = vst [vmem:[#allocation3 + $0x1d8] sm:$0xf] %v1476
        %1747 = vst [vmem:[#allocation3 + $0x1fc] sm:$0xf] %v1486
        %1748 = vst [vmem:[#allocation3 + $0x220] sm:$0xf] %v1496
        %1749 = vst [vmem:[#allocation3 + $0x244] sm:$0xf] %v1506
        %1750 = vst [vmem:[#allocation3 + $0x268] sm:$0xf] %v1516
        %1751 = vst [vmem:[#allocation3 + $0x28c] sm:$0xf] %v1526
        %1752 = vst [vmem:[#allocation3 + $0x2b0] sm:$0xf] %v1536
        %1753 = vst [vmem:[#allocation3 + $0x2d4] sm:$0xf] %v1546
        %1754 = vst [vmem:[#allocation3 + $0x2f8] sm:$0xf] %v1556
        %1755 = vst [vmem:[#allocation3 + $0x31c] sm:$0xf] %v1566
        %1756 = vst [vmem:[#allocation3 + $0x340] sm:$0xf] %v1576
        %1757 = vst [vmem:[#allocation3 + $0x364] sm:$0xf] %v1586
        %1758 = vst [vmem:[#allocation3 + $0x388] sm:$0xf] %v1596
        %1759 = vst [vmem:[#allocation3 + $0x3ac] sm:$0xf] %v1606
        %1760 = vst [vmem:[#allocation3 + $0x3d0] sm:$0xf] %v1616
        %1761 = vst [vmem:[#allocation3 + $0x3f4] sm:$0xf] %v1626
        %1762 = vst [vmem:[#allocation3 + $0x418] sm:$0xf] %v1636
        %1763 = vst [vmem:[#allocation3 + $0x43c] sm:$0xf] %v1646
        %1764 = vst [vmem:[#allocation3 + $0x460] sm:$0xf] %v1656
        %1765 = vst [vmem:[#allocation3 + $0x484] sm:$0xf] %v1666
        %1766 = vst [vmem:[#allocation3 + $0x4a8] sm:$0xf] %v1676
        %1767 = vst [vmem:[#allocation3 + $0x4cc] sm:$0xf] %v1686
        %1768 = vst [vmem:[#allocation3 + $0x4f0] sm:$0xf] %v1696
        %v1769 = vld [vmem:[#allocation2] sm:$0xe]
        %v1770 = vld [vmem:[#allocation2 + $0x4] sm:$0xf]
        %v1771 = vld [vmem:[#allocation2 + $0x8] sm:$0xf]
        %v1772 = vld [vmem:[#allocation2 + $0xc] sm:$0xf]
        %v1773 = vld [vmem:[#allocation2 + $0x10] sm:$0xf]
        %v1774 = vld [vmem:[#allocation2 + $0x14] sm:$0xf]
        %v1775 = vld [vmem:[#allocation2 + $0x18] sm:$0xf]
        %v1776 = vld [vmem:[#allocation2 + $0x1c] sm:$0xf]
        %v1777 = vld [vmem:[#allocation2 + $0x20] sm:$0xf]
        %v1778 = vld [vmem:[#allocation2 + $0x24] sm:$0xf]
        %v1779 = vld [vmem:[#allocation2 + $0x28] sm:$0xf]
        %v1780 = vld [vmem:[#allocation2 + $0x2c] sm:$0xf]
        %v1781 = vld [vmem:[#allocation2 + $0x30] sm:$0xf]
        %v1782 = vld [vmem:[#allocation2 + $0x34] sm:$0xf]
        %v1783 = vld [vmem:[#allocation2 + $0x38] sm:$0xf]
        %v1784 = vld [vmem:[#allocation2 + $0x3c] sm:$0xf]
        %v1785 = vld [vmem:[#allocation2 + $0x40] sm:$0xf]
        %v1786 = vld [vmem:[#allocation2 + $0x44] sm:$0xf]
        %v1787 = vld [vmem:[#allocation2 + $0x48] sm:$0xf]
        %v1788 = vld [vmem:[#allocation2 + $0x4c] sm:$0xf]
        %v1789 = vld [vmem:[#allocation2 + $0x50] sm:$0xf]
        %v1790 = vld [vmem:[#allocation2 + $0x54] sm:$0xf]
        %v1791 = vld [vmem:[#allocation2 + $0x58] sm:$0xf]
        %v1792 = vld [vmem:[#allocation2 + $0x5c] sm:$0xf]
        %v1793 = vld [vmem:[#allocation2 + $0x60] sm:$0xf]
        %v1794 = vld [vmem:[#allocation2 + $0x64] sm:$0xf]
        %v1795 = vld [vmem:[#allocation2 + $0x68] sm:$0xf]
        %v1796 = vld [vmem:[#allocation2 + $0x6c] sm:$0xf]
        %v1797 = vld [vmem:[#allocation2 + $0x70] sm:$0xf]
        %v1798 = vld [vmem:[#allocation2 + $0x74] sm:$0xf]
        %v1799 = vld [vmem:[#allocation2 + $0x78] sm:$0xf]
        %v1800 = vld [vmem:[#allocation2 + $0x7c] sm:$0xf]
        %v1801 = vld [vmem:[#allocation2 + $0x80] sm:$0xf]
        %v1802 = vld [vmem:[#allocation2 + $0x84] sm:$0xf]
        %v1803 = vld [vmem:[#allocation2 + $0x88] sm:$0xf]
        %v1804 = vld [vmem:[#allocation2 + $0x8c] sm:$0xf]
        %v1805 = vld [vmem:[#allocation2 + $0x90] sm:$0x1]
        %vm1843 = vcmask 1042432
        %vm1844 = vcmask 1046532
        %vm1845 = vmor %vm1843, %vm1844
        %v1846 = vrot.slane %v1769, 5
        %v1847 = vrot.slane %v1846, 4
        %v1848 = vrot.slane %v1770, 5
        %v1849 = vsel %vm1845, %v1847, %v1848
        %v1850 = vrot.slane %v1848, 4
        %v1851 = vrot.slane %v1771, 5
        %v1852 = vsel %vm1845, %v1850, %v1851
        %v1853 = vrot.slane %v1851, 4
        %v1854 = vrot.slane %v1772, 5
        %v1855 = vsel %vm1845, %v1853, %v1854
        %v1856 = vrot.slane %v1854, 4
        %v1857 = vrot.slane %v1773, 5
        %v1858 = vsel %vm1845, %v1856, %v1857
        %v1859 = vrot.slane %v1857, 4
        %v1860 = vrot.slane %v1774, 5
        %v1861 = vsel %vm1845, %v1859, %v1860
        %v1862 = vrot.slane %v1860, 4
        %v1863 = vrot.slane %v1775, 5
        %v1864 = vsel %vm1845, %v1862, %v1863
        %v1865 = vrot.slane %v1863, 4
        %v1866 = vrot.slane %v1776, 5
        %v1867 = vsel %vm1845, %v1865, %v1866
        %v1868 = vrot.slane %v1866, 4
        %v1869 = vrot.slane %v1777, 5
        %v1870 = vsel %vm1845, %v1868, %v1869
        %v1871 = vrot.slane %v1869, 4
        %v1872 = vrot.slane %v1778, 5
        %v1873 = vsel %vm1845, %v1871, %v1872
        %v1874 = vrot.slane %v1872, 4
        %v1875 = vrot.slane %v1779, 5
        %v1876 = vsel %vm1845, %v1874, %v1875
        %v1877 = vrot.slane %v1875, 4
        %v1878 = vrot.slane %v1780, 5
        %v1879 = vsel %vm1845, %v1877, %v1878
        %v1880 = vrot.slane %v1878, 4
        %v1881 = vrot.slane %v1781, 5
        %v1882 = vsel %vm1845, %v1880, %v1881
        %v1883 = vrot.slane %v1881, 4
        %v1884 = vrot.slane %v1782, 5
        %v1885 = vsel %vm1845, %v1883, %v1884
        %v1886 = vrot.slane %v1884, 4
        %v1887 = vrot.slane %v1783, 5
        %v1888 = vsel %vm1845, %v1886, %v1887
        %v1889 = vrot.slane %v1887, 4
        %v1890 = vrot.slane %v1784, 5
        %v1891 = vsel %vm1845, %v1889, %v1890
        %v1892 = vrot.slane %v1890, 4
        %v1893 = vrot.slane %v1785, 5
        %v1894 = vsel %vm1845, %v1892, %v1893
        %v1895 = vrot.slane %v1893, 4
        %v1896 = vrot.slane %v1786, 5
        %v1897 = vsel %vm1845, %v1895, %v1896
        %v1898 = vrot.slane %v1896, 4
        %v1899 = vrot.slane %v1787, 5
        %v1900 = vsel %vm1845, %v1898, %v1899
        %v1901 = vrot.slane %v1899, 4
        %v1902 = vrot.slane %v1788, 5
        %v1903 = vsel %vm1845, %v1901, %v1902
        %v1904 = vrot.slane %v1902, 4
        %v1905 = vrot.slane %v1789, 5
        %v1906 = vsel %vm1845, %v1904, %v1905
        %v1907 = vrot.slane %v1905, 4
        %v1908 = vrot.slane %v1790, 5
        %v1909 = vsel %vm1845, %v1907, %v1908
        %v1910 = vrot.slane %v1908, 4
        %v1911 = vrot.slane %v1791, 5
        %v1912 = vsel %vm1845, %v1910, %v1911
        %v1913 = vrot.slane %v1911, 4
        %v1914 = vrot.slane %v1792, 5
        %v1915 = vsel %vm1845, %v1913, %v1914
        %v1916 = vrot.slane %v1914, 4
        %v1917 = vrot.slane %v1793, 5
        %v1918 = vsel %vm1845, %v1916, %v1917
        %v1919 = vrot.slane %v1917, 4
        %v1920 = vrot.slane %v1794, 5
        %v1921 = vsel %vm1845, %v1919, %v1920
        %v1922 = vrot.slane %v1920, 4
        %v1923 = vrot.slane %v1795, 5
        %v1924 = vsel %vm1845, %v1922, %v1923
        %v1925 = vrot.slane %v1923, 4
        %v1926 = vrot.slane %v1796, 5
        %v1927 = vsel %vm1845, %v1925, %v1926
        %v1928 = vrot.slane %v1926, 4
        %v1929 = vrot.slane %v1797, 5
        %v1930 = vsel %vm1845, %v1928, %v1929
        %v1931 = vrot.slane %v1929, 4
        %v1932 = vrot.slane %v1798, 5
        %v1933 = vsel %vm1845, %v1931, %v1932
        %v1934 = vrot.slane %v1932, 4
        %v1935 = vrot.slane %v1799, 5
        %v1936 = vsel %vm1845, %v1934, %v1935
        %v1937 = vrot.slane %v1935, 4
        %v1938 = vrot.slane %v1800, 5
        %v1939 = vsel %vm1845, %v1937, %v1938
        %v1940 = vrot.slane %v1938, 4
        %v1941 = vrot.slane %v1801, 5
        %v1942 = vsel %vm1845, %v1940, %v1941
        %v1943 = vrot.slane %v1941, 4
        %v1944 = vrot.slane %v1802, 5
        %v1945 = vsel %vm1845, %v1943, %v1944
        %v1946 = vrot.slane %v1944, 4
        %v1947 = vrot.slane %v1803, 5
        %v1948 = vsel %vm1845, %v1946, %v1947
        %v1949 = vrot.slane %v1947, 4
        %v1950 = vrot.slane %v1804, 5
        %v1951 = vsel %vm1845, %v1949, %v1950
        %v1952 = vrot.slane %v1950, 4
        %v1953 = vrot.slane %v1805, 5
        %v1954 = vsel %vm1845, %v1952, %v1953
        %1991 = vst [vmem:[#allocation3 + $0x8] sm:$0xf] %v1849
        %1992 = vst [vmem:[#allocation3 + $0x2c] sm:$0xf] %v1852
        %1993 = vst [vmem:[#allocation3 + $0x50] sm:$0xf] %v1855
        %1994 = vst [vmem:[#allocation3 + $0x74] sm:$0xf] %v1858
        %1995 = vst [vmem:[#allocation3 + $0x98] sm:$0xf] %v1861
        %1996 = vst [vmem:[#allocation3 + $0xbc] sm:$0xf] %v1864
        %1997 = vst [vmem:[#allocation3 + $0xe0] sm:$0xf] %v1867
        %1998 = vst [vmem:[#allocation3 + $0x104] sm:$0xf] %v1870
        %1999 = vst [vmem:[#allocation3 + $0x128] sm:$0xf] %v1873
        %2000 = vst [vmem:[#allocation3 + $0x14c] sm:$0xf] %v1876
        %2001 = vst [vmem:[#allocation3 + $0x170] sm:$0xf] %v1879
        %2002 = vst [vmem:[#allocation3 + $0x194] sm:$0xf] %v1882
        %2003 = vst [vmem:[#allocation3 + $0x1b8] sm:$0xf] %v1885
        %2004 = vst [vmem:[#allocation3 + $0x1dc] sm:$0xf] %v1888
        %2005 = vst [vmem:[#allocation3 + $0x200] sm:$0xf] %v1891
        %2006 = vst [vmem:[#allocation3 + $0x224] sm:$0xf] %v1894
        %2007 = vst [vmem:[#allocation3 + $0x248] sm:$0xf] %v1897
        %2008 = vst [vmem:[#allocation3 + $0x26c] sm:$0xf] %v1900
        %2009 = vst [vmem:[#allocation3 + $0x290] sm:$0xf] %v1903
        %2010 = vst [vmem:[#allocation3 + $0x2b4] sm:$0xf] %v1906
        %2011 = vst [vmem:[#allocation3 + $0x2d8] sm:$0xf] %v1909
        %2012 = vst [vmem:[#allocation3 + $0x2fc] sm:$0xf] %v1912
        %2013 = vst [vmem:[#allocation3 + $0x320] sm:$0xf] %v1915
        %2014 = vst [vmem:[#allocation3 + $0x344] sm:$0xf] %v1918
        %2015 = vst [vmem:[#allocation3 + $0x368] sm:$0xf] %v1921
        %2016 = vst [vmem:[#allocation3 + $0x38c] sm:$0xf] %v1924
        %2017 = vst [vmem:[#allocation3 + $0x3b0] sm:$0xf] %v1927
        %2018 = vst [vmem:[#allocation3 + $0x3d4] sm:$0xf] %v1930
        %2019 = vst [vmem:[#allocation3 + $0x3f8] sm:$0xf] %v1933
        %2020 = vst [vmem:[#allocation3 + $0x41c] sm:$0xf] %v1936
        %2021 = vst [vmem:[#allocation3 + $0x440] sm:$0xf] %v1939
        %2022 = vst [vmem:[#allocation3 + $0x464] sm:$0xf] %v1942
        %2023 = vst [vmem:[#allocation3 + $0x488] sm:$0xf] %v1945
        %2024 = vst [vmem:[#allocation3 + $0x4ac] sm:$0xf] %v1948
        %2025 = vst [vmem:[#allocation3 + $0x4d0] sm:$0xf] %v1951
        %2026 = vst [vmem:[#allocation3 + $0x4f4] sm:$0xf] %v1954
        %v2027 = vld [vmem:[#allocation2 + $0x8] sm:$0xe]
        %v2028 = vld [vmem:[#allocation2 + $0xc] sm:$0xf]
        %v2029 = vld [vmem:[#allocation2 + $0x10] sm:$0xf]
        %v2030 = vld [vmem:[#allocation2 + $0x14] sm:$0xf]
        %v2031 = vld [vmem:[#allocation2 + $0x18] sm:$0xf]
        %v2032 = vld [vmem:[#allocation2 + $0x1c] sm:$0xf]
        %v2033 = vld [vmem:[#allocation2 + $0x20] sm:$0xf]
        %v2034 = vld [vmem:[#allocation2 + $0x24] sm:$0xf]
        %v2035 = vld [vmem:[#allocation2 + $0x28] sm:$0xf]
        %v2036 = vld [vmem:[#allocation2 + $0x2c] sm:$0xf]
        %v2037 = vld [vmem:[#allocation2 + $0x30] sm:$0xf]
        %v2038 = vld [vmem:[#allocation2 + $0x34] sm:$0xf]
        %v2039 = vld [vmem:[#allocation2 + $0x38] sm:$0xf]
        %v2040 = vld [vmem:[#allocation2 + $0x3c] sm:$0xf]
        %v2041 = vld [vmem:[#allocation2 + $0x40] sm:$0xf]
        %v2042 = vld [vmem:[#allocation2 + $0x44] sm:$0xf]
        %v2043 = vld [vmem:[#allocation2 + $0x48] sm:$0xf]
        %v2044 = vld [vmem:[#allocation2 + $0x4c] sm:$0xf]
        %v2045 = vld [vmem:[#allocation2 + $0x50] sm:$0xf]
        %v2046 = vld [vmem:[#allocation2 + $0x54] sm:$0xf]
        %v2047 = vld [vmem:[#allocation2 + $0x58] sm:$0xf]
        %v2048 = vld [vmem:[#allocation2 + $0x5c] sm:$0xf]
        %v2049 = vld [vmem:[#allocation2 + $0x60] sm:$0xf]
        %v2050 = vld [vmem:[#allocation2 + $0x64] sm:$0xf]
        %v2051 = vld [vmem:[#allocation2 + $0x68] sm:$0xf]
        %v2052 = vld [vmem:[#allocation2 + $0x6c] sm:$0xf]
        %v2053 = vld [vmem:[#allocation2 + $0x70] sm:$0xf]
        %v2054 = vld [vmem:[#allocation2 + $0x74] sm:$0xf]
        %v2055 = vld [vmem:[#allocation2 + $0x78] sm:$0xf]
        %v2056 = vld [vmem:[#allocation2 + $0x7c] sm:$0xf]
        %v2057 = vld [vmem:[#allocation2 + $0x80] sm:$0xf]
        %v2058 = vld [vmem:[#allocation2 + $0x84] sm:$0xf]
        %v2059 = vld [vmem:[#allocation2 + $0x88] sm:$0xf]
        %v2060 = vld [vmem:[#allocation2 + $0x8c] sm:$0xf]
        %v2061 = vld [vmem:[#allocation2 + $0x90] sm:$0xf]
        %v2062 = vld [vmem:[#allocation2 + $0x94] sm:$0xf]
        %v2063 = vld [vmem:[#allocation2 + $0x98] sm:$0x1]
        %v2101 = vrot.slane %v2027, 5
        %v2102 = vrot.slane %v2101, 4
        %v2103 = vrot.slane %v2028, 5
        %v2104 = vsel %vm1845, %v2102, %v2103
        %v2105 = vrot.slane %v2103, 4
        %v2106 = vrot.slane %v2029, 5
        %v2107 = vsel %vm1845, %v2105, %v2106
        %v2108 = vrot.slane %v2106, 4
        %v2109 = vrot.slane %v2030, 5
        %v2110 = vsel %vm1845, %v2108, %v2109
        %v2111 = vrot.slane %v2109, 4
        %v2112 = vrot.slane %v2031, 5
        %v2113 = vsel %vm1845, %v2111, %v2112
        %v2114 = vrot.slane %v2112, 4
        %v2115 = vrot.slane %v2032, 5
        %v2116 = vsel %vm1845, %v2114, %v2115
        %v2117 = vrot.slane %v2115, 4
        %v2118 = vrot.slane %v2033, 5
        %v2119 = vsel %vm1845, %v2117, %v2118
        %v2120 = vrot.slane %v2118, 4
        %v2121 = vrot.slane %v2034, 5
        %v2122 = vsel %vm1845, %v2120, %v2121
        %v2123 = vrot.slane %v2121, 4
        %v2124 = vrot.slane %v2035, 5
        %v2125 = vsel %vm1845, %v2123, %v2124
        %v2126 = vrot.slane %v2124, 4
        %v2127 = vrot.slane %v2036, 5
        %v2128 = vsel %vm1845, %v2126, %v2127
        %v2129 = vrot.slane %v2127, 4
        %v2130 = vrot.slane %v2037, 5
        %v2131 = vsel %vm1845, %v2129, %v2130
        %v2132 = vrot.slane %v2130, 4
        %v2133 = vrot.slane %v2038, 5
        %v2134 = vsel %vm1845, %v2132, %v2133
        %v2135 = vrot.slane %v2133, 4
        %v2136 = vrot.slane %v2039, 5
        %v2137 = vsel %vm1845, %v2135, %v2136
        %v2138 = vrot.slane %v2136, 4
        %v2139 = vrot.slane %v2040, 5
        %v2140 = vsel %vm1845, %v2138, %v2139
        %v2141 = vrot.slane %v2139, 4
        %v2142 = vrot.slane %v2041, 5
        %v2143 = vsel %vm1845, %v2141, %v2142
        %v2144 = vrot.slane %v2142, 4
        %v2145 = vrot.slane %v2042, 5
        %v2146 = vsel %vm1845, %v2144, %v2145
        %v2147 = vrot.slane %v2145, 4
        %v2148 = vrot.slane %v2043, 5
        %v2149 = vsel %vm1845, %v2147, %v2148
        %v2150 = vrot.slane %v2148, 4
        %v2151 = vrot.slane %v2044, 5
        %v2152 = vsel %vm1845, %v2150, %v2151
        %v2153 = vrot.slane %v2151, 4
        %v2154 = vrot.slane %v2045, 5
        %v2155 = vsel %vm1845, %v2153, %v2154
        %v2156 = vrot.slane %v2154, 4
        %v2157 = vrot.slane %v2046, 5
        %v2158 = vsel %vm1845, %v2156, %v2157
        %v2159 = vrot.slane %v2157, 4
        %v2160 = vrot.slane %v2047, 5
        %v2161 = vsel %vm1845, %v2159, %v2160
        %v2162 = vrot.slane %v2160, 4
        %v2163 = vrot.slane %v2048, 5
        %v2164 = vsel %vm1845, %v2162, %v2163
        %v2165 = vrot.slane %v2163, 4
        %v2166 = vrot.slane %v2049, 5
        %v2167 = vsel %vm1845, %v2165, %v2166
        %v2168 = vrot.slane %v2166, 4
        %v2169 = vrot.slane %v2050, 5
        %v2170 = vsel %vm1845, %v2168, %v2169
        %v2171 = vrot.slane %v2169, 4
        %v2172 = vrot.slane %v2051, 5
        %v2173 = vsel %vm1845, %v2171, %v2172
        %v2174 = vrot.slane %v2172, 4
        %v2175 = vrot.slane %v2052, 5
        %v2176 = vsel %vm1845, %v2174, %v2175
        %v2177 = vrot.slane %v2175, 4
        %v2178 = vrot.slane %v2053, 5
        %v2179 = vsel %vm1845, %v2177, %v2178
        %v2180 = vrot.slane %v2178, 4
        %v2181 = vrot.slane %v2054, 5
        %v2182 = vsel %vm1845, %v2180, %v2181
        %v2183 = vrot.slane %v2181, 4
        %v2184 = vrot.slane %v2055, 5
        %v2185 = vsel %vm1845, %v2183, %v2184
        %v2186 = vrot.slane %v2184, 4
        %v2187 = vrot.slane %v2056, 5
        %v2188 = vsel %vm1845, %v2186, %v2187
        %v2189 = vrot.slane %v2187, 4
        %v2190 = vrot.slane %v2057, 5
        %v2191 = vsel %vm1845, %v2189, %v2190
        %v2192 = vrot.slane %v2190, 4
        %v2193 = vrot.slane %v2058, 5
        %v2194 = vsel %vm1845, %v2192, %v2193
        %v2195 = vrot.slane %v2193, 4
        %v2196 = vrot.slane %v2059, 5
        %v2197 = vsel %vm1845, %v2195, %v2196
        %v2198 = vrot.slane %v2196, 4
        %v2199 = vrot.slane %v2060, 5
        %v2200 = vsel %vm1845, %v2198, %v2199
        %v2201 = vrot.slane %v2199, 4
        %v2202 = vrot.slane %v2061, 5
        %v2203 = vsel %vm1845, %v2201, %v2202
        %v2204 = vrot.slane %v2202, 4
        %v2205 = vrot.slane %v2062, 5
        %v2206 = vsel %vm1845, %v2204, %v2205
        %v2207 = vrot.slane %v2205, 4
        %v2208 = vrot.slane %v2063, 5
        %v2209 = vsel %vm1845, %v2207, %v2208
        %2246 = vst [vmem:[#allocation3 + $0xc] sm:$0xf] %v2104
        %2247 = vst [vmem:[#allocation3 + $0x30] sm:$0xf] %v2107
        %2248 = vst [vmem:[#allocation3 + $0x54] sm:$0xf] %v2110
        %2249 = vst [vmem:[#allocation3 + $0x78] sm:$0xf] %v2113
        %2250 = vst [vmem:[#allocation3 + $0x9c] sm:$0xf] %v2116
        %2251 = vst [vmem:[#allocation3 + $0xc0] sm:$0xf] %v2119
        %2252 = vst [vmem:[#allocation3 + $0xe4] sm:$0xf] %v2122
        %2253 = vst [vmem:[#allocation3 + $0x108] sm:$0xf] %v2125
        %2254 = vst [vmem:[#allocation3 + $0x12c] sm:$0xf] %v2128
        %2255 = vst [vmem:[#allocation3 + $0x150] sm:$0xf] %v2131
        %2256 = vst [vmem:[#allocation3 + $0x174] sm:$0xf] %v2134
        %2257 = vst [vmem:[#allocation3 + $0x198] sm:$0xf] %v2137
        %2258 = vst [vmem:[#allocation3 + $0x1bc] sm:$0xf] %v2140
        %2259 = vst [vmem:[#allocation3 + $0x1e0] sm:$0xf] %v2143
        %2260 = vst [vmem:[#allocation3 + $0x204] sm:$0xf] %v2146
        %2261 = vst [vmem:[#allocation3 + $0x228] sm:$0xf] %v2149
        %2262 = vst [vmem:[#allocation3 + $0x24c] sm:$0xf] %v2152
        %2263 = vst [vmem:[#allocation3 + $0x270] sm:$0xf] %v2155
        %2264 = vst [vmem:[#allocation3 + $0x294] sm:$0xf] %v2158
        %2265 = vst [vmem:[#allocation3 + $0x2b8] sm:$0xf] %v2161
        %2266 = vst [vmem:[#allocation3 + $0x2dc] sm:$0xf] %v2164
        %2267 = vst [vmem:[#allocation3 + $0x300] sm:$0xf] %v2167
        %2268 = vst [vmem:[#allocation3 + $0x324] sm:$0xf] %v2170
        %2269 = vst [vmem:[#allocation3 + $0x348] sm:$0xf] %v2173
        %2270 = vst [vmem:[#allocation3 + $0x36c] sm:$0xf] %v2176
        %2271 = vst [vmem:[#allocation3 + $0x390] sm:$0xf] %v2179
        %2272 = vst [vmem:[#allocation3 + $0x3b4] sm:$0xf] %v2182
        %2273 = vst [vmem:[#allocation3 + $0x3d8] sm:$0xf] %v2185
        %2274 = vst [vmem:[#allocation3 + $0x3fc] sm:$0xf] %v2188
        %2275 = vst [vmem:[#allocation3 + $0x420] sm:$0xf] %v2191
        %2276 = vst [vmem:[#allocation3 + $0x444] sm:$0xf] %v2194
        %2277 = vst [vmem:[#allocation3 + $0x468] sm:$0xf] %v2197
        %2278 = vst [vmem:[#allocation3 + $0x48c] sm:$0xf] %v2200
        %2279 = vst [vmem:[#allocation3 + $0x4b0] sm:$0xf] %v2203
        %2280 = vst [vmem:[#allocation3 + $0x4d4] sm:$0xf] %v2206
        %2281 = vst [vmem:[#allocation3 + $0x4f8] sm:$0xf] %v2209
        %v2282 = vld [vmem:[#allocation2 + $0x8] sm:$0xe]
        %v2283 = vld [vmem:[#allocation2 + $0xc] sm:$0xf]
        %v2284 = vld [vmem:[#allocation2 + $0x10] sm:$0xf]
        %v2285 = vld [vmem:[#allocation2 + $0x14] sm:$0xf]
        %v2286 = vld [vmem:[#allocation2 + $0x18] sm:$0xf]
        %v2287 = vld [vmem:[#allocation2 + $0x1c] sm:$0xf]
        %v2288 = vld [vmem:[#allocation2 + $0x20] sm:$0xf]
        %v2289 = vld [vmem:[#allocation2 + $0x24] sm:$0xf]
        %v2290 = vld [vmem:[#allocation2 + $0x28] sm:$0xf]
        %v2291 = vld [vmem:[#allocation2 + $0x2c] sm:$0xf]
        %v2292 = vld [vmem:[#allocation2 + $0x30] sm:$0xf]
        %v2293 = vld [vmem:[#allocation2 + $0x34] sm:$0xf]
        %v2294 = vld [vmem:[#allocation2 + $0x38] sm:$0xf]
        %v2295 = vld [vmem:[#allocation2 + $0x3c] sm:$0xf]
        %v2296 = vld [vmem:[#allocation2 + $0x40] sm:$0xf]
        %v2297 = vld [vmem:[#allocation2 + $0x44] sm:$0xf]
        %v2298 = vld [vmem:[#allocation2 + $0x48] sm:$0xf]
        %v2299 = vld [vmem:[#allocation2 + $0x4c] sm:$0xf]
        %v2300 = vld [vmem:[#allocation2 + $0x50] sm:$0xf]
        %v2301 = vld [vmem:[#allocation2 + $0x54] sm:$0xf]
        %v2302 = vld [vmem:[#allocation2 + $0x58] sm:$0xf]
        %v2303 = vld [vmem:[#allocation2 + $0x5c] sm:$0xf]
        %v2304 = vld [vmem:[#allocation2 + $0x60] sm:$0xf]
        %v2305 = vld [vmem:[#allocation2 + $0x64] sm:$0xf]
        %v2306 = vld [vmem:[#allocation2 + $0x68] sm:$0xf]
        %v2307 = vld [vmem:[#allocation2 + $0x6c] sm:$0xf]
        %v2308 = vld [vmem:[#allocation2 + $0x70] sm:$0xf]
        %v2309 = vld [vmem:[#allocation2 + $0x74] sm:$0xf]
        %v2310 = vld [vmem:[#allocation2 + $0x78] sm:$0xf]
        %v2311 = vld [vmem:[#allocation2 + $0x7c] sm:$0xf]
        %v2312 = vld [vmem:[#allocation2 + $0x80] sm:$0xf]
        %v2313 = vld [vmem:[#allocation2 + $0x84] sm:$0xf]
        %v2314 = vld [vmem:[#allocation2 + $0x88] sm:$0xf]
        %v2315 = vld [vmem:[#allocation2 + $0x8c] sm:$0xf]
        %v2316 = vld [vmem:[#allocation2 + $0x90] sm:$0xf]
        %v2317 = vld [vmem:[#allocation2 + $0x94] sm:$0xf]
        %v2318 = vld [vmem:[#allocation2 + $0x98] sm:$0x3]
        %vm2319 = vsmask.f32 2304
        %vm2320 = vsmask.f32 6416
        %vm2321 = vmor %vm2319, %vm2320
        %v2323 = vshrl.u32 %v2282, 16
        %v2325 = vrot.slane %v2323, 5
        %v2326 = vshll.u32 %v2282, 16
        %v2328 = vrot.slane %v2326, 6
        %v2329 = vor.u32 %v2325, %v2328
        %v2330 = vrot.slane %v2329, 4
        %v2332 = vshrl.u32 %v2283, 16
        %v2334 = vrot.slane %v2332, 5
        %v2335 = vshll.u32 %v2283, 16
        %v2337 = vrot.slane %v2335, 6
        %v2338 = vor.u32 %v2334, %v2337
        %v2339 = vsel %vm2321, %v2330, %v2338
        %v2340 = vrot.slane %v2338, 4
        %v2342 = vshrl.u32 %v2284, 16
        %v2344 = vrot.slane %v2342, 5
        %v2345 = vshll.u32 %v2284, 16
        %v2347 = vrot.slane %v2345, 6
        %v2348 = vor.u32 %v2344, %v2347
        %v2349 = vsel %vm2321, %v2340, %v2348
        %v2350 = vrot.slane %v2348, 4
        %v2352 = vshrl.u32 %v2285, 16
        %v2354 = vrot.slane %v2352, 5
        %v2355 = vshll.u32 %v2285, 16
        %v2357 = vrot.slane %v2355, 6
        %v2358 = vor.u32 %v2354, %v2357
        %v2359 = vsel %vm2321, %v2350, %v2358
        %v2360 = vrot.slane %v2358, 4
        %v2362 = vshrl.u32 %v2286, 16
        %v2364 = vrot.slane %v2362, 5
        %v2365 = vshll.u32 %v2286, 16
        %v2367 = vrot.slane %v2365, 6
        %v2368 = vor.u32 %v2364, %v2367
        %v2369 = vsel %vm2321, %v2360, %v2368
        %v2370 = vrot.slane %v2368, 4
        %v2372 = vshrl.u32 %v2287, 16
        %v2374 = vrot.slane %v2372, 5
        %v2375 = vshll.u32 %v2287, 16
        %v2377 = vrot.slane %v2375, 6
        %v2378 = vor.u32 %v2374, %v2377
        %v2379 = vsel %vm2321, %v2370, %v2378
        %v2380 = vrot.slane %v2378, 4
        %v2382 = vshrl.u32 %v2288, 16
        %v2384 = vrot.slane %v2382, 5
        %v2385 = vshll.u32 %v2288, 16
        %v2387 = vrot.slane %v2385, 6
        %v2388 = vor.u32 %v2384, %v2387
        %v2389 = vsel %vm2321, %v2380, %v2388
        %v2390 = vrot.slane %v2388, 4
        %v2392 = vshrl.u32 %v2289, 16
        %v2394 = vrot.slane %v2392, 5
        %v2395 = vshll.u32 %v2289, 16
        %v2397 = vrot.slane %v2395, 6
        %v2398 = vor.u32 %v2394, %v2397
        %v2399 = vsel %vm2321, %v2390, %v2398
        %v2400 = vrot.slane %v2398, 4
        %v2402 = vshrl.u32 %v2290, 16
        %v2404 = vrot.slane %v2402, 5
        %v2405 = vshll.u32 %v2290, 16
        %v2407 = vrot.slane %v2405, 6
        %v2408 = vor.u32 %v2404, %v2407
        %v2409 = vsel %vm2321, %v2400, %v2408
        %v2410 = vrot.slane %v2408, 4
        %v2412 = vshrl.u32 %v2291, 16
        %v2414 = vrot.slane %v2412, 5
        %v2415 = vshll.u32 %v2291, 16
        %v2417 = vrot.slane %v2415, 6
        %v2418 = vor.u32 %v2414, %v2417
        %v2419 = vsel %vm2321, %v2410, %v2418
        %v2420 = vrot.slane %v2418, 4
        %v2422 = vshrl.u32 %v2292, 16
        %v2424 = vrot.slane %v2422, 5
        %v2425 = vshll.u32 %v2292, 16
        %v2427 = vrot.slane %v2425, 6
        %v2428 = vor.u32 %v2424, %v2427
        %v2429 = vsel %vm2321, %v2420, %v2428
        %v2430 = vrot.slane %v2428, 4
        %v2432 = vshrl.u32 %v2293, 16
        %v2434 = vrot.slane %v2432, 5
        %v2435 = vshll.u32 %v2293, 16
        %v2437 = vrot.slane %v2435, 6
        %v2438 = vor.u32 %v2434, %v2437
        %v2439 = vsel %vm2321, %v2430, %v2438
        %v2440 = vrot.slane %v2438, 4
        %v2442 = vshrl.u32 %v2294, 16
        %v2444 = vrot.slane %v2442, 5
        %v2445 = vshll.u32 %v2294, 16
        %v2447 = vrot.slane %v2445, 6
        %v2448 = vor.u32 %v2444, %v2447
        %v2449 = vsel %vm2321, %v2440, %v2448
        %v2450 = vrot.slane %v2448, 4
        %v2452 = vshrl.u32 %v2295, 16
        %v2454 = vrot.slane %v2452, 5
        %v2455 = vshll.u32 %v2295, 16
        %v2457 = vrot.slane %v2455, 6
        %v2458 = vor.u32 %v2454, %v2457
        %v2459 = vsel %vm2321, %v2450, %v2458
        %v2460 = vrot.slane %v2458, 4
        %v2462 = vshrl.u32 %v2296, 16
        %v2464 = vrot.slane %v2462, 5
        %v2465 = vshll.u32 %v2296, 16
        %v2467 = vrot.slane %v2465, 6
        %v2468 = vor.u32 %v2464, %v2467
        %v2469 = vsel %vm2321, %v2460, %v2468
        %v2470 = vrot.slane %v2468, 4
        %v2472 = vshrl.u32 %v2297, 16
        %v2474 = vrot.slane %v2472, 5
        %v2475 = vshll.u32 %v2297, 16
        %v2477 = vrot.slane %v2475, 6
        %v2478 = vor.u32 %v2474, %v2477
        %v2479 = vsel %vm2321, %v2470, %v2478
        %v2480 = vrot.slane %v2478, 4
        %v2482 = vshrl.u32 %v2298, 16
        %v2484 = vrot.slane %v2482, 5
        %v2485 = vshll.u32 %v2298, 16
        %v2487 = vrot.slane %v2485, 6
        %v2488 = vor.u32 %v2484, %v2487
        %v2489 = vsel %vm2321, %v2480, %v2488
        %v2490 = vrot.slane %v2488, 4
        %v2492 = vshrl.u32 %v2299, 16
        %v2494 = vrot.slane %v2492, 5
        %v2495 = vshll.u32 %v2299, 16
        %v2497 = vrot.slane %v2495, 6
        %v2498 = vor.u32 %v2494, %v2497
        %v2499 = vsel %vm2321, %v2490, %v2498
        %v2500 = vrot.slane %v2498, 4
        %v2502 = vshrl.u32 %v2300, 16
        %v2504 = vrot.slane %v2502, 5
        %v2505 = vshll.u32 %v2300, 16
        %v2507 = vrot.slane %v2505, 6
        %v2508 = vor.u32 %v2504, %v2507
        %v2509 = vsel %vm2321, %v2500, %v2508
        %v2510 = vrot.slane %v2508, 4
        %v2512 = vshrl.u32 %v2301, 16
        %v2514 = vrot.slane %v2512, 5
        %v2515 = vshll.u32 %v2301, 16
        %v2517 = vrot.slane %v2515, 6
        %v2518 = vor.u32 %v2514, %v2517
        %v2519 = vsel %vm2321, %v2510, %v2518
        %v2520 = vrot.slane %v2518, 4
        %v2522 = vshrl.u32 %v2302, 16
        %v2524 = vrot.slane %v2522, 5
        %v2525 = vshll.u32 %v2302, 16
        %v2527 = vrot.slane %v2525, 6
        %v2528 = vor.u32 %v2524, %v2527
        %v2529 = vsel %vm2321, %v2520, %v2528
        %v2530 = vrot.slane %v2528, 4
        %v2532 = vshrl.u32 %v2303, 16
        %v2534 = vrot.slane %v2532, 5
        %v2535 = vshll.u32 %v2303, 16
        %v2537 = vrot.slane %v2535, 6
        %v2538 = vor.u32 %v2534, %v2537
        %v2539 = vsel %vm2321, %v2530, %v2538
        %v2540 = vrot.slane %v2538, 4
        %v2542 = vshrl.u32 %v2304, 16
        %v2544 = vrot.slane %v2542, 5
        %v2545 = vshll.u32 %v2304, 16
        %v2547 = vrot.slane %v2545, 6
        %v2548 = vor.u32 %v2544, %v2547
        %v2549 = vsel %vm2321, %v2540, %v2548
        %v2550 = vrot.slane %v2548, 4
        %v2552 = vshrl.u32 %v2305, 16
        %v2554 = vrot.slane %v2552, 5
        %v2555 = vshll.u32 %v2305, 16
        %v2557 = vrot.slane %v2555, 6
        %v2558 = vor.u32 %v2554, %v2557
        %v2559 = vsel %vm2321, %v2550, %v2558
        %v2560 = vrot.slane %v2558, 4
        %v2562 = vshrl.u32 %v2306, 16
        %v2564 = vrot.slane %v2562, 5
        %v2565 = vshll.u32 %v2306, 16
        %v2567 = vrot.slane %v2565, 6
        %v2568 = vor.u32 %v2564, %v2567
        %v2569 = vsel %vm2321, %v2560, %v2568
        %v2570 = vrot.slane %v2568, 4
        %v2572 = vshrl.u32 %v2307, 16
        %v2574 = vrot.slane %v2572, 5
        %v2575 = vshll.u32 %v2307, 16
        %v2577 = vrot.slane %v2575, 6
        %v2578 = vor.u32 %v2574, %v2577
        %v2579 = vsel %vm2321, %v2570, %v2578
        %v2580 = vrot.slane %v2578, 4
        %v2582 = vshrl.u32 %v2308, 16
        %v2584 = vrot.slane %v2582, 5
        %v2585 = vshll.u32 %v2308, 16
        %v2587 = vrot.slane %v2585, 6
        %v2588 = vor.u32 %v2584, %v2587
        %v2589 = vsel %vm2321, %v2580, %v2588
        %v2590 = vrot.slane %v2588, 4
        %v2592 = vshrl.u32 %v2309, 16
        %v2594 = vrot.slane %v2592, 5
        %v2595 = vshll.u32 %v2309, 16
        %v2597 = vrot.slane %v2595, 6
        %v2598 = vor.u32 %v2594, %v2597
        %v2599 = vsel %vm2321, %v2590, %v2598
        %v2600 = vrot.slane %v2598, 4
        %v2602 = vshrl.u32 %v2310, 16
        %v2604 = vrot.slane %v2602, 5
        %v2605 = vshll.u32 %v2310, 16
        %v2607 = vrot.slane %v2605, 6
        %v2608 = vor.u32 %v2604, %v2607
        %v2609 = vsel %vm2321, %v2600, %v2608
        %v2610 = vrot.slane %v2608, 4
        %v2612 = vshrl.u32 %v2311, 16
        %v2614 = vrot.slane %v2612, 5
        %v2615 = vshll.u32 %v2311, 16
        %v2617 = vrot.slane %v2615, 6
        %v2618 = vor.u32 %v2614, %v2617
        %v2619 = vsel %vm2321, %v2610, %v2618
        %v2620 = vrot.slane %v2618, 4
        %v2622 = vshrl.u32 %v2312, 16
        %v2624 = vrot.slane %v2622, 5
        %v2625 = vshll.u32 %v2312, 16
        %v2627 = vrot.slane %v2625, 6
        %v2628 = vor.u32 %v2624, %v2627
        %v2629 = vsel %vm2321, %v2620, %v2628
        %v2630 = vrot.slane %v2628, 4
        %v2632 = vshrl.u32 %v2313, 16
        %v2634 = vrot.slane %v2632, 5
        %v2635 = vshll.u32 %v2313, 16
        %v2637 = vrot.slane %v2635, 6
        %v2638 = vor.u32 %v2634, %v2637
        %v2639 = vsel %vm2321, %v2630, %v2638
        %v2640 = vrot.slane %v2638, 4
        %v2642 = vshrl.u32 %v2314, 16
        %v2644 = vrot.slane %v2642, 5
        %v2645 = vshll.u32 %v2314, 16
        %v2647 = vrot.slane %v2645, 6
        %v2648 = vor.u32 %v2644, %v2647
        %v2649 = vsel %vm2321, %v2640, %v2648
        %v2650 = vrot.slane %v2648, 4
        %v2652 = vshrl.u32 %v2315, 16
        %v2654 = vrot.slane %v2652, 5
        %v2655 = vshll.u32 %v2315, 16
        %v2657 = vrot.slane %v2655, 6
        %v2658 = vor.u32 %v2654, %v2657
        %v2659 = vsel %vm2321, %v2650, %v2658
        %v2660 = vrot.slane %v2658, 4
        %v2662 = vshrl.u32 %v2316, 16
        %v2664 = vrot.slane %v2662, 5
        %v2665 = vshll.u32 %v2316, 16
        %v2667 = vrot.slane %v2665, 6
        %v2668 = vor.u32 %v2664, %v2667
        %v2669 = vsel %vm2321, %v2660, %v2668
        %v2670 = vrot.slane %v2668, 4
        %v2672 = vshrl.u32 %v2317, 16
        %v2674 = vrot.slane %v2672, 5
        %v2675 = vshll.u32 %v2317, 16
        %v2677 = vrot.slane %v2675, 6
        %v2678 = vor.u32 %v2674, %v2677
        %v2679 = vsel %vm2321, %v2670, %v2678
        %v2680 = vrot.slane %v2678, 4
        %v2682 = vshrl.u32 %v2318, 16
        %v2684 = vrot.slane %v2682, 5
        %v2685 = vshll.u32 %v2318, 16
        %v2687 = vrot.slane %v2685, 6
        %v2688 = vor.u32 %v2684, %v2687
        %v2689 = vsel %vm2321, %v2680, %v2688
        %2726 = vst [vmem:[#allocation3 + $0x10] sm:$0xf] %v2339
        %2727 = vst [vmem:[#allocation3 + $0x34] sm:$0xf] %v2349
        %2728 = vst [vmem:[#allocation3 + $0x58] sm:$0xf] %v2359
        %2729 = vst [vmem:[#allocation3 + $0x7c] sm:$0xf] %v2369
        %2730 = vst [vmem:[#allocation3 + $0xa0] sm:$0xf] %v2379
        %2731 = vst [vmem:[#allocation3 + $0xc4] sm:$0xf] %v2389
        %2732 = vst [vmem:[#allocation3 + $0xe8] sm:$0xf] %v2399
        %2733 = vst [vmem:[#allocation3 + $0x10c] sm:$0xf] %v2409
        %2734 = vst [vmem:[#allocation3 + $0x130] sm:$0xf] %v2419
        %2735 = vst [vmem:[#allocation3 + $0x154] sm:$0xf] %v2429
        %2736 = vst [vmem:[#allocation3 + $0x178] sm:$0xf] %v2439
        %2737 = vst [vmem:[#allocation3 + $0x19c] sm:$0xf] %v2449
        %2738 = vst [vmem:[#allocation3 + $0x1c0] sm:$0xf] %v2459
        %2739 = vst [vmem:[#allocation3 + $0x1e4] sm:$0xf] %v2469
        %2740 = vst [vmem:[#allocation3 + $0x208] sm:$0xf] %v2479
        %2741 = vst [vmem:[#allocation3 + $0x22c] sm:$0xf] %v2489
        %2742 = vst [vmem:[#allocation3 + $0x250] sm:$0xf] %v2499
        %2743 = vst [vmem:[#allocation3 + $0x274] sm:$0xf] %v2509
        %2744 = vst [vmem:[#allocation3 + $0x298] sm:$0xf] %v2519
        %2745 = vst [vmem:[#allocation3 + $0x2bc] sm:$0xf] %v2529
        %2746 = vst [vmem:[#allocation3 + $0x2e0] sm:$0xf] %v2539
        %2747 = vst [vmem:[#allocation3 + $0x304] sm:$0xf] %v2549
        %2748 = vst [vmem:[#allocation3 + $0x328] sm:$0xf] %v2559
        %2749 = vst [vmem:[#allocation3 + $0x34c] sm:$0xf] %v2569
        %2750 = vst [vmem:[#allocation3 + $0x370] sm:$0xf] %v2579
        %2751 = vst [vmem:[#allocation3 + $0x394] sm:$0xf] %v2589
        %2752 = vst [vmem:[#allocation3 + $0x3b8] sm:$0xf] %v2599
        %2753 = vst [vmem:[#allocation3 + $0x3dc] sm:$0xf] %v2609
        %2754 = vst [vmem:[#allocation3 + $0x400] sm:$0xf] %v2619
        %2755 = vst [vmem:[#allocation3 + $0x424] sm:$0xf] %v2629
        %2756 = vst [vmem:[#allocation3 + $0x448] sm:$0xf] %v2639
        %2757 = vst [vmem:[#allocation3 + $0x46c] sm:$0xf] %v2649
        %2758 = vst [vmem:[#allocation3 + $0x490] sm:$0xf] %v2659
        %2759 = vst [vmem:[#allocation3 + $0x4b4] sm:$0xf] %v2669
        %2760 = vst [vmem:[#allocation3 + $0x4d8] sm:$0xf] %v2679
        %2761 = vst [vmem:[#allocation3 + $0x4fc] sm:$0xf] %v2689
        %v2762 = vld [vmem:[#allocation2 + $0x8] sm:$0xc]
        %v2763 = vld [vmem:[#allocation2 + $0xc] sm:$0xf]
        %v2764 = vld [vmem:[#allocation2 + $0x10] sm:$0xf]
        %v2765 = vld [vmem:[#allocation2 + $0x14] sm:$0xf]
        %v2766 = vld [vmem:[#allocation2 + $0x18] sm:$0xf]
        %v2767 = vld [vmem:[#allocation2 + $0x1c] sm:$0xf]
        %v2768 = vld [vmem:[#allocation2 + $0x20] sm:$0xf]
        %v2769 = vld [vmem:[#allocation2 + $0x24] sm:$0xf]
        %v2770 = vld [vmem:[#allocation2 + $0x28] sm:$0xf]
        %v2771 = vld [vmem:[#allocation2 + $0x2c] sm:$0xf]
        %v2772 = vld [vmem:[#allocation2 + $0x30] sm:$0xf]
        %v2773 = vld [vmem:[#allocation2 + $0x34] sm:$0xf]
        %v2774 = vld [vmem:[#allocation2 + $0x38] sm:$0xf]
        %v2775 = vld [vmem:[#allocation2 + $0x3c] sm:$0xf]
        %v2776 = vld [vmem:[#allocation2 + $0x40] sm:$0xf]
        %v2777 = vld [vmem:[#allocation2 + $0x44] sm:$0xf]
        %v2778 = vld [vmem:[#allocation2 + $0x48] sm:$0xf]
        %v2779 = vld [vmem:[#allocation2 + $0x4c] sm:$0xf]
        %v2780 = vld [vmem:[#allocation2 + $0x50] sm:$0xf]
        %v2781 = vld [vmem:[#allocation2 + $0x54] sm:$0xf]
        %v2782 = vld [vmem:[#allocation2 + $0x58] sm:$0xf]
        %v2783 = vld [vmem:[#allocation2 + $0x5c] sm:$0xf]
        %v2784 = vld [vmem:[#allocation2 + $0x60] sm:$0xf]
        %v2785 = vld [vmem:[#allocation2 + $0x64] sm:$0xf]
        %v2786 = vld [vmem:[#allocation2 + $0x68] sm:$0xf]
        %v2787 = vld [vmem:[#allocation2 + $0x6c] sm:$0xf]
        %v2788 = vld [vmem:[#allocation2 + $0x70] sm:$0xf]
        %v2789 = vld [vmem:[#allocation2 + $0x74] sm:$0xf]
        %v2790 = vld [vmem:[#allocation2 + $0x78] sm:$0xf]
        %v2791 = vld [vmem:[#allocation2 + $0x7c] sm:$0xf]
        %v2792 = vld [vmem:[#allocation2 + $0x80] sm:$0xf]
        %v2793 = vld [vmem:[#allocation2 + $0x84] sm:$0xf]
        %v2794 = vld [vmem:[#allocation2 + $0x88] sm:$0xf]
        %v2795 = vld [vmem:[#allocation2 + $0x8c] sm:$0xf]
        %v2796 = vld [vmem:[#allocation2 + $0x90] sm:$0xf]
        %v2797 = vld [vmem:[#allocation2 + $0x94] sm:$0xf]
        %v2798 = vld [vmem:[#allocation2 + $0x98] sm:$0x3]
        %vm2836 = vcmask 1041408
        %vm2837 = vcmask 1045508
        %vm2838 = vmor %vm2836, %vm2837
        %v2839 = vrot.slane %v2762, 6
        %v2840 = vrot.slane %v2839, 4
        %v2841 = vrot.slane %v2763, 6
        %v2842 = vsel %vm2838, %v2840, %v2841
        %v2843 = vrot.slane %v2841, 4
        %v2844 = vrot.slane %v2764, 6
        %v2845 = vsel %vm2838, %v2843, %v2844
        %v2846 = vrot.slane %v2844, 4
        %v2847 = vrot.slane %v2765, 6
        %v2848 = vsel %vm2838, %v2846, %v2847
        %v2849 = vrot.slane %v2847, 4
        %v2850 = vrot.slane %v2766, 6
        %v2851 = vsel %vm2838, %v2849, %v2850
        %v2852 = vrot.slane %v2850, 4
        %v2853 = vrot.slane %v2767, 6
        %v2854 = vsel %vm2838, %v2852, %v2853
        %v2855 = vrot.slane %v2853, 4
        %v2856 = vrot.slane %v2768, 6
        %v2857 = vsel %vm2838, %v2855, %v2856
        %v2858 = vrot.slane %v2856, 4
        %v2859 = vrot.slane %v2769, 6
        %v2860 = vsel %vm2838, %v2858, %v2859
        %v2861 = vrot.slane %v2859, 4
        %v2862 = vrot.slane %v2770, 6
        %v2863 = vsel %vm2838, %v2861, %v2862
        %v2864 = vrot.slane %v2862, 4
        %v2865 = vrot.slane %v2771, 6
        %v2866 = vsel %vm2838, %v2864, %v2865
        %v2867 = vrot.slane %v2865, 4
        %v2868 = vrot.slane %v2772, 6
        %v2869 = vsel %vm2838, %v2867, %v2868
        %v2870 = vrot.slane %v2868, 4
        %v2871 = vrot.slane %v2773, 6
        %v2872 = vsel %vm2838, %v2870, %v2871
        %v2873 = vrot.slane %v2871, 4
        %v2874 = vrot.slane %v2774, 6
        %v2875 = vsel %vm2838, %v2873, %v2874
        %v2876 = vrot.slane %v2874, 4
        %v2877 = vrot.slane %v2775, 6
        %v2878 = vsel %vm2838, %v2876, %v2877
        %v2879 = vrot.slane %v2877, 4
        %v2880 = vrot.slane %v2776, 6
        %v2881 = vsel %vm2838, %v2879, %v2880
        %v2882 = vrot.slane %v2880, 4
        %v2883 = vrot.slane %v2777, 6
        %v2884 = vsel %vm2838, %v2882, %v2883
        %v2885 = vrot.slane %v2883, 4
        %v2886 = vrot.slane %v2778, 6
        %v2887 = vsel %vm2838, %v2885, %v2886
        %v2888 = vrot.slane %v2886, 4
        %v2889 = vrot.slane %v2779, 6
        %v2890 = vsel %vm2838, %v2888, %v2889
        %v2891 = vrot.slane %v2889, 4
        %v2892 = vrot.slane %v2780, 6
        %v2893 = vsel %vm2838, %v2891, %v2892
        %v2894 = vrot.slane %v2892, 4
        %v2895 = vrot.slane %v2781, 6
        %v2896 = vsel %vm2838, %v2894, %v2895
        %v2897 = vrot.slane %v2895, 4
        %v2898 = vrot.slane %v2782, 6
        %v2899 = vsel %vm2838, %v2897, %v2898
        %v2900 = vrot.slane %v2898, 4
        %v2901 = vrot.slane %v2783, 6
        %v2902 = vsel %vm2838, %v2900, %v2901
        %v2903 = vrot.slane %v2901, 4
        %v2904 = vrot.slane %v2784, 6
        %v2905 = vsel %vm2838, %v2903, %v2904
        %v2906 = vrot.slane %v2904, 4
        %v2907 = vrot.slane %v2785, 6
        %v2908 = vsel %vm2838, %v2906, %v2907
        %v2909 = vrot.slane %v2907, 4
        %v2910 = vrot.slane %v2786, 6
        %v2911 = vsel %vm2838, %v2909, %v2910
        %v2912 = vrot.slane %v2910, 4
        %v2913 = vrot.slane %v2787, 6
        %v2914 = vsel %vm2838, %v2912, %v2913
        %v2915 = vrot.slane %v2913, 4
        %v2916 = vrot.slane %v2788, 6
        %v2917 = vsel %vm2838, %v2915, %v2916
        %v2918 = vrot.slane %v2916, 4
        %v2919 = vrot.slane %v2789, 6
        %v2920 = vsel %vm2838, %v2918, %v2919
        %v2921 = vrot.slane %v2919, 4
        %v2922 = vrot.slane %v2790, 6
        %v2923 = vsel %vm2838, %v2921, %v2922
        %v2924 = vrot.slane %v2922, 4
        %v2925 = vrot.slane %v2791, 6
        %v2926 = vsel %vm2838, %v2924, %v2925
        %v2927 = vrot.slane %v2925, 4
        %v2928 = vrot.slane %v2792, 6
        %v2929 = vsel %vm2838, %v2927, %v2928
        %v2930 = vrot.slane %v2928, 4
        %v2931 = vrot.slane %v2793, 6
        %v2932 = vsel %vm2838, %v2930, %v2931
        %v2933 = vrot.slane %v2931, 4
        %v2934 = vrot.slane %v2794, 6
        %v2935 = vsel %vm2838, %v2933, %v2934
        %v2936 = vrot.slane %v2934, 4
        %v2937 = vrot.slane %v2795, 6
        %v2938 = vsel %vm2838, %v2936, %v2937
        %v2939 = vrot.slane %v2937, 4
        %v2940 = vrot.slane %v2796, 6
        %v2941 = vsel %vm2838, %v2939, %v2940
        %v2942 = vrot.slane %v2940, 4
        %v2943 = vrot.slane %v2797, 6
        %v2944 = vsel %vm2838, %v2942, %v2943
        %v2945 = vrot.slane %v2943, 4
        %v2946 = vrot.slane %v2798, 6
        %v2947 = vsel %vm2838, %v2945, %v2946
        %2984 = vst [vmem:[#allocation3 + $0x14] sm:$0xf] %v2842
        %2985 = vst [vmem:[#allocation3 + $0x38] sm:$0xf] %v2845
        %2986 = vst [vmem:[#allocation3 + $0x5c] sm:$0xf] %v2848
        %2987 = vst [vmem:[#allocation3 + $0x80] sm:$0xf] %v2851
        %2988 = vst [vmem:[#allocation3 + $0xa4] sm:$0xf] %v2854
        %2989 = vst [vmem:[#allocation3 + $0xc8] sm:$0xf] %v2857
        %2990 = vst [vmem:[#allocation3 + $0xec] sm:$0xf] %v2860
        %2991 = vst [vmem:[#allocation3 + $0x110] sm:$0xf] %v2863
        %2992 = vst [vmem:[#allocation3 + $0x134] sm:$0xf] %v2866
        %2993 = vst [vmem:[#allocation3 + $0x158] sm:$0xf] %v2869
        %2994 = vst [vmem:[#allocation3 + $0x17c] sm:$0xf] %v2872
        %2995 = vst [vmem:[#allocation3 + $0x1a0] sm:$0xf] %v2875
        %2996 = vst [vmem:[#allocation3 + $0x1c4] sm:$0xf] %v2878
        %2997 = vst [vmem:[#allocation3 + $0x1e8] sm:$0xf] %v2881
        %2998 = vst [vmem:[#allocation3 + $0x20c] sm:$0xf] %v2884
        %2999 = vst [vmem:[#allocation3 + $0x230] sm:$0xf] %v2887
        %3000 = vst [vmem:[#allocation3 + $0x254] sm:$0xf] %v2890
        %3001 = vst [vmem:[#allocation3 + $0x278] sm:$0xf] %v2893
        %3002 = vst [vmem:[#allocation3 + $0x29c] sm:$0xf] %v2896
        %3003 = vst [vmem:[#allocation3 + $0x2c0] sm:$0xf] %v2899
        %3004 = vst [vmem:[#allocation3 + $0x2e4] sm:$0xf] %v2902
        %3005 = vst [vmem:[#allocation3 + $0x308] sm:$0xf] %v2905
        %3006 = vst [vmem:[#allocation3 + $0x32c] sm:$0xf] %v2908
        %3007 = vst [vmem:[#allocation3 + $0x350] sm:$0xf] %v2911
        %3008 = vst [vmem:[#allocation3 + $0x374] sm:$0xf] %v2914
        %3009 = vst [vmem:[#allocation3 + $0x398] sm:$0xf] %v2917
        %3010 = vst [vmem:[#allocation3 + $0x3bc] sm:$0xf] %v2920
        %3011 = vst [vmem:[#allocation3 + $0x3e0] sm:$0xf] %v2923
        %3012 = vst [vmem:[#allocation3 + $0x404] sm:$0xf] %v2926
        %3013 = vst [vmem:[#allocation3 + $0x428] sm:$0xf] %v2929
        %3014 = vst [vmem:[#allocation3 + $0x44c] sm:$0xf] %v2932
        %3015 = vst [vmem:[#allocation3 + $0x470] sm:$0xf] %v2935
        %3016 = vst [vmem:[#allocation3 + $0x494] sm:$0xf] %v2938
        %3017 = vst [vmem:[#allocation3 + $0x4b8] sm:$0xf] %v2941
        %3018 = vst [vmem:[#allocation3 + $0x4dc] sm:$0xf] %v2944
        %3019 = vst [vmem:[#allocation3 + $0x500] sm:$0xf] %v2947
        %v3020 = vld [vmem:[#allocation2 + $0x10] sm:$0xc]
        %v3021 = vld [vmem:[#allocation2 + $0x14] sm:$0xf]
        %v3022 = vld [vmem:[#allocation2 + $0x18] sm:$0xf]
        %v3023 = vld [vmem:[#allocation2 + $0x1c] sm:$0xf]
        %v3024 = vld [vmem:[#allocation2 + $0x20] sm:$0xf]
        %v3025 = vld [vmem:[#allocation2 + $0x24] sm:$0xf]
        %v3026 = vld [vmem:[#allocation2 + $0x28] sm:$0xf]
        %v3027 = vld [vmem:[#allocation2 + $0x2c] sm:$0xf]
        %v3028 = vld [vmem:[#allocation2 + $0x30] sm:$0xf]
        %v3029 = vld [vmem:[#allocation2 + $0x34] sm:$0xf]
        %v3030 = vld [vmem:[#allocation2 + $0x38] sm:$0xf]
        %v3031 = vld [vmem:[#allocation2 + $0x3c] sm:$0xf]
        %v3032 = vld [vmem:[#allocation2 + $0x40] sm:$0xf]
        %v3033 = vld [vmem:[#allocation2 + $0x44] sm:$0xf]
        %v3034 = vld [vmem:[#allocation2 + $0x48] sm:$0xf]
        %v3035 = vld [vmem:[#allocation2 + $0x4c] sm:$0xf]
        %v3036 = vld [vmem:[#allocation2 + $0x50] sm:$0xf]
        %v3037 = vld [vmem:[#allocation2 + $0x54] sm:$0xf]
        %v3038 = vld [vmem:[#allocation2 + $0x58] sm:$0xf]
        %v3039 = vld [vmem:[#allocation2 + $0x5c] sm:$0xf]
        %v3040 = vld [vmem:[#allocation2 + $0x60] sm:$0xf]
        %v3041 = vld [vmem:[#allocation2 + $0x64] sm:$0xf]
        %v3042 = vld [vmem:[#allocation2 + $0x68] sm:$0xf]
        %v3043 = vld [vmem:[#allocation2 + $0x6c] sm:$0xf]
        %v3044 = vld [vmem:[#allocation2 + $0x70] sm:$0xf]
        %v3045 = vld [vmem:[#allocation2 + $0x74] sm:$0xf]
        %v3046 = vld [vmem:[#allocation2 + $0x78] sm:$0xf]
        %v3047 = vld [vmem:[#allocation2 + $0x7c] sm:$0xf]
        %v3048 = vld [vmem:[#allocation2 + $0x80] sm:$0xf]
        %v3049 = vld [vmem:[#allocation2 + $0x84] sm:$0xf]
        %v3050 = vld [vmem:[#allocation2 + $0x88] sm:$0xf]
        %v3051 = vld [vmem:[#allocation2 + $0x8c] sm:$0xf]
        %v3052 = vld [vmem:[#allocation2 + $0x90] sm:$0xf]
        %v3053 = vld [vmem:[#allocation2 + $0x94] sm:$0xf]
        %v3054 = vld [vmem:[#allocation2 + $0x98] sm:$0xf]
        %v3055 = vld [vmem:[#allocation2 + $0x9c] sm:$0xf]
        %v3056 = vld [vmem:[#allocation2 + $0xa0] sm:$0x3]
        %v3094 = vrot.slane %v3020, 6
        %v3095 = vrot.slane %v3094, 4
        %v3096 = vrot.slane %v3021, 6
        %v3097 = vsel %vm2838, %v3095, %v3096
        %v3098 = vrot.slane %v3096, 4
        %v3099 = vrot.slane %v3022, 6
        %v3100 = vsel %vm2838, %v3098, %v3099
        %v3101 = vrot.slane %v3099, 4
        %v3102 = vrot.slane %v3023, 6
        %v3103 = vsel %vm2838, %v3101, %v3102
        %v3104 = vrot.slane %v3102, 4
        %v3105 = vrot.slane %v3024, 6
        %v3106 = vsel %vm2838, %v3104, %v3105
        %v3107 = vrot.slane %v3105, 4
        %v3108 = vrot.slane %v3025, 6
        %v3109 = vsel %vm2838, %v3107, %v3108
        %v3110 = vrot.slane %v3108, 4
        %v3111 = vrot.slane %v3026, 6
        %v3112 = vsel %vm2838, %v3110, %v3111
        %v3113 = vrot.slane %v3111, 4
        %v3114 = vrot.slane %v3027, 6
        %v3115 = vsel %vm2838, %v3113, %v3114
        %v3116 = vrot.slane %v3114, 4
        %v3117 = vrot.slane %v3028, 6
        %v3118 = vsel %vm2838, %v3116, %v3117
        %v3119 = vrot.slane %v3117, 4
        %v3120 = vrot.slane %v3029, 6
        %v3121 = vsel %vm2838, %v3119, %v3120
        %v3122 = vrot.slane %v3120, 4
        %v3123 = vrot.slane %v3030, 6
        %v3124 = vsel %vm2838, %v3122, %v3123
        %v3125 = vrot.slane %v3123, 4
        %v3126 = vrot.slane %v3031, 6
        %v3127 = vsel %vm2838, %v3125, %v3126
        %v3128 = vrot.slane %v3126, 4
        %v3129 = vrot.slane %v3032, 6
        %v3130 = vsel %vm2838, %v3128, %v3129
        %v3131 = vrot.slane %v3129, 4
        %v3132 = vrot.slane %v3033, 6
        %v3133 = vsel %vm2838, %v3131, %v3132
        %v3134 = vrot.slane %v3132, 4
        %v3135 = vrot.slane %v3034, 6
        %v3136 = vsel %vm2838, %v3134, %v3135
        %v3137 = vrot.slane %v3135, 4
        %v3138 = vrot.slane %v3035, 6
        %v3139 = vsel %vm2838, %v3137, %v3138
        %v3140 = vrot.slane %v3138, 4
        %v3141 = vrot.slane %v3036, 6
        %v3142 = vsel %vm2838, %v3140, %v3141
        %v3143 = vrot.slane %v3141, 4
        %v3144 = vrot.slane %v3037, 6
        %v3145 = vsel %vm2838, %v3143, %v3144
        %v3146 = vrot.slane %v3144, 4
        %v3147 = vrot.slane %v3038, 6
        %v3148 = vsel %vm2838, %v3146, %v3147
        %v3149 = vrot.slane %v3147, 4
        %v3150 = vrot.slane %v3039, 6
        %v3151 = vsel %vm2838, %v3149, %v3150
        %v3152 = vrot.slane %v3150, 4
        %v3153 = vrot.slane %v3040, 6
        %v3154 = vsel %vm2838, %v3152, %v3153
        %v3155 = vrot.slane %v3153, 4
        %v3156 = vrot.slane %v3041, 6
        %v3157 = vsel %vm2838, %v3155, %v3156
        %v3158 = vrot.slane %v3156, 4
        %v3159 = vrot.slane %v3042, 6
        %v3160 = vsel %vm2838, %v3158, %v3159
        %v3161 = vrot.slane %v3159, 4
        %v3162 = vrot.slane %v3043, 6
        %v3163 = vsel %vm2838, %v3161, %v3162
        %v3164 = vrot.slane %v3162, 4
        %v3165 = vrot.slane %v3044, 6
        %v3166 = vsel %vm2838, %v3164, %v3165
        %v3167 = vrot.slane %v3165, 4
        %v3168 = vrot.slane %v3045, 6
        %v3169 = vsel %vm2838, %v3167, %v3168
        %v3170 = vrot.slane %v3168, 4
        %v3171 = vrot.slane %v3046, 6
        %v3172 = vsel %vm2838, %v3170, %v3171
        %v3173 = vrot.slane %v3171, 4
        %v3174 = vrot.slane %v3047, 6
        %v3175 = vsel %vm2838, %v3173, %v3174
        %v3176 = vrot.slane %v3174, 4
        %v3177 = vrot.slane %v3048, 6
        %v3178 = vsel %vm2838, %v3176, %v3177
        %v3179 = vrot.slane %v3177, 4
        %v3180 = vrot.slane %v3049, 6
        %v3181 = vsel %vm2838, %v3179, %v3180
        %v3182 = vrot.slane %v3180, 4
        %v3183 = vrot.slane %v3050, 6
        %v3184 = vsel %vm2838, %v3182, %v3183
        %v3185 = vrot.slane %v3183, 4
        %v3186 = vrot.slane %v3051, 6
        %v3187 = vsel %vm2838, %v3185, %v3186
        %v3188 = vrot.slane %v3186, 4
        %v3189 = vrot.slane %v3052, 6
        %v3190 = vsel %vm2838, %v3188, %v3189
        %v3191 = vrot.slane %v3189, 4
        %v3192 = vrot.slane %v3053, 6
        %v3193 = vsel %vm2838, %v3191, %v3192
        %v3194 = vrot.slane %v3192, 4
        %v3195 = vrot.slane %v3054, 6
        %v3196 = vsel %vm2838, %v3194, %v3195
        %v3197 = vrot.slane %v3195, 4
        %v3198 = vrot.slane %v3055, 6
        %v3199 = vsel %vm2838, %v3197, %v3198
        %v3200 = vrot.slane %v3198, 4
        %v3201 = vrot.slane %v3056, 6
        %v3202 = vsel %vm2838, %v3200, %v3201
        %3239 = vst [vmem:[#allocation3 + $0x18] sm:$0xf] %v3097
        %3240 = vst [vmem:[#allocation3 + $0x3c] sm:$0xf] %v3100
        %3241 = vst [vmem:[#allocation3 + $0x60] sm:$0xf] %v3103
        %3242 = vst [vmem:[#allocation3 + $0x84] sm:$0xf] %v3106
        %3243 = vst [vmem:[#allocation3 + $0xa8] sm:$0xf] %v3109
        %3244 = vst [vmem:[#allocation3 + $0xcc] sm:$0xf] %v3112
        %3245 = vst [vmem:[#allocation3 + $0xf0] sm:$0xf] %v3115
        %3246 = vst [vmem:[#allocation3 + $0x114] sm:$0xf] %v3118
        %3247 = vst [vmem:[#allocation3 + $0x138] sm:$0xf] %v3121
        %3248 = vst [vmem:[#allocation3 + $0x15c] sm:$0xf] %v3124
        %3249 = vst [vmem:[#allocation3 + $0x180] sm:$0xf] %v3127
        %3250 = vst [vmem:[#allocation3 + $0x1a4] sm:$0xf] %v3130
        %3251 = vst [vmem:[#allocation3 + $0x1c8] sm:$0xf] %v3133
        %3252 = vst [vmem:[#allocation3 + $0x1ec] sm:$0xf] %v3136
        %3253 = vst [vmem:[#allocation3 + $0x210] sm:$0xf] %v3139
        %3254 = vst [vmem:[#allocation3 + $0x234] sm:$0xf] %v3142
        %3255 = vst [vmem:[#allocation3 + $0x258] sm:$0xf] %v3145
        %3256 = vst [vmem:[#allocation3 + $0x27c] sm:$0xf] %v3148
        %3257 = vst [vmem:[#allocation3 + $0x2a0] sm:$0xf] %v3151
        %3258 = vst [vmem:[#allocation3 + $0x2c4] sm:$0xf] %v3154
        %3259 = vst [vmem:[#allocation3 + $0x2e8] sm:$0xf] %v3157
        %3260 = vst [vmem:[#allocation3 + $0x30c] sm:$0xf] %v3160
        %3261 = vst [vmem:[#allocation3 + $0x330] sm:$0xf] %v3163
        %3262 = vst [vmem:[#allocation3 + $0x354] sm:$0xf] %v3166
        %3263 = vst [vmem:[#allocation3 + $0x378] sm:$0xf] %v3169
        %3264 = vst [vmem:[#allocation3 + $0x39c] sm:$0xf] %v3172
        %3265 = vst [vmem:[#allocation3 + $0x3c0] sm:$0xf] %v3175
        %3266 = vst [vmem:[#allocation3 + $0x3e4] sm:$0xf] %v3178
        %3267 = vst [vmem:[#allocation3 + $0x408] sm:$0xf] %v3181
        %3268 = vst [vmem:[#allocation3 + $0x42c] sm:$0xf] %v3184
        %3269 = vst [vmem:[#allocation3 + $0x450] sm:$0xf] %v3187
        %3270 = vst [vmem:[#allocation3 + $0x474] sm:$0xf] %v3190
        %3271 = vst [vmem:[#allocation3 + $0x498] sm:$0xf] %v3193
        %3272 = vst [vmem:[#allocation3 + $0x4bc] sm:$0xf] %v3196
        %3273 = vst [vmem:[#allocation3 + $0x4e0] sm:$0xf] %v3199
        %3274 = vst [vmem:[#allocation3 + $0x504] sm:$0xf] %v3202
        %v3275 = vld [vmem:[#allocation2 + $0x10] sm:$0xc]
        %v3276 = vld [vmem:[#allocation2 + $0x14] sm:$0xf]
        %v3277 = vld [vmem:[#allocation2 + $0x18] sm:$0xf]
        %v3278 = vld [vmem:[#allocation2 + $0x1c] sm:$0xf]
        %v3279 = vld [vmem:[#allocation2 + $0x20] sm:$0xf]
        %v3280 = vld [vmem:[#allocation2 + $0x24] sm:$0xf]
        %v3281 = vld [vmem:[#allocation2 + $0x28] sm:$0xf]
        %v3282 = vld [vmem:[#allocation2 + $0x2c] sm:$0xf]
        %v3283 = vld [vmem:[#allocation2 + $0x30] sm:$0xf]
        %v3284 = vld [vmem:[#allocation2 + $0x34] sm:$0xf]
        %v3285 = vld [vmem:[#allocation2 + $0x38] sm:$0xf]
        %v3286 = vld [vmem:[#allocation2 + $0x3c] sm:$0xf]
        %v3287 = vld [vmem:[#allocation2 + $0x40] sm:$0xf]
        %v3288 = vld [vmem:[#allocation2 + $0x44] sm:$0xf]
        %v3289 = vld [vmem:[#allocation2 + $0x48] sm:$0xf]
        %v3290 = vld [vmem:[#allocation2 + $0x4c] sm:$0xf]
        %v3291 = vld [vmem:[#allocation2 + $0x50] sm:$0xf]
        %v3292 = vld [vmem:[#allocation2 + $0x54] sm:$0xf]
        %v3293 = vld [vmem:[#allocation2 + $0x58] sm:$0xf]
        %v3294 = vld [vmem:[#allocation2 + $0x5c] sm:$0xf]
        %v3295 = vld [vmem:[#allocation2 + $0x60] sm:$0xf]
        %v3296 = vld [vmem:[#allocation2 + $0x64] sm:$0xf]
        %v3297 = vld [vmem:[#allocation2 + $0x68] sm:$0xf]
        %v3298 = vld [vmem:[#allocation2 + $0x6c] sm:$0xf]
        %v3299 = vld [vmem:[#allocation2 + $0x70] sm:$0xf]
        %v3300 = vld [vmem:[#allocation2 + $0x74] sm:$0xf]
        %v3301 = vld [vmem:[#allocation2 + $0x78] sm:$0xf]
        %v3302 = vld [vmem:[#allocation2 + $0x7c] sm:$0xf]
        %v3303 = vld [vmem:[#allocation2 + $0x80] sm:$0xf]
        %v3304 = vld [vmem:[#allocation2 + $0x84] sm:$0xf]
        %v3305 = vld [vmem:[#allocation2 + $0x88] sm:$0xf]
        %v3306 = vld [vmem:[#allocation2 + $0x8c] sm:$0xf]
        %v3307 = vld [vmem:[#allocation2 + $0x90] sm:$0xf]
        %v3308 = vld [vmem:[#allocation2 + $0x94] sm:$0xf]
        %v3309 = vld [vmem:[#allocation2 + $0x98] sm:$0xf]
        %v3310 = vld [vmem:[#allocation2 + $0x9c] sm:$0xf]
        %v3311 = vld [vmem:[#allocation2 + $0xa0] sm:$0x7]
        %vm3312 = vsmask.f32 1280
        %vm3313 = vsmask.f32 5392
        %vm3314 = vmor %vm3312, %vm3313
        %v3316 = vshrl.u32 %v3275, 16
        %v3318 = vrot.slane %v3316, 6
        %v3319 = vshll.u32 %v3275, 16
        %v3321 = vrot.slane %v3319, 7
        %v3322 = vor.u32 %v3318, %v3321
        %v3323 = vrot.slane %v3322, 4
        %v3325 = vshrl.u32 %v3276, 16
        %v3327 = vrot.slane %v3325, 6
        %v3328 = vshll.u32 %v3276, 16
        %v3330 = vrot.slane %v3328, 7
        %v3331 = vor.u32 %v3327, %v3330
        %v3332 = vsel %vm3314, %v3323, %v3331
        %v3333 = vrot.slane %v3331, 4
        %v3335 = vshrl.u32 %v3277, 16
        %v3337 = vrot.slane %v3335, 6
        %v3338 = vshll.u32 %v3277, 16
        %v3340 = vrot.slane %v3338, 7
        %v3341 = vor.u32 %v3337, %v3340
        %v3342 = vsel %vm3314, %v3333, %v3341
        %v3343 = vrot.slane %v3341, 4
        %v3345 = vshrl.u32 %v3278, 16
        %v3347 = vrot.slane %v3345, 6
        %v3348 = vshll.u32 %v3278, 16
        %v3350 = vrot.slane %v3348, 7
        %v3351 = vor.u32 %v3347, %v3350
        %v3352 = vsel %vm3314, %v3343, %v3351
        %v3353 = vrot.slane %v3351, 4
        %v3355 = vshrl.u32 %v3279, 16
        %v3357 = vrot.slane %v3355, 6
        %v3358 = vshll.u32 %v3279, 16
        %v3360 = vrot.slane %v3358, 7
        %v3361 = vor.u32 %v3357, %v3360
        %v3362 = vsel %vm3314, %v3353, %v3361
        %v3363 = vrot.slane %v3361, 4
        %v3365 = vshrl.u32 %v3280, 16
        %v3367 = vrot.slane %v3365, 6
        %v3368 = vshll.u32 %v3280, 16
        %v3370 = vrot.slane %v3368, 7
        %v3371 = vor.u32 %v3367, %v3370
        %v3372 = vsel %vm3314, %v3363, %v3371
        %v3373 = vrot.slane %v3371, 4
        %v3375 = vshrl.u32 %v3281, 16
        %v3377 = vrot.slane %v3375, 6
        %v3378 = vshll.u32 %v3281, 16
        %v3380 = vrot.slane %v3378, 7
        %v3381 = vor.u32 %v3377, %v3380
        %v3382 = vsel %vm3314, %v3373, %v3381
        %v3383 = vrot.slane %v3381, 4
        %v3385 = vshrl.u32 %v3282, 16
        %v3387 = vrot.slane %v3385, 6
        %v3388 = vshll.u32 %v3282, 16
        %v3390 = vrot.slane %v3388, 7
        %v3391 = vor.u32 %v3387, %v3390
        %v3392 = vsel %vm3314, %v3383, %v3391
        %v3393 = vrot.slane %v3391, 4
        %v3395 = vshrl.u32 %v3283, 16
        %v3397 = vrot.slane %v3395, 6
        %v3398 = vshll.u32 %v3283, 16
        %v3400 = vrot.slane %v3398, 7
        %v3401 = vor.u32 %v3397, %v3400
        %v3402 = vsel %vm3314, %v3393, %v3401
        %v3403 = vrot.slane %v3401, 4
        %v3405 = vshrl.u32 %v3284, 16
        %v3407 = vrot.slane %v3405, 6
        %v3408 = vshll.u32 %v3284, 16
        %v3410 = vrot.slane %v3408, 7
        %v3411 = vor.u32 %v3407, %v3410
        %v3412 = vsel %vm3314, %v3403, %v3411
        %v3413 = vrot.slane %v3411, 4
        %v3415 = vshrl.u32 %v3285, 16
        %v3417 = vrot.slane %v3415, 6
        %v3418 = vshll.u32 %v3285, 16
        %v3420 = vrot.slane %v3418, 7
        %v3421 = vor.u32 %v3417, %v3420
        %v3422 = vsel %vm3314, %v3413, %v3421
        %v3423 = vrot.slane %v3421, 4
        %v3425 = vshrl.u32 %v3286, 16
        %v3427 = vrot.slane %v3425, 6
        %v3428 = vshll.u32 %v3286, 16
        %v3430 = vrot.slane %v3428, 7
        %v3431 = vor.u32 %v3427, %v3430
        %v3432 = vsel %vm3314, %v3423, %v3431
        %v3433 = vrot.slane %v3431, 4
        %v3435 = vshrl.u32 %v3287, 16
        %v3437 = vrot.slane %v3435, 6
        %v3438 = vshll.u32 %v3287, 16
        %v3440 = vrot.slane %v3438, 7
        %v3441 = vor.u32 %v3437, %v3440
        %v3442 = vsel %vm3314, %v3433, %v3441
        %v3443 = vrot.slane %v3441, 4
        %v3445 = vshrl.u32 %v3288, 16
        %v3447 = vrot.slane %v3445, 6
        %v3448 = vshll.u32 %v3288, 16
        %v3450 = vrot.slane %v3448, 7
        %v3451 = vor.u32 %v3447, %v3450
        %v3452 = vsel %vm3314, %v3443, %v3451
        %v3453 = vrot.slane %v3451, 4
        %v3455 = vshrl.u32 %v3289, 16
        %v3457 = vrot.slane %v3455, 6
        %v3458 = vshll.u32 %v3289, 16
        %v3460 = vrot.slane %v3458, 7
        %v3461 = vor.u32 %v3457, %v3460
        %v3462 = vsel %vm3314, %v3453, %v3461
        %v3463 = vrot.slane %v3461, 4
        %v3465 = vshrl.u32 %v3290, 16
        %v3467 = vrot.slane %v3465, 6
        %v3468 = vshll.u32 %v3290, 16
        %v3470 = vrot.slane %v3468, 7
        %v3471 = vor.u32 %v3467, %v3470
        %v3472 = vsel %vm3314, %v3463, %v3471
        %v3473 = vrot.slane %v3471, 4
        %v3475 = vshrl.u32 %v3291, 16
        %v3477 = vrot.slane %v3475, 6
        %v3478 = vshll.u32 %v3291, 16
        %v3480 = vrot.slane %v3478, 7
        %v3481 = vor.u32 %v3477, %v3480
        %v3482 = vsel %vm3314, %v3473, %v3481
        %v3483 = vrot.slane %v3481, 4
        %v3485 = vshrl.u32 %v3292, 16
        %v3487 = vrot.slane %v3485, 6
        %v3488 = vshll.u32 %v3292, 16
        %v3490 = vrot.slane %v3488, 7
        %v3491 = vor.u32 %v3487, %v3490
        %v3492 = vsel %vm3314, %v3483, %v3491
        %v3493 = vrot.slane %v3491, 4
        %v3495 = vshrl.u32 %v3293, 16
        %v3497 = vrot.slane %v3495, 6
        %v3498 = vshll.u32 %v3293, 16
        %v3500 = vrot.slane %v3498, 7
        %v3501 = vor.u32 %v3497, %v3500
        %v3502 = vsel %vm3314, %v3493, %v3501
        %v3503 = vrot.slane %v3501, 4
        %v3505 = vshrl.u32 %v3294, 16
        %v3507 = vrot.slane %v3505, 6
        %v3508 = vshll.u32 %v3294, 16
        %v3510 = vrot.slane %v3508, 7
        %v3511 = vor.u32 %v3507, %v3510
        %v3512 = vsel %vm3314, %v3503, %v3511
        %v3513 = vrot.slane %v3511, 4
        %v3515 = vshrl.u32 %v3295, 16
        %v3517 = vrot.slane %v3515, 6
        %v3518 = vshll.u32 %v3295, 16
        %v3520 = vrot.slane %v3518, 7
        %v3521 = vor.u32 %v3517, %v3520
        %v3522 = vsel %vm3314, %v3513, %v3521
        %v3523 = vrot.slane %v3521, 4
        %v3525 = vshrl.u32 %v3296, 16
        %v3527 = vrot.slane %v3525, 6
        %v3528 = vshll.u32 %v3296, 16
        %v3530 = vrot.slane %v3528, 7
        %v3531 = vor.u32 %v3527, %v3530
        %v3532 = vsel %vm3314, %v3523, %v3531
        %v3533 = vrot.slane %v3531, 4
        %v3535 = vshrl.u32 %v3297, 16
        %v3537 = vrot.slane %v3535, 6
        %v3538 = vshll.u32 %v3297, 16
        %v3540 = vrot.slane %v3538, 7
        %v3541 = vor.u32 %v3537, %v3540
        %v3542 = vsel %vm3314, %v3533, %v3541
        %v3543 = vrot.slane %v3541, 4
        %v3545 = vshrl.u32 %v3298, 16
        %v3547 = vrot.slane %v3545, 6
        %v3548 = vshll.u32 %v3298, 16
        %v3550 = vrot.slane %v3548, 7
        %v3551 = vor.u32 %v3547, %v3550
        %v3552 = vsel %vm3314, %v3543, %v3551
        %v3553 = vrot.slane %v3551, 4
        %v3555 = vshrl.u32 %v3299, 16
        %v3557 = vrot.slane %v3555, 6
        %v3558 = vshll.u32 %v3299, 16
        %v3560 = vrot.slane %v3558, 7
        %v3561 = vor.u32 %v3557, %v3560
        %v3562 = vsel %vm3314, %v3553, %v3561
        %v3563 = vrot.slane %v3561, 4
        %v3565 = vshrl.u32 %v3300, 16
        %v3567 = vrot.slane %v3565, 6
        %v3568 = vshll.u32 %v3300, 16
        %v3570 = vrot.slane %v3568, 7
        %v3571 = vor.u32 %v3567, %v3570
        %v3572 = vsel %vm3314, %v3563, %v3571
        %v3573 = vrot.slane %v3571, 4
        %v3575 = vshrl.u32 %v3301, 16
        %v3577 = vrot.slane %v3575, 6
        %v3578 = vshll.u32 %v3301, 16
        %v3580 = vrot.slane %v3578, 7
        %v3581 = vor.u32 %v3577, %v3580
        %v3582 = vsel %vm3314, %v3573, %v3581
        %v3583 = vrot.slane %v3581, 4
        %v3585 = vshrl.u32 %v3302, 16
        %v3587 = vrot.slane %v3585, 6
        %v3588 = vshll.u32 %v3302, 16
        %v3590 = vrot.slane %v3588, 7
        %v3591 = vor.u32 %v3587, %v3590
        %v3592 = vsel %vm3314, %v3583, %v3591
        %v3593 = vrot.slane %v3591, 4
        %v3595 = vshrl.u32 %v3303, 16
        %v3597 = vrot.slane %v3595, 6
        %v3598 = vshll.u32 %v3303, 16
        %v3600 = vrot.slane %v3598, 7
        %v3601 = vor.u32 %v3597, %v3600
        %v3602 = vsel %vm3314, %v3593, %v3601
        %v3603 = vrot.slane %v3601, 4
        %v3605 = vshrl.u32 %v3304, 16
        %v3607 = vrot.slane %v3605, 6
        %v3608 = vshll.u32 %v3304, 16
        %v3610 = vrot.slane %v3608, 7
        %v3611 = vor.u32 %v3607, %v3610
        %v3612 = vsel %vm3314, %v3603, %v3611
        %v3613 = vrot.slane %v3611, 4
        %v3615 = vshrl.u32 %v3305, 16
        %v3617 = vrot.slane %v3615, 6
        %v3618 = vshll.u32 %v3305, 16
        %v3620 = vrot.slane %v3618, 7
        %v3621 = vor.u32 %v3617, %v3620
        %v3622 = vsel %vm3314, %v3613, %v3621
        %v3623 = vrot.slane %v3621, 4
        %v3625 = vshrl.u32 %v3306, 16
        %v3627 = vrot.slane %v3625, 6
        %v3628 = vshll.u32 %v3306, 16
        %v3630 = vrot.slane %v3628, 7
        %v3631 = vor.u32 %v3627, %v3630
        %v3632 = vsel %vm3314, %v3623, %v3631
        %v3633 = vrot.slane %v3631, 4
        %v3635 = vshrl.u32 %v3307, 16
        %v3637 = vrot.slane %v3635, 6
        %v3638 = vshll.u32 %v3307, 16
        %v3640 = vrot.slane %v3638, 7
        %v3641 = vor.u32 %v3637, %v3640
        %v3642 = vsel %vm3314, %v3633, %v3641
        %v3643 = vrot.slane %v3641, 4
        %v3645 = vshrl.u32 %v3308, 16
        %v3647 = vrot.slane %v3645, 6
        %v3648 = vshll.u32 %v3308, 16
        %v3650 = vrot.slane %v3648, 7
        %v3651 = vor.u32 %v3647, %v3650
        %v3652 = vsel %vm3314, %v3643, %v3651
        %v3653 = vrot.slane %v3651, 4
        %v3655 = vshrl.u32 %v3309, 16
        %v3657 = vrot.slane %v3655, 6
        %v3658 = vshll.u32 %v3309, 16
        %v3660 = vrot.slane %v3658, 7
        %v3661 = vor.u32 %v3657, %v3660
        %v3662 = vsel %vm3314, %v3653, %v3661
        %v3663 = vrot.slane %v3661, 4
        %v3665 = vshrl.u32 %v3310, 16
        %v3667 = vrot.slane %v3665, 6
        %v3668 = vshll.u32 %v3310, 16
        %v3670 = vrot.slane %v3668, 7
        %v3671 = vor.u32 %v3667, %v3670
        %v3672 = vsel %vm3314, %v3663, %v3671
        %v3673 = vrot.slane %v3671, 4
        %v3675 = vshrl.u32 %v3311, 16
        %v3677 = vrot.slane %v3675, 6
        %v3678 = vshll.u32 %v3311, 16
        %v3680 = vrot.slane %v3678, 7
        %v3681 = vor.u32 %v3677, %v3680
        %v3682 = vsel %vm3314, %v3673, %v3681
        %3719 = vst [vmem:[#allocation3 + $0x1c] sm:$0xf] %v3332
        %3720 = vst [vmem:[#allocation3 + $0x40] sm:$0xf] %v3342
        %3721 = vst [vmem:[#allocation3 + $0x64] sm:$0xf] %v3352
        %3722 = vst [vmem:[#allocation3 + $0x88] sm:$0xf] %v3362
        %3723 = vst [vmem:[#allocation3 + $0xac] sm:$0xf] %v3372
        %3724 = vst [vmem:[#allocation3 + $0xd0] sm:$0xf] %v3382
        %3725 = vst [vmem:[#allocation3 + $0xf4] sm:$0xf] %v3392
        %3726 = vst [vmem:[#allocation3 + $0x118] sm:$0xf] %v3402
        %3727 = vst [vmem:[#allocation3 + $0x13c] sm:$0xf] %v3412
        %3728 = vst [vmem:[#allocation3 + $0x160] sm:$0xf] %v3422
        %3729 = vst [vmem:[#allocation3 + $0x184] sm:$0xf] %v3432
        %3730 = vst [vmem:[#allocation3 + $0x1a8] sm:$0xf] %v3442
        %3731 = vst [vmem:[#allocation3 + $0x1cc] sm:$0xf] %v3452
        %3732 = vst [vmem:[#allocation3 + $0x1f0] sm:$0xf] %v3462
        %3733 = vst [vmem:[#allocation3 + $0x214] sm:$0xf] %v3472
        %3734 = vst [vmem:[#allocation3 + $0x238] sm:$0xf] %v3482
        %3735 = vst [vmem:[#allocation3 + $0x25c] sm:$0xf] %v3492
        %3736 = vst [vmem:[#allocation3 + $0x280] sm:$0xf] %v3502
        %3737 = vst [vmem:[#allocation3 + $0x2a4] sm:$0xf] %v3512
        %3738 = vst [vmem:[#allocation3 + $0x2c8] sm:$0xf] %v3522
        %3739 = vst [vmem:[#allocation3 + $0x2ec] sm:$0xf] %v3532
        %3740 = vst [vmem:[#allocation3 + $0x310] sm:$0xf] %v3542
        %3741 = vst [vmem:[#allocation3 + $0x334] sm:$0xf] %v3552
        %3742 = vst [vmem:[#allocation3 + $0x358] sm:$0xf] %v3562
        %3743 = vst [vmem:[#allocation3 + $0x37c] sm:$0xf] %v3572
        %3744 = vst [vmem:[#allocation3 + $0x3a0] sm:$0xf] %v3582
        %3745 = vst [vmem:[#allocation3 + $0x3c4] sm:$0xf] %v3592
        %3746 = vst [vmem:[#allocation3 + $0x3e8] sm:$0xf] %v3602
        %3747 = vst [vmem:[#allocation3 + $0x40c] sm:$0xf] %v3612
        %3748 = vst [vmem:[#allocation3 + $0x430] sm:$0xf] %v3622
        %3749 = vst [vmem:[#allocation3 + $0x454] sm:$0xf] %v3632
        %3750 = vst [vmem:[#allocation3 + $0x478] sm:$0xf] %v3642
        %3751 = vst [vmem:[#allocation3 + $0x49c] sm:$0xf] %v3652
        %3752 = vst [vmem:[#allocation3 + $0x4c0] sm:$0xf] %v3662
        %3753 = vst [vmem:[#allocation3 + $0x4e4] sm:$0xf] %v3672
        %3754 = vst [vmem:[#allocation3 + $0x508] sm:$0xf] %v3682
        %v3755 = vld [vmem:[#allocation2 + $0x10] sm:$0x8]
        %v3756 = vld [vmem:[#allocation2 + $0x14] sm:$0xf]
        %v3757 = vld [vmem:[#allocation2 + $0x18] sm:$0xf]
        %v3758 = vld [vmem:[#allocation2 + $0x1c] sm:$0xf]
        %v3759 = vld [vmem:[#allocation2 + $0x20] sm:$0xf]
        %v3760 = vld [vmem:[#allocation2 + $0x24] sm:$0xf]
        %v3761 = vld [vmem:[#allocation2 + $0x28] sm:$0xf]
        %v3762 = vld [vmem:[#allocation2 + $0x2c] sm:$0xf]
        %v3763 = vld [vmem:[#allocation2 + $0x30] sm:$0xf]
        %v3764 = vld [vmem:[#allocation2 + $0x34] sm:$0xf]
        %v3765 = vld [vmem:[#allocation2 + $0x38] sm:$0xf]
        %v3766 = vld [vmem:[#allocation2 + $0x3c] sm:$0xf]
        %v3767 = vld [vmem:[#allocation2 + $0x40] sm:$0xf]
        %v3768 = vld [vmem:[#allocation2 + $0x44] sm:$0xf]
        %v3769 = vld [vmem:[#allocation2 + $0x48] sm:$0xf]
        %v3770 = vld [vmem:[#allocation2 + $0x4c] sm:$0xf]
        %v3771 = vld [vmem:[#allocation2 + $0x50] sm:$0xf]
        %v3772 = vld [vmem:[#allocation2 + $0x54] sm:$0xf]
        %v3773 = vld [vmem:[#allocation2 + $0x58] sm:$0xf]
        %v3774 = vld [vmem:[#allocation2 + $0x5c] sm:$0xf]
        %v3775 = vld [vmem:[#allocation2 + $0x60] sm:$0xf]
        %v3776 = vld [vmem:[#allocation2 + $0x64] sm:$0xf]
        %v3777 = vld [vmem:[#allocation2 + $0x68] sm:$0xf]
        %v3778 = vld [vmem:[#allocation2 + $0x6c] sm:$0xf]
        %v3779 = vld [vmem:[#allocation2 + $0x70] sm:$0xf]
        %v3780 = vld [vmem:[#allocation2 + $0x74] sm:$0xf]
        %v3781 = vld [vmem:[#allocation2 + $0x78] sm:$0xf]
        %v3782 = vld [vmem:[#allocation2 + $0x7c] sm:$0xf]
        %v3783 = vld [vmem:[#allocation2 + $0x80] sm:$0xf]
        %v3784 = vld [vmem:[#allocation2 + $0x84] sm:$0xf]
        %v3785 = vld [vmem:[#allocation2 + $0x88] sm:$0xf]
        %v3786 = vld [vmem:[#allocation2 + $0x8c] sm:$0xf]
        %v3787 = vld [vmem:[#allocation2 + $0x90] sm:$0xf]
        %v3788 = vld [vmem:[#allocation2 + $0x94] sm:$0xf]
        %v3789 = vld [vmem:[#allocation2 + $0x98] sm:$0xf]
        %v3790 = vld [vmem:[#allocation2 + $0x9c] sm:$0xf]
        %v3791 = vld [vmem:[#allocation2 + $0xa0] sm:$0x7]
        %vm3829 = vcmask 1040384
        %vm3830 = vcmask 1044484
        %vm3831 = vmor %vm3829, %vm3830
        %v3832 = vrot.slane %v3755, 7
        %v3833 = vrot.slane %v3832, 4
        %v3834 = vrot.slane %v3756, 7
        %v3835 = vsel %vm3831, %v3833, %v3834
        %v3836 = vrot.slane %v3834, 4
        %v3837 = vrot.slane %v3757, 7
        %v3838 = vsel %vm3831, %v3836, %v3837
        %v3839 = vrot.slane %v3837, 4
        %v3840 = vrot.slane %v3758, 7
        %v3841 = vsel %vm3831, %v3839, %v3840
        %v3842 = vrot.slane %v3840, 4
        %v3843 = vrot.slane %v3759, 7
        %v3844 = vsel %vm3831, %v3842, %v3843
        %v3845 = vrot.slane %v3843, 4
        %v3846 = vrot.slane %v3760, 7
        %v3847 = vsel %vm3831, %v3845, %v3846
        %v3848 = vrot.slane %v3846, 4
        %v3849 = vrot.slane %v3761, 7
        %v3850 = vsel %vm3831, %v3848, %v3849
        %v3851 = vrot.slane %v3849, 4
        %v3852 = vrot.slane %v3762, 7
        %v3853 = vsel %vm3831, %v3851, %v3852
        %v3854 = vrot.slane %v3852, 4
        %v3855 = vrot.slane %v3763, 7
        %v3856 = vsel %vm3831, %v3854, %v3855
        %v3857 = vrot.slane %v3855, 4
        %v3858 = vrot.slane %v3764, 7
        %v3859 = vsel %vm3831, %v3857, %v3858
        %v3860 = vrot.slane %v3858, 4
        %v3861 = vrot.slane %v3765, 7
        %v3862 = vsel %vm3831, %v3860, %v3861
        %v3863 = vrot.slane %v3861, 4
        %v3864 = vrot.slane %v3766, 7
        %v3865 = vsel %vm3831, %v3863, %v3864
        %v3866 = vrot.slane %v3864, 4
        %v3867 = vrot.slane %v3767, 7
        %v3868 = vsel %vm3831, %v3866, %v3867
        %v3869 = vrot.slane %v3867, 4
        %v3870 = vrot.slane %v3768, 7
        %v3871 = vsel %vm3831, %v3869, %v3870
        %v3872 = vrot.slane %v3870, 4
        %v3873 = vrot.slane %v3769, 7
        %v3874 = vsel %vm3831, %v3872, %v3873
        %v3875 = vrot.slane %v3873, 4
        %v3876 = vrot.slane %v3770, 7
        %v3877 = vsel %vm3831, %v3875, %v3876
        %v3878 = vrot.slane %v3876, 4
        %v3879 = vrot.slane %v3771, 7
        %v3880 = vsel %vm3831, %v3878, %v3879
        %v3881 = vrot.slane %v3879, 4
        %v3882 = vrot.slane %v3772, 7
        %v3883 = vsel %vm3831, %v3881, %v3882
        %v3884 = vrot.slane %v3882, 4
        %v3885 = vrot.slane %v3773, 7
        %v3886 = vsel %vm3831, %v3884, %v3885
        %v3887 = vrot.slane %v3885, 4
        %v3888 = vrot.slane %v3774, 7
        %v3889 = vsel %vm3831, %v3887, %v3888
        %v3890 = vrot.slane %v3888, 4
        %v3891 = vrot.slane %v3775, 7
        %v3892 = vsel %vm3831, %v3890, %v3891
        %v3893 = vrot.slane %v3891, 4
        %v3894 = vrot.slane %v3776, 7
        %v3895 = vsel %vm3831, %v3893, %v3894
        %v3896 = vrot.slane %v3894, 4
        %v3897 = vrot.slane %v3777, 7
        %v3898 = vsel %vm3831, %v3896, %v3897
        %v3899 = vrot.slane %v3897, 4
        %v3900 = vrot.slane %v3778, 7
        %v3901 = vsel %vm3831, %v3899, %v3900
        %v3902 = vrot.slane %v3900, 4
        %v3903 = vrot.slane %v3779, 7
        %v3904 = vsel %vm3831, %v3902, %v3903
        %v3905 = vrot.slane %v3903, 4
        %v3906 = vrot.slane %v3780, 7
        %v3907 = vsel %vm3831, %v3905, %v3906
        %v3908 = vrot.slane %v3906, 4
        %v3909 = vrot.slane %v3781, 7
        %v3910 = vsel %vm3831, %v3908, %v3909
        %v3911 = vrot.slane %v3909, 4
        %v3912 = vrot.slane %v3782, 7
        %v3913 = vsel %vm3831, %v3911, %v3912
        %v3914 = vrot.slane %v3912, 4
        %v3915 = vrot.slane %v3783, 7
        %v3916 = vsel %vm3831, %v3914, %v3915
        %v3917 = vrot.slane %v3915, 4
        %v3918 = vrot.slane %v3784, 7
        %v3919 = vsel %vm3831, %v3917, %v3918
        %v3920 = vrot.slane %v3918, 4
        %v3921 = vrot.slane %v3785, 7
        %v3922 = vsel %vm3831, %v3920, %v3921
        %v3923 = vrot.slane %v3921, 4
        %v3924 = vrot.slane %v3786, 7
        %v3925 = vsel %vm3831, %v3923, %v3924
        %v3926 = vrot.slane %v3924, 4
        %v3927 = vrot.slane %v3787, 7
        %v3928 = vsel %vm3831, %v3926, %v3927
        %v3929 = vrot.slane %v3927, 4
        %v3930 = vrot.slane %v3788, 7
        %v3931 = vsel %vm3831, %v3929, %v3930
        %v3932 = vrot.slane %v3930, 4
        %v3933 = vrot.slane %v3789, 7
        %v3934 = vsel %vm3831, %v3932, %v3933
        %v3935 = vrot.slane %v3933, 4
        %v3936 = vrot.slane %v3790, 7
        %v3937 = vsel %vm3831, %v3935, %v3936
        %v3938 = vrot.slane %v3936, 4
        %v3939 = vrot.slane %v3791, 7
        %v3940 = vsel %vm3831, %v3938, %v3939
        %3977 = vst [vmem:[#allocation3 + $0x20] sm:$0xf] %v3835
        %3978 = vst [vmem:[#allocation3 + $0x44] sm:$0xf] %v3838
        %3979 = vst [vmem:[#allocation3 + $0x68] sm:$0xf] %v3841
        %3980 = vst [vmem:[#allocation3 + $0x8c] sm:$0xf] %v3844
        %3981 = vst [vmem:[#allocation3 + $0xb0] sm:$0xf] %v3847
        %3982 = vst [vmem:[#allocation3 + $0xd4] sm:$0xf] %v3850
        %3983 = vst [vmem:[#allocation3 + $0xf8] sm:$0xf] %v3853
        %3984 = vst [vmem:[#allocation3 + $0x11c] sm:$0xf] %v3856
        %3985 = vst [vmem:[#allocation3 + $0x140] sm:$0xf] %v3859
        %3986 = vst [vmem:[#allocation3 + $0x164] sm:$0xf] %v3862
        %3987 = vst [vmem:[#allocation3 + $0x188] sm:$0xf] %v3865
        %3988 = vst [vmem:[#allocation3 + $0x1ac] sm:$0xf] %v3868
        %3989 = vst [vmem:[#allocation3 + $0x1d0] sm:$0xf] %v3871
        %3990 = vst [vmem:[#allocation3 + $0x1f4] sm:$0xf] %v3874
        %3991 = vst [vmem:[#allocation3 + $0x218] sm:$0xf] %v3877
        %3992 = vst [vmem:[#allocation3 + $0x23c] sm:$0xf] %v3880
        %3993 = vst [vmem:[#allocation3 + $0x260] sm:$0xf] %v3883
        %3994 = vst [vmem:[#allocation3 + $0x284] sm:$0xf] %v3886
        %3995 = vst [vmem:[#allocation3 + $0x2a8] sm:$0xf] %v3889
        %3996 = vst [vmem:[#allocation3 + $0x2cc] sm:$0xf] %v3892
        %3997 = vst [vmem:[#allocation3 + $0x2f0] sm:$0xf] %v3895
        %3998 = vst [vmem:[#allocation3 + $0x314] sm:$0xf] %v3898
        %3999 = vst [vmem:[#allocation3 + $0x338] sm:$0xf] %v3901
        %4000 = vst [vmem:[#allocation3 + $0x35c] sm:$0xf] %v3904
        %4001 = vst [vmem:[#allocation3 + $0x380] sm:$0xf] %v3907
        %4002 = vst [vmem:[#allocation3 + $0x3a4] sm:$0xf] %v3910
        %4003 = vst [vmem:[#allocation3 + $0x3c8] sm:$0xf] %v3913
        %4004 = vst [vmem:[#allocation3 + $0x3ec] sm:$0xf] %v3916
        %4005 = vst [vmem:[#allocation3 + $0x410] sm:$0xf] %v3919
        %4006 = vst [vmem:[#allocation3 + $0x434] sm:$0xf] %v3922
        %4007 = vst [vmem:[#allocation3 + $0x458] sm:$0xf] %v3925
        %4008 = vst [vmem:[#allocation3 + $0x47c] sm:$0xf] %v3928
        %4009 = vst [vmem:[#allocation3 + $0x4a0] sm:$0xf] %v3931
        %4010 = vst [vmem:[#allocation3 + $0x4c4] sm:$0xf] %v3934
        %4011 = vst [vmem:[#allocation3 + $0x4e8] sm:$0xf] %v3937
        %4012 = vst [vmem:[#allocation3 + $0x50c] sm:$0xf] %v3940
        %v4013 = vld [vmem:[#allocation3] sm:$0xff]
        %v4014 = vld [vmem:[#allocation3 + $0x8] sm:$0xff]
        %v4015 = vld [vmem:[#allocation3 + $0x10] sm:$0xff]
        %v4016 = vld [vmem:[#allocation3 + $0x18] sm:$0xff]
        %v4017 = vld [vmem:[#allocation3 + $0x20] sm:$0xf]
        %v4018 = vld [vmem:[#allocation3 + $0x24] sm:$0xff]
        %v4019 = vld [vmem:[#allocation3 + $0x2c] sm:$0xff]
        %v4020 = vld [vmem:[#allocation3 + $0x34] sm:$0xff]
        %v4021 = vld [vmem:[#allocation3 + $0x3c] sm:$0xff]
        %v4022 = vld [vmem:[#allocation3 + $0x44] sm:$0xf]
        %v4023 = vld [vmem:[#allocation3 + $0x48] sm:$0xff]
        %v4024 = vld [vmem:[#allocation3 + $0x50] sm:$0xff]
        %v4025 = vld [vmem:[#allocation3 + $0x58] sm:$0xff]
        %v4026 = vld [vmem:[#allocation3 + $0x60] sm:$0xff]
        %v4027 = vld [vmem:[#allocation3 + $0x68] sm:$0xf]
        %v4028 = vld [vmem:[#allocation3 + $0x6c] sm:$0xff]
        %v4029 = vld [vmem:[#allocation3 + $0x74] sm:$0xff]
        %v4030 = vld [vmem:[#allocation3 + $0x7c] sm:$0xff]
        %v4031 = vld [vmem:[#allocation3 + $0x84] sm:$0xff]
        %v4032 = vld [vmem:[#allocation3 + $0x8c] sm:$0xf]
        %v4033 = vld [vmem:[#allocation3 + $0x90] sm:$0xff]
        %v4034 = vld [vmem:[#allocation3 + $0x98] sm:$0xff]
        %v4035 = vld [vmem:[#allocation3 + $0xa0] sm:$0xff]
        %v4036 = vld [vmem:[#allocation3 + $0xa8] sm:$0xff]
        %v4037 = vld [vmem:[#allocation3 + $0xb0] sm:$0xf]
        %v4038 = vld [vmem:[#allocation3 + $0xb4] sm:$0xff]
        %v4039 = vld [vmem:[#allocation3 + $0xbc] sm:$0xff]
        %v4040 = vld [vmem:[#allocation3 + $0xc4] sm:$0xff]
        %v4041 = vld [vmem:[#allocation3 + $0xcc] sm:$0xff]
        %v4042 = vld [vmem:[#allocation3 + $0xd4] sm:$0xf]
        %v4043 = vld [vmem:[#allocation3 + $0xd8] sm:$0xff]
        %v4044 = vld [vmem:[#allocation3 + $0xe0] sm:$0xff]
        %v4045 = vld [vmem:[#allocation3 + $0xe8] sm:$0xff]
        %v4046 = vld [vmem:[#allocation3 + $0xf0] sm:$0xff]
        %v4047 = vld [vmem:[#allocation3 + $0xf8] sm:$0xf]
        %v4048 = vld [vmem:[#allocation3 + $0xfc] sm:$0xff]
        %v4049 = vld [vmem:[#allocation3 + $0x104] sm:$0xff]
        %v4050 = vld [vmem:[#allocation3 + $0x10c] sm:$0xff]
        %v4051 = vld [vmem:[#allocation3 + $0x114] sm:$0xff]
        %v4052 = vld [vmem:[#allocation3 + $0x11c] sm:$0xf]
        %v4053 = vld [vmem:[#allocation3 + $0x120] sm:$0xff]
        %v4054 = vld [vmem:[#allocation3 + $0x128] sm:$0xff]
        %v4055 = vld [vmem:[#allocation3 + $0x130] sm:$0xff]
        %v4056 = vld [vmem:[#allocation3 + $0x138] sm:$0xff]
        %v4057 = vld [vmem:[#allocation3 + $0x140] sm:$0xf]
        %v4058 = vld [vmem:[#allocation3 + $0x144] sm:$0xff]
        %v4059 = vld [vmem:[#allocation3 + $0x14c] sm:$0xff]
        %v4060 = vld [vmem:[#allocation3 + $0x154] sm:$0xff]
        %v4061 = vld [vmem:[#allocation3 + $0x15c] sm:$0xff]
        %v4062 = vld [vmem:[#allocation3 + $0x164] sm:$0xf]
        %v4063 = vld [vmem:[#allocation3 + $0x168] sm:$0xff]
        %v4064 = vld [vmem:[#allocation3 + $0x170] sm:$0xff]
        %v4065 = vld [vmem:[#allocation3 + $0x178] sm:$0xff]
        %v4066 = vld [vmem:[#allocation3 + $0x180] sm:$0xff]
        %v4067 = vld [vmem:[#allocation3 + $0x188] sm:$0xf]
        %v4068 = vld [vmem:[#allocation3 + $0x18c] sm:$0xff]
        %v4069 = vld [vmem:[#allocation3 + $0x194] sm:$0xff]
        %v4070 = vld [vmem:[#allocation3 + $0x19c] sm:$0xff]
        %v4071 = vld [vmem:[#allocation3 + $0x1a4] sm:$0xff]
        %v4072 = vld [vmem:[#allocation3 + $0x1ac] sm:$0xf]
        %v4073 = vld [vmem:[#allocation3 + $0x1b0] sm:$0xff]
        %v4074 = vld [vmem:[#allocation3 + $0x1b8] sm:$0xff]
        %v4075 = vld [vmem:[#allocation3 + $0x1c0] sm:$0xff]
        %v4076 = vld [vmem:[#allocation3 + $0x1c8] sm:$0xff]
        %v4077 = vld [vmem:[#allocation3 + $0x1d0] sm:$0xf]
        %v4078 = vld [vmem:[#allocation3 + $0x1d4] sm:$0xff]
        %v4079 = vld [vmem:[#allocation3 + $0x1dc] sm:$0xff]
        %v4080 = vld [vmem:[#allocation3 + $0x1e4] sm:$0xff]
        %v4081 = vld [vmem:[#allocation3 + $0x1ec] sm:$0xff]
        %v4082 = vld [vmem:[#allocation3 + $0x1f4] sm:$0xf]
        %v4083 = vld [vmem:[#allocation3 + $0x1f8] sm:$0xff]
        %v4084 = vld [vmem:[#allocation3 + $0x200] sm:$0xff]
        %v4085 = vld [vmem:[#allocation3 + $0x208] sm:$0xff]
        %v4086 = vld [vmem:[#allocation3 + $0x210] sm:$0xff]
        %v4087 = vld [vmem:[#allocation3 + $0x218] sm:$0xf]
        %v4088 = vld [vmem:[#allocation3 + $0x21c] sm:$0xff]
        %v4089 = vld [vmem:[#allocation3 + $0x224] sm:$0xff]
        %v4090 = vld [vmem:[#allocation3 + $0x22c] sm:$0xff]
        %v4091 = vld [vmem:[#allocation3 + $0x234] sm:$0xff]
        %v4092 = vld [vmem:[#allocation3 + $0x23c] sm:$0xf]
        %v4093 = vld [vmem:[#allocation3 + $0x240] sm:$0xff]
        %v4094 = vld [vmem:[#allocation3 + $0x248] sm:$0xff]
        %v4095 = vld [vmem:[#allocation3 + $0x250] sm:$0xff]
        %v4096 = vld [vmem:[#allocation3 + $0x258] sm:$0xff]
        %v4097 = vld [vmem:[#allocation3 + $0x260] sm:$0xf]
        %v4098 = vld [vmem:[#allocation3 + $0x264] sm:$0xff]
        %v4099 = vld [vmem:[#allocation3 + $0x26c] sm:$0xff]
        %v4100 = vld [vmem:[#allocation3 + $0x274] sm:$0xff]
        %v4101 = vld [vmem:[#allocation3 + $0x27c] sm:$0xff]
        %v4102 = vld [vmem:[#allocation3 + $0x284] sm:$0xf]
        %v4103 = vld [vmem:[#allocation3 + $0x288] sm:$0xff]
        %v4104 = vld [vmem:[#allocation3 + $0x290] sm:$0xff]
        %v4105 = vld [vmem:[#allocation3 + $0x298] sm:$0xff]
        %v4106 = vld [vmem:[#allocation3 + $0x2a0] sm:$0xff]
        %v4107 = vld [vmem:[#allocation3 + $0x2a8] sm:$0xf]
        %v4108 = vld [vmem:[#allocation3 + $0x2ac] sm:$0xff]
        %v4109 = vld [vmem:[#allocation3 + $0x2b4] sm:$0xff]
        %v4110 = vld [vmem:[#allocation3 + $0x2bc] sm:$0xff]
        %v4111 = vld [vmem:[#allocation3 + $0x2c4] sm:$0xff]
        %v4112 = vld [vmem:[#allocation3 + $0x2cc] sm:$0xf]
        %v4113 = vld [vmem:[#allocation3 + $0x2d0] sm:$0xff]
        %v4114 = vld [vmem:[#allocation3 + $0x2d8] sm:$0xff]
        %v4115 = vld [vmem:[#allocation3 + $0x2e0] sm:$0xff]
        %v4116 = vld [vmem:[#allocation3 + $0x2e8] sm:$0xff]
        %v4117 = vld [vmem:[#allocation3 + $0x2f0] sm:$0xf]
        %v4118 = vld [vmem:[#allocation3 + $0x2f4] sm:$0xff]
        %v4119 = vld [vmem:[#allocation3 + $0x2fc] sm:$0xff]
        %v4120 = vld [vmem:[#allocation3 + $0x304] sm:$0xff]
        %v4121 = vld [vmem:[#allocation3 + $0x30c] sm:$0xff]
        %v4122 = vld [vmem:[#allocation3 + $0x314] sm:$0xf]
        %v4123 = vld [vmem:[#allocation3 + $0x318] sm:$0xff]
        %v4124 = vld [vmem:[#allocation3 + $0x320] sm:$0xff]
        %v4125 = vld [vmem:[#allocation3 + $0x328] sm:$0xff]
        %v4126 = vld [vmem:[#allocation3 + $0x330] sm:$0xff]
        %v4127 = vld [vmem:[#allocation3 + $0x338] sm:$0xf]
        %v4128 = vld [vmem:[#allocation3 + $0x33c] sm:$0xff]
        %v4129 = vld [vmem:[#allocation3 + $0x344] sm:$0xff]
        %v4130 = vld [vmem:[#allocation3 + $0x34c] sm:$0xff]
        %v4131 = vld [vmem:[#allocation3 + $0x354] sm:$0xff]
        %v4132 = vld [vmem:[#allocation3 + $0x35c] sm:$0xf]
        %v4133 = vld [vmem:[#allocation3 + $0x360] sm:$0xff]
        %v4134 = vld [vmem:[#allocation3 + $0x368] sm:$0xff]
        %v4135 = vld [vmem:[#allocation3 + $0x370] sm:$0xff]
        %v4136 = vld [vmem:[#allocation3 + $0x378] sm:$0xff]
        %v4137 = vld [vmem:[#allocation3 + $0x380] sm:$0xf]
        %v4138 = vld [vmem:[#allocation3 + $0x384] sm:$0xff]
        %v4139 = vld [vmem:[#allocation3 + $0x38c] sm:$0xff]
        %v4140 = vld [vmem:[#allocation3 + $0x394] sm:$0xff]
        %v4141 = vld [vmem:[#allocation3 + $0x39c] sm:$0xff]
        %v4142 = vld [vmem:[#allocation3 + $0x3a4] sm:$0xf]
        %v4143 = vld [vmem:[#allocation3 + $0x3a8] sm:$0xff]
        %v4144 = vld [vmem:[#allocation3 + $0x3b0] sm:$0xff]
        %v4145 = vld [vmem:[#allocation3 + $0x3b8] sm:$0xff]
        %v4146 = vld [vmem:[#allocation3 + $0x3c0] sm:$0xff]
        %v4147 = vld [vmem:[#allocation3 + $0x3c8] sm:$0xf]
        %v4148 = vld [vmem:[#allocation3 + $0x3cc] sm:$0xff]
        %v4149 = vld [vmem:[#allocation3 + $0x3d4] sm:$0xff]
        %v4150 = vld [vmem:[#allocation3 + $0x3dc] sm:$0xff]
        %v4151 = vld [vmem:[#allocation3 + $0x3e4] sm:$0xff]
        %v4152 = vld [vmem:[#allocation3 + $0x3ec] sm:$0xf]
        %v4153 = vld [vmem:[#allocation3 + $0x3f0] sm:$0xff]
        %v4154 = vld [vmem:[#allocation3 + $0x3f8] sm:$0xff]
        %v4155 = vld [vmem:[#allocation3 + $0x400] sm:$0xff]
        %v4156 = vld [vmem:[#allocation3 + $0x408] sm:$0xff]
        %v4157 = vld [vmem:[#allocation3 + $0x410] sm:$0xf]
        %v4158 = vld [vmem:[#allocation3 + $0x414] sm:$0xff]
        %v4159 = vld [vmem:[#allocation3 + $0x41c] sm:$0xff]
        %v4160 = vld [vmem:[#allocation3 + $0x424] sm:$0xff]
        %v4161 = vld [vmem:[#allocation3 + $0x42c] sm:$0xff]
        %v4162 = vld [vmem:[#allocation3 + $0x434] sm:$0xf]
        %v4163 = vld [vmem:[#allocation3 + $0x438] sm:$0xff]
        %v4164 = vld [vmem:[#allocation3 + $0x440] sm:$0xff]
        %v4165 = vld [vmem:[#allocation3 + $0x448] sm:$0xff]
        %v4166 = vld [vmem:[#allocation3 + $0x450] sm:$0xff]
        %v4167 = vld [vmem:[#allocation3 + $0x458] sm:$0xf]
        %v4168 = vld [vmem:[#allocation3 + $0x45c] sm:$0xff]
        %v4169 = vld [vmem:[#allocation3 + $0x464] sm:$0xff]
        %v4170 = vld [vmem:[#allocation3 + $0x46c] sm:$0xff]
        %v4171 = vld [vmem:[#allocation3 + $0x474] sm:$0xff]
        %v4172 = vld [vmem:[#allocation3 + $0x47c] sm:$0xf]
        %v4173 = vld [vmem:[#allocation3 + $0x480] sm:$0xff]
        %v4174 = vld [vmem:[#allocation3 + $0x488] sm:$0xff]
        %v4175 = vld [vmem:[#allocation3 + $0x490] sm:$0xff]
        %v4176 = vld [vmem:[#allocation3 + $0x498] sm:$0xff]
        %v4177 = vld [vmem:[#allocation3 + $0x4a0] sm:$0xf]
        %v4178 = vld [vmem:[#allocation3 + $0x4a4] sm:$0xff]
        %v4179 = vld [vmem:[#allocation3 + $0x4ac] sm:$0xff]
        %v4180 = vld [vmem:[#allocation3 + $0x4b4] sm:$0xff]
        %v4181 = vld [vmem:[#allocation3 + $0x4bc] sm:$0xff]
        %v4182 = vld [vmem:[#allocation3 + $0x4c4] sm:$0xf]
        %v4183 = vld [vmem:[#allocation3 + $0x4c8] sm:$0xff]
        %v4184 = vld [vmem:[#allocation3 + $0x4d0] sm:$0xff]
        %v4185 = vld [vmem:[#allocation3 + $0x4d8] sm:$0xff]
        %v4186 = vld [vmem:[#allocation3 + $0x4e0] sm:$0xff]
        %v4187 = vld [vmem:[#allocation3 + $0x4e8] sm:$0xf]
        %v4188 = vld [vmem:[#allocation3 + $0x4ec] sm:$0xff]
        %v4189 = vld [vmem:[#allocation3 + $0x4f4] sm:$0xff]
        %v4190 = vld [vmem:[#allocation3 + $0x4fc] sm:$0xff]
        %v4191 = vld [vmem:[#allocation3 + $0x504] sm:$0xff]
        %v4192 = vld [vmem:[#allocation3 + $0x50c] sm:$0xf]
        %v4193 = vld [vmem:[#allocation7] sm:$0xf]
        %v4194 = vld [vmem:[#allocation7 + $0x4] sm:$0xf]
        %v4195 = vld [vmem:[#allocation7 + $0x8] sm:$0xf]
        %v4196 = vld [vmem:[#allocation7 + $0xc] sm:$0xf]
        %v4197 = vld [vmem:[#allocation7 + $0x10] sm:$0xf]
        %v4198 = vld [vmem:[#allocation7 + $0x14] sm:$0xf]
        %v4199 = vld [vmem:[#allocation7 + $0x18] sm:$0xf]
        %v4200 = vld [vmem:[#allocation7 + $0x1c] sm:$0xf]
        %v4201 = vld [vmem:[#allocation7 + $0x20] sm:$0xf]
        %v4202 = vld [vmem:[#allocation7 + $0x24] sm:$0xf]
        %v4203 = vld [vmem:[#allocation7 + $0x28] sm:$0xf]
        %v4204 = vld [vmem:[#allocation7 + $0x2c] sm:$0xf]
        %v4205 = vld [vmem:[#allocation7 + $0x30] sm:$0xf]
        %v4206 = vld [vmem:[#allocation7 + $0x34] sm:$0xf]
        %v4207 = vld [vmem:[#allocation7 + $0x38] sm:$0xf]
        %v4208 = vld [vmem:[#allocation7 + $0x3c] sm:$0xf]
        %v4209 = vld [vmem:[#allocation7 + $0x40] sm:$0xf]
        %v4210 = vld [vmem:[#allocation7 + $0x44] sm:$0xf]
        %v4211 = vld [vmem:[#allocation7 + $0x48] sm:$0xf]
        %v4212 = vld [vmem:[#allocation7 + $0x4c] sm:$0xf]
        %v4213 = vld [vmem:[#allocation7 + $0x50] sm:$0xf]
        %v4214 = vld [vmem:[#allocation7 + $0x54] sm:$0xf]
        %v4215 = vld [vmem:[#allocation7 + $0x58] sm:$0xf]
        %v4216 = vld [vmem:[#allocation7 + $0x5c] sm:$0xf]
        %v4217 = vld [vmem:[#allocation7 + $0x60] sm:$0xf]
        %v4218 = vld [vmem:[#allocation7 + $0x64] sm:$0xf]
        %v4219 = vld [vmem:[#allocation7 + $0x68] sm:$0xf]
        %v4220 = vld [vmem:[#allocation7 + $0x6c] sm:$0xf]
        %v4221 = vld [vmem:[#allocation7 + $0x70] sm:$0xf]
        %v4222 = vld [vmem:[#allocation7 + $0x74] sm:$0xf]
        %v4223 = vld [vmem:[#allocation7 + $0x78] sm:$0xf]
        %v4224 = vld [vmem:[#allocation7 + $0x7c] sm:$0xf]
        %v4225 = vld [vmem:[#allocation7 + $0x80] sm:$0xf]
        %v4226 = vld [vmem:[#allocation7 + $0x84] sm:$0xf]
        %v4227 = vld [vmem:[#allocation7 + $0x88] sm:$0xf]
        %v4228 = vld [vmem:[#allocation7 + $0x8c] sm:$0xf]
        %v4229 = vld [vmem:[#allocation7 + $0x90] sm:$0xf]
        %v4230 = vld [vmem:[#allocation7 + $0x94] sm:$0xf]
        %v4231 = vld [vmem:[#allocation7 + $0x98] sm:$0xf]
        %v4232 = vld [vmem:[#allocation7 + $0x9c] sm:$0xf]
        %v4233 = vld [vmem:[#allocation7 + $0xa0] sm:$0xf]
        %v4234 = vld [vmem:[#allocation7 + $0xa4] sm:$0xf]
        %v4235 = vld [vmem:[#allocation7 + $0xa8] sm:$0xf]
        %v4236 = vld [vmem:[#allocation7 + $0xac] sm:$0xf]
        %v4237 = vld [vmem:[#allocation7 + $0xb0] sm:$0xf]
        %v4238 = vld [vmem:[#allocation7 + $0xb4] sm:$0xf]
        %v4239 = vld [vmem:[#allocation7 + $0xb8] sm:$0xf]
        %v4240 = vld [vmem:[#allocation7 + $0xbc] sm:$0xf]
        %v4241 = vld [vmem:[#allocation7 + $0xc0] sm:$0xf]
        %v4242 = vld [vmem:[#allocation7 + $0xc4] sm:$0xf]
        %v4243 = vld [vmem:[#allocation7 + $0xc8] sm:$0xf]
        %v4244 = vld [vmem:[#allocation7 + $0xcc] sm:$0xf]
        %v4245 = vld [vmem:[#allocation7 + $0xd0] sm:$0xf]
        %v4246 = vld [vmem:[#allocation7 + $0xd4] sm:$0xf]
        %v4247 = vld [vmem:[#allocation7 + $0xd8] sm:$0xf]
        %v4248 = vld [vmem:[#allocation7 + $0xdc] sm:$0xf]
        %v4249 = vld [vmem:[#allocation7 + $0xe0] sm:$0xf]
        %v4250 = vld [vmem:[#allocation7 + $0xe4] sm:$0xf]
        %v4251 = vld [vmem:[#allocation7 + $0xe8] sm:$0xf]
        %v4252 = vld [vmem:[#allocation7 + $0xec] sm:$0xf]
        %v4253 = vld [vmem:[#allocation7 + $0xf0] sm:$0xf]
        %v4254 = vld [vmem:[#allocation7 + $0xf4] sm:$0xf]
        %v4255 = vld [vmem:[#allocation7 + $0xf8] sm:$0xf]
        %v4256 = vld [vmem:[#allocation7 + $0xfc] sm:$0xf]
        %v4257 = vld [vmem:[#allocation7 + $0x100] sm:$0xf]
        %v4258 = vld [vmem:[#allocation7 + $0x104] sm:$0xf]
        %v4259 = vld [vmem:[#allocation7 + $0x108] sm:$0xf]
        %v4260 = vld [vmem:[#allocation7 + $0x10c] sm:$0xf]
        %v4261 = vld [vmem:[#allocation7 + $0x110] sm:$0xf]
        %v4262 = vld [vmem:[#allocation7 + $0x114] sm:$0xf]
        %v4263 = vld [vmem:[#allocation7 + $0x118] sm:$0xf]
        %v4264 = vld [vmem:[#allocation7 + $0x11c] sm:$0xf]
        %v4265 = vld [vmem:[#allocation7 + $0x120] sm:$0xf]
        %v4266 = vld [vmem:[#allocation7 + $0x124] sm:$0xf]
        %v4267 = vld [vmem:[#allocation7 + $0x128] sm:$0xf]
        %v4268 = vld [vmem:[#allocation7 + $0x12c] sm:$0xf]
        %v4269 = vld [vmem:[#allocation7 + $0x130] sm:$0xf]
        %v4270 = vld [vmem:[#allocation7 + $0x134] sm:$0xf]
        %v4271 = vld [vmem:[#allocation7 + $0x138] sm:$0xf]
        %v4272 = vld [vmem:[#allocation7 + $0x13c] sm:$0xf]
        %v4273 = vld [vmem:[#allocation7 + $0x140] sm:$0xf]
        %v4274 = vld [vmem:[#allocation7 + $0x144] sm:$0xf]
        %v4275 = vld [vmem:[#allocation7 + $0x148] sm:$0xf]
        %v4276 = vld [vmem:[#allocation7 + $0x14c] sm:$0xf]
        %v4277 = vld [vmem:[#allocation7 + $0x150] sm:$0xf]
        %v4278 = vld [vmem:[#allocation7 + $0x154] sm:$0xf]
        %v4279 = vld [vmem:[#allocation7 + $0x158] sm:$0xf]
        %v4280 = vld [vmem:[#allocation7 + $0x15c] sm:$0xf]
        %v4281 = vld [vmem:[#allocation7 + $0x160] sm:$0xf]
        %v4282 = vld [vmem:[#allocation7 + $0x164] sm:$0xf]
        %v4283 = vld [vmem:[#allocation7 + $0x168] sm:$0xf]
        %v4284 = vld [vmem:[#allocation7 + $0x16c] sm:$0xf]
        %v4285 = vld [vmem:[#allocation7 + $0x170] sm:$0xf]
        %v4286 = vld [vmem:[#allocation7 + $0x174] sm:$0xf]
        %v4287 = vld [vmem:[#allocation7 + $0x178] sm:$0xf]
        %v4288 = vld [vmem:[#allocation7 + $0x17c] sm:$0xf]
        %v4289 = vld [vmem:[#allocation7 + $0x180] sm:$0xf]
        %v4290 = vld [vmem:[#allocation7 + $0x184] sm:$0xf]
        %v4291 = vld [vmem:[#allocation7 + $0x188] sm:$0xf]
        %v4292 = vld [vmem:[#allocation7 + $0x18c] sm:$0xf]
        %v4293 = vld [vmem:[#allocation7 + $0x190] sm:$0xf]
        %v4294 = vld [vmem:[#allocation7 + $0x194] sm:$0xf]
        %v4295 = vld [vmem:[#allocation7 + $0x198] sm:$0xf]
        %v4296 = vld [vmem:[#allocation7 + $0x19c] sm:$0xf]
        %v4297 = vld [vmem:[#allocation7 + $0x1a0] sm:$0xf]
        %v4298 = vld [vmem:[#allocation7 + $0x1a4] sm:$0xf]
        %v4299 = vld [vmem:[#allocation7 + $0x1a8] sm:$0xf]
        %v4300 = vld [vmem:[#allocation7 + $0x1ac] sm:$0xf]
        %v4301 = vld [vmem:[#allocation7 + $0x1b0] sm:$0xf]
        %v4302 = vld [vmem:[#allocation7 + $0x1b4] sm:$0xf]
        %v4303 = vld [vmem:[#allocation7 + $0x1b8] sm:$0xf]
        %v4304 = vld [vmem:[#allocation7 + $0x1bc] sm:$0xf]
        %v4305 = vld [vmem:[#allocation7 + $0x1c0] sm:$0xf]
        %v4306 = vld [vmem:[#allocation7 + $0x1c4] sm:$0xf]
        %v4307 = vld [vmem:[#allocation7 + $0x1c8] sm:$0xf]
        %v4308 = vld [vmem:[#allocation7 + $0x1cc] sm:$0xf]
        %v4309 = vld [vmem:[#allocation7 + $0x1d0] sm:$0xf]
        %v4310 = vld [vmem:[#allocation7 + $0x1d4] sm:$0xf]
        %v4311 = vld [vmem:[#allocation7 + $0x1d8] sm:$0xf]
        %v4312 = vld [vmem:[#allocation7 + $0x1dc] sm:$0xf]
        %v4313 = vld [vmem:[#allocation7 + $0x1e0] sm:$0xf]
        %v4314 = vld [vmem:[#allocation7 + $0x1e4] sm:$0xf]
        %v4315 = vld [vmem:[#allocation7 + $0x1e8] sm:$0xf]
        %v4316 = vld [vmem:[#allocation7 + $0x1ec] sm:$0xf]
        %v4317 = vld [vmem:[#allocation7 + $0x1f0] sm:$0xf]
        %v4318 = vld [vmem:[#allocation7 + $0x1f4] sm:$0xf]
        %v4319 = vld [vmem:[#allocation7 + $0x1f8] sm:$0xf]
        %v4320 = vld [vmem:[#allocation7 + $0x1fc] sm:$0xf]
        %v4321 = vld [vmem:[#allocation7 + $0x200] sm:$0xf]
        %v4322 = vld [vmem:[#allocation7 + $0x204] sm:$0xf]
        %v4323 = vld [vmem:[#allocation7 + $0x208] sm:$0xf]
        %v4324 = vld [vmem:[#allocation7 + $0x20c] sm:$0xf]
        %v4325 = vld [vmem:[#allocation7 + $0x210] sm:$0xf]
        %v4326 = vld [vmem:[#allocation7 + $0x214] sm:$0xf]
        %v4327 = vld [vmem:[#allocation7 + $0x218] sm:$0xf]
        %v4328 = vld [vmem:[#allocation7 + $0x21c] sm:$0xf]
        %v4329 = vld [vmem:[#allocation7 + $0x220] sm:$0xf]
        %v4330 = vld [vmem:[#allocation7 + $0x224] sm:$0xf]
        %v4331 = vld [vmem:[#allocation7 + $0x228] sm:$0xf]
        %v4332 = vld [vmem:[#allocation7 + $0x22c] sm:$0xf]
        %v4333 = vld [vmem:[#allocation7 + $0x230] sm:$0xf]
        %v4334 = vld [vmem:[#allocation7 + $0x234] sm:$0xf]
        %v4335 = vld [vmem:[#allocation7 + $0x238] sm:$0xf]
        %v4336 = vld [vmem:[#allocation7 + $0x23c] sm:$0xf]
        %v4337 = vld [vmem:[%s6] sm:$0x1]
        %v4339 = vlaneseq
        %v4340 = vshrl.u32 %v4339, 7
        %v4341 = vsub.s32 0, %v4340
        %v4342 = vrot.slane %v4337, %v4341
        %v4524 = vunpack.c.l.b16 %v4013
        %v4525 = vunpack.c.h.b16 %v4013
        %v4526 = vunpack.c.l.b16 %v4014
        %v4527 = vunpack.c.h.b16 %v4014
        %v4528 = vunpack.c.l.b16 %v4015
        %v4529 = vunpack.c.h.b16 %v4015
        %v4530 = vunpack.c.l.b16 %v4016
        %v4531 = vunpack.c.h.b16 %v4016
        %v4532 = vunpack.c.l.b16 %v4017
        %v4533 = vunpack.c.l.b16 %v4018
        %v4534 = vunpack.c.h.b16 %v4018
        %v4535 = vunpack.c.l.b16 %v4019
        %v4536 = vunpack.c.h.b16 %v4019
        %v4537 = vunpack.c.l.b16 %v4020
        %v4538 = vunpack.c.h.b16 %v4020
        %v4539 = vunpack.c.l.b16 %v4021
        %v4540 = vunpack.c.h.b16 %v4021
        %v4541 = vunpack.c.l.b16 %v4022
        %v4542 = vunpack.c.l.b16 %v4023
        %v4543 = vunpack.c.h.b16 %v4023
        %v4544 = vunpack.c.l.b16 %v4024
        %v4545 = vunpack.c.h.b16 %v4024
        %v4546 = vunpack.c.l.b16 %v4025
        %v4547 = vunpack.c.h.b16 %v4025
        %v4548 = vunpack.c.l.b16 %v4026
        %v4549 = vunpack.c.h.b16 %v4026
        %v4550 = vunpack.c.l.b16 %v4027
        %v4551 = vunpack.c.l.b16 %v4028
        %v4552 = vunpack.c.h.b16 %v4028
        %v4553 = vunpack.c.l.b16 %v4029
        %v4554 = vunpack.c.h.b16 %v4029
        %v4555 = vunpack.c.l.b16 %v4030
        %v4556 = vunpack.c.h.b16 %v4030
        %v4557 = vunpack.c.l.b16 %v4031
        %v4558 = vunpack.c.h.b16 %v4031
        %v4559 = vunpack.c.l.b16 %v4032
        %v4560 = vunpack.c.l.b16 %v4033
        %v4561 = vunpack.c.h.b16 %v4033
        %v4562 = vunpack.c.l.b16 %v4034
        %v4563 = vunpack.c.h.b16 %v4034
        %v4564 = vunpack.c.l.b16 %v4035
        %v4565 = vunpack.c.h.b16 %v4035
        %v4566 = vunpack.c.l.b16 %v4036
        %v4567 = vunpack.c.h.b16 %v4036
        %v4568 = vunpack.c.l.b16 %v4037
        %v4569 = vunpack.c.l.b16 %v4038
        %v4570 = vunpack.c.h.b16 %v4038
        %v4571 = vunpack.c.l.b16 %v4039
        %v4572 = vunpack.c.h.b16 %v4039
        %v4573 = vunpack.c.l.b16 %v4040
        %v4574 = vunpack.c.h.b16 %v4040
        %v4575 = vunpack.c.l.b16 %v4041
        %v4576 = vunpack.c.h.b16 %v4041
        %v4577 = vunpack.c.l.b16 %v4042
        %v4578 = vunpack.c.l.b16 %v4043
        %v4579 = vunpack.c.h.b16 %v4043
        %v4580 = vunpack.c.l.b16 %v4044
        %v4581 = vunpack.c.h.b16 %v4044
        %v4582 = vunpack.c.l.b16 %v4045
        %v4583 = vunpack.c.h.b16 %v4045
        %v4584 = vunpack.c.l.b16 %v4046
        %v4585 = vunpack.c.h.b16 %v4046
        %v4586 = vunpack.c.l.b16 %v4047
        %v4587 = vunpack.c.l.b16 %v4048
        %v4588 = vunpack.c.h.b16 %v4048
        %v4589 = vunpack.c.l.b16 %v4049
        %v4590 = vunpack.c.h.b16 %v4049
        %v4591 = vunpack.c.l.b16 %v4050
        %v4592 = vunpack.c.h.b16 %v4050
        %v4593 = vunpack.c.l.b16 %v4051
        %v4594 = vunpack.c.h.b16 %v4051
        %v4595 = vunpack.c.l.b16 %v4052
        %v4596 = vunpack.c.l.b16 %v4053
        %v4597 = vunpack.c.h.b16 %v4053
        %v4598 = vunpack.c.l.b16 %v4054
        %v4599 = vunpack.c.h.b16 %v4054
        %v4600 = vunpack.c.l.b16 %v4055
        %v4601 = vunpack.c.h.b16 %v4055
        %v4602 = vunpack.c.l.b16 %v4056
        %v4603 = vunpack.c.h.b16 %v4056
        %v4604 = vunpack.c.l.b16 %v4057
        %v4605 = vunpack.c.l.b16 %v4058
        %v4606 = vunpack.c.h.b16 %v4058
        %v4607 = vunpack.c.l.b16 %v4059
        %v4608 = vunpack.c.h.b16 %v4059
        %v4609 = vunpack.c.l.b16 %v4060
        %v4610 = vunpack.c.h.b16 %v4060
        %v4611 = vunpack.c.l.b16 %v4061
        %v4612 = vunpack.c.h.b16 %v4061
        %v4613 = vunpack.c.l.b16 %v4062
        %v4614 = vunpack.c.l.b16 %v4063
        %v4615 = vunpack.c.h.b16 %v4063
        %v4616 = vunpack.c.l.b16 %v4064
        %v4617 = vunpack.c.h.b16 %v4064
        %v4618 = vunpack.c.l.b16 %v4065
        %v4619 = vunpack.c.h.b16 %v4065
        %v4620 = vunpack.c.l.b16 %v4066
        %v4621 = vunpack.c.h.b16 %v4066
        %v4622 = vunpack.c.l.b16 %v4067
        %v4623 = vunpack.c.l.b16 %v4068
        %v4624 = vunpack.c.h.b16 %v4068
        %v4625 = vunpack.c.l.b16 %v4069
        %v4626 = vunpack.c.h.b16 %v4069
        %v4627 = vunpack.c.l.b16 %v4070
        %v4628 = vunpack.c.h.b16 %v4070
        %v4629 = vunpack.c.l.b16 %v4071
        %v4630 = vunpack.c.h.b16 %v4071
        %v4631 = vunpack.c.l.b16 %v4072
        %v4632 = vunpack.c.l.b16 %v4073
        %v4633 = vunpack.c.h.b16 %v4073
        %v4634 = vunpack.c.l.b16 %v4074
        %v4635 = vunpack.c.h.b16 %v4074
        %v4636 = vunpack.c.l.b16 %v4075
        %v4637 = vunpack.c.h.b16 %v4075
        %v4638 = vunpack.c.l.b16 %v4076
        %v4639 = vunpack.c.h.b16 %v4076
        %v4640 = vunpack.c.l.b16 %v4077
        %v4641 = vunpack.c.l.b16 %v4078
        %v4642 = vunpack.c.h.b16 %v4078
        %v4643 = vunpack.c.l.b16 %v4079
        %v4644 = vunpack.c.h.b16 %v4079
        %v4645 = vunpack.c.l.b16 %v4080
        %v4646 = vunpack.c.h.b16 %v4080
        %v4647 = vunpack.c.l.b16 %v4081
        %v4648 = vunpack.c.h.b16 %v4081
        %v4649 = vunpack.c.l.b16 %v4082
        %v4650 = vunpack.c.l.b16 %v4083
        %v4651 = vunpack.c.h.b16 %v4083
        %v4652 = vunpack.c.l.b16 %v4084
        %v4653 = vunpack.c.h.b16 %v4084
        %v4654 = vunpack.c.l.b16 %v4085
        %v4655 = vunpack.c.h.b16 %v4085
        %v4656 = vunpack.c.l.b16 %v4086
        %v4657 = vunpack.c.h.b16 %v4086
        %v4658 = vunpack.c.l.b16 %v4087
        %v4659 = vunpack.c.l.b16 %v4088
        %v4660 = vunpack.c.h.b16 %v4088
        %v4661 = vunpack.c.l.b16 %v4089
        %v4662 = vunpack.c.h.b16 %v4089
        %v4663 = vunpack.c.l.b16 %v4090
        %v4664 = vunpack.c.h.b16 %v4090
        %v4665 = vunpack.c.l.b16 %v4091
        %v4666 = vunpack.c.h.b16 %v4091
        %v4667 = vunpack.c.l.b16 %v4092
        %v4668 = vunpack.c.l.b16 %v4093
        %v4669 = vunpack.c.h.b16 %v4093
        %v4670 = vunpack.c.l.b16 %v4094
        %v4671 = vunpack.c.h.b16 %v4094
        %v4672 = vunpack.c.l.b16 %v4095
        %v4673 = vunpack.c.h.b16 %v4095
        %v4674 = vunpack.c.l.b16 %v4096
        %v4675 = vunpack.c.h.b16 %v4096
        %v4676 = vunpack.c.l.b16 %v4097
        %v4677 = vunpack.c.l.b16 %v4098
        %v4678 = vunpack.c.h.b16 %v4098
        %v4679 = vunpack.c.l.b16 %v4099
        %v4680 = vunpack.c.h.b16 %v4099
        %v4681 = vunpack.c.l.b16 %v4100
        %v4682 = vunpack.c.h.b16 %v4100
        %v4683 = vunpack.c.l.b16 %v4101
        %v4684 = vunpack.c.h.b16 %v4101
        %v4685 = vunpack.c.l.b16 %v4102
        %v4686 = vunpack.c.l.b16 %v4103
        %v4687 = vunpack.c.h.b16 %v4103
        %v4688 = vunpack.c.l.b16 %v4104
        %v4689 = vunpack.c.h.b16 %v4104
        %v4690 = vunpack.c.l.b16 %v4105
        %v4691 = vunpack.c.h.b16 %v4105
        %v4692 = vunpack.c.l.b16 %v4106
        %v4693 = vunpack.c.h.b16 %v4106
        %v4694 = vunpack.c.l.b16 %v4107
        %v4695 = vunpack.c.l.b16 %v4108
        %v4696 = vunpack.c.h.b16 %v4108
        %v4697 = vunpack.c.l.b16 %v4109
        %v4698 = vunpack.c.h.b16 %v4109
        %v4699 = vunpack.c.l.b16 %v4110
        %v4700 = vunpack.c.h.b16 %v4110
        %v4701 = vunpack.c.l.b16 %v4111
        %v4702 = vunpack.c.h.b16 %v4111
        %v4703 = vunpack.c.l.b16 %v4112
        %v4704 = vunpack.c.l.b16 %v4113
        %v4705 = vunpack.c.h.b16 %v4113
        %v4706 = vunpack.c.l.b16 %v4114
        %v4707 = vunpack.c.h.b16 %v4114
        %v4708 = vunpack.c.l.b16 %v4115
        %v4709 = vunpack.c.h.b16 %v4115
        %v4710 = vunpack.c.l.b16 %v4116
        %v4711 = vunpack.c.h.b16 %v4116
        %v4712 = vunpack.c.l.b16 %v4117
        %v4713 = vunpack.c.l.b16 %v4118
        %v4714 = vunpack.c.h.b16 %v4118
        %v4715 = vunpack.c.l.b16 %v4119
        %v4716 = vunpack.c.h.b16 %v4119
        %v4717 = vunpack.c.l.b16 %v4120
        %v4718 = vunpack.c.h.b16 %v4120
        %v4719 = vunpack.c.l.b16 %v4121
        %v4720 = vunpack.c.h.b16 %v4121
        %v4721 = vunpack.c.l.b16 %v4122
        %v4722 = vunpack.c.l.b16 %v4123
        %v4723 = vunpack.c.h.b16 %v4123
        %v4724 = vunpack.c.l.b16 %v4124
        %v4725 = vunpack.c.h.b16 %v4124
        %v4726 = vunpack.c.l.b16 %v4125
        %v4727 = vunpack.c.h.b16 %v4125
        %v4728 = vunpack.c.l.b16 %v4126
        %v4729 = vunpack.c.h.b16 %v4126
        %v4730 = vunpack.c.l.b16 %v4127
        %v4731 = vunpack.c.l.b16 %v4128
        %v4732 = vunpack.c.h.b16 %v4128
        %v4733 = vunpack.c.l.b16 %v4129
        %v4734 = vunpack.c.h.b16 %v4129
        %v4735 = vunpack.c.l.b16 %v4130
        %v4736 = vunpack.c.h.b16 %v4130
        %v4737 = vunpack.c.l.b16 %v4131
        %v4738 = vunpack.c.h.b16 %v4131
        %v4739 = vunpack.c.l.b16 %v4132
        %v4740 = vunpack.c.l.b16 %v4133
        %v4741 = vunpack.c.h.b16 %v4133
        %v4742 = vunpack.c.l.b16 %v4134
        %v4743 = vunpack.c.h.b16 %v4134
        %v4744 = vunpack.c.l.b16 %v4135
        %v4745 = vunpack.c.h.b16 %v4135
        %v4746 = vunpack.c.l.b16 %v4136
        %v4747 = vunpack.c.h.b16 %v4136
        %v4748 = vunpack.c.l.b16 %v4137
        %v4749 = vunpack.c.l.b16 %v4138
        %v4750 = vunpack.c.h.b16 %v4138
        %v4751 = vunpack.c.l.b16 %v4139
        %v4752 = vunpack.c.h.b16 %v4139
        %v4753 = vunpack.c.l.b16 %v4140
        %v4754 = vunpack.c.h.b16 %v4140
        %v4755 = vunpack.c.l.b16 %v4141
        %v4756 = vunpack.c.h.b16 %v4141
        %v4757 = vunpack.c.l.b16 %v4142
        %v4758 = vunpack.c.l.b16 %v4143
        %v4759 = vunpack.c.h.b16 %v4143
        %v4760 = vunpack.c.l.b16 %v4144
        %v4761 = vunpack.c.h.b16 %v4144
        %v4762 = vunpack.c.l.b16 %v4145
        %v4763 = vunpack.c.h.b16 %v4145
        %v4764 = vunpack.c.l.b16 %v4146
        %v4765 = vunpack.c.h.b16 %v4146
        %v4766 = vunpack.c.l.b16 %v4147
        %v4767 = vunpack.c.l.b16 %v4148
        %v4768 = vunpack.c.h.b16 %v4148
        %v4769 = vunpack.c.l.b16 %v4149
        %v4770 = vunpack.c.h.b16 %v4149
        %v4771 = vunpack.c.l.b16 %v4150
        %v4772 = vunpack.c.h.b16 %v4150
        %v4773 = vunpack.c.l.b16 %v4151
        %v4774 = vunpack.c.h.b16 %v4151
        %v4775 = vunpack.c.l.b16 %v4152
        %v4776 = vunpack.c.l.b16 %v4153
        %v4777 = vunpack.c.h.b16 %v4153
        %v4778 = vunpack.c.l.b16 %v4154
        %v4779 = vunpack.c.h.b16 %v4154
        %v4780 = vunpack.c.l.b16 %v4155
        %v4781 = vunpack.c.h.b16 %v4155
        %v4782 = vunpack.c.l.b16 %v4156
        %v4783 = vunpack.c.h.b16 %v4156
        %v4784 = vunpack.c.l.b16 %v4157
        %v4785 = vunpack.c.l.b16 %v4158
        %v4786 = vunpack.c.h.b16 %v4158
        %v4787 = vunpack.c.l.b16 %v4159
        %v4788 = vunpack.c.h.b16 %v4159
        %v4789 = vunpack.c.l.b16 %v4160
        %v4790 = vunpack.c.h.b16 %v4160
        %v4791 = vunpack.c.l.b16 %v4161
        %v4792 = vunpack.c.h.b16 %v4161
        %v4793 = vunpack.c.l.b16 %v4162
        %v4794 = vunpack.c.l.b16 %v4163
        %v4795 = vunpack.c.h.b16 %v4163
        %v4796 = vunpack.c.l.b16 %v4164
        %v4797 = vunpack.c.h.b16 %v4164
        %v4798 = vunpack.c.l.b16 %v4165
        %v4799 = vunpack.c.h.b16 %v4165
        %v4800 = vunpack.c.l.b16 %v4166
        %v4801 = vunpack.c.h.b16 %v4166
        %v4802 = vunpack.c.l.b16 %v4167
        %v4803 = vunpack.c.l.b16 %v4168
        %v4804 = vunpack.c.h.b16 %v4168
        %v4805 = vunpack.c.l.b16 %v4169
        %v4806 = vunpack.c.h.b16 %v4169
        %v4807 = vunpack.c.l.b16 %v4170
        %v4808 = vunpack.c.h.b16 %v4170
        %v4809 = vunpack.c.l.b16 %v4171
        %v4810 = vunpack.c.h.b16 %v4171
        %v4811 = vunpack.c.l.b16 %v4172
        %v4812 = vunpack.c.l.b16 %v4173
        %v4813 = vunpack.c.h.b16 %v4173
        %v4814 = vunpack.c.l.b16 %v4174
        %v4815 = vunpack.c.h.b16 %v4174
        %v4816 = vunpack.c.l.b16 %v4175
        %v4817 = vunpack.c.h.b16 %v4175
        %v4818 = vunpack.c.l.b16 %v4176
        %v4819 = vunpack.c.h.b16 %v4176
        %v4820 = vunpack.c.l.b16 %v4177
        %v4821 = vunpack.c.l.b16 %v4178
        %v4822 = vunpack.c.h.b16 %v4178
        %v4823 = vunpack.c.l.b16 %v4179
        %v4824 = vunpack.c.h.b16 %v4179
        %v4825 = vunpack.c.l.b16 %v4180
        %v4826 = vunpack.c.h.b16 %v4180
        %v4827 = vunpack.c.l.b16 %v4181
        %v4828 = vunpack.c.h.b16 %v4181
        %v4829 = vunpack.c.l.b16 %v4182
        %v4830 = vunpack.c.l.b16 %v4183
        %v4831 = vunpack.c.h.b16 %v4183
        %v4832 = vunpack.c.l.b16 %v4184
        %v4833 = vunpack.c.h.b16 %v4184
        %v4834 = vunpack.c.l.b16 %v4185
        %v4835 = vunpack.c.h.b16 %v4185
        %v4836 = vunpack.c.l.b16 %v4186
        %v4837 = vunpack.c.h.b16 %v4186
        %v4838 = vunpack.c.l.b16 %v4187
        %v4839 = vunpack.c.l.b16 %v4188
        %v4840 = vunpack.c.h.b16 %v4188
        %v4841 = vunpack.c.l.b16 %v4189
        %v4842 = vunpack.c.h.b16 %v4189
        %v4843 = vunpack.c.l.b16 %v4190
        %v4844 = vunpack.c.h.b16 %v4190
        %v4845 = vunpack.c.l.b16 %v4191
        %v4846 = vunpack.c.h.b16 %v4191
        %v4847 = vunpack.c.l.b16 %v4192
        %v4848 = vpack.c.b16 %v4533, %v4524
        %v4849 = vpack.c.b16 %v4534, %v4525
        %v4850 = vpack.c.b16 %v4535, %v4526
        %v4851 = vpack.c.b16 %v4536, %v4527
        %v4852 = vpack.c.b16 %v4537, %v4528
        %v4853 = vpack.c.b16 %v4538, %v4529
        %v4854 = vpack.c.b16 %v4539, %v4530
        %v4855 = vpack.c.b16 %v4540, %v4531
        %v4856 = vpack.c.b16 %v4541, %v4532
        %v4857 = vpack.c.b16 %v4551, %v4542
        %v4858 = vpack.c.b16 %v4552, %v4543
        %v4859 = vpack.c.b16 %v4553, %v4544
        %v4860 = vpack.c.b16 %v4554, %v4545
        %v4861 = vpack.c.b16 %v4555, %v4546
        %v4862 = vpack.c.b16 %v4556, %v4547
        %v4863 = vpack.c.b16 %v4557, %v4548
        %v4864 = vpack.c.b16 %v4558, %v4549
        %v4865 = vpack.c.b16 %v4559, %v4550
        %v4866 = vpack.c.b16 %v4569, %v4560
        %v4867 = vpack.c.b16 %v4570, %v4561
        %v4868 = vpack.c.b16 %v4571, %v4562
        %v4869 = vpack.c.b16 %v4572, %v4563
        %v4870 = vpack.c.b16 %v4573, %v4564
        %v4871 = vpack.c.b16 %v4574, %v4565
        %v4872 = vpack.c.b16 %v4575, %v4566
        %v4873 = vpack.c.b16 %v4576, %v4567
        %v4874 = vpack.c.b16 %v4577, %v4568
        %v4875 = vpack.c.b16 %v4587, %v4578
        %v4876 = vpack.c.b16 %v4588, %v4579
        %v4877 = vpack.c.b16 %v4589, %v4580
        %v4878 = vpack.c.b16 %v4590, %v4581
        %v4879 = vpack.c.b16 %v4591, %v4582
        %v4880 = vpack.c.b16 %v4592, %v4583
        %v4881 = vpack.c.b16 %v4593, %v4584
        %v4882 = vpack.c.b16 %v4594, %v4585
        %v4883 = vpack.c.b16 %v4595, %v4586
        %v4884 = vpack.c.b16 %v4605, %v4596
        %v4885 = vpack.c.b16 %v4606, %v4597
        %v4886 = vpack.c.b16 %v4607, %v4598
        %v4887 = vpack.c.b16 %v4608, %v4599
        %v4888 = vpack.c.b16 %v4609, %v4600
        %v4889 = vpack.c.b16 %v4610, %v4601
        %v4890 = vpack.c.b16 %v4611, %v4602
        %v4891 = vpack.c.b16 %v4612, %v4603
        %v4892 = vpack.c.b16 %v4613, %v4604
        %v4893 = vpack.c.b16 %v4623, %v4614
        %v4894 = vpack.c.b16 %v4624, %v4615
        %v4895 = vpack.c.b16 %v4625, %v4616
        %v4896 = vpack.c.b16 %v4626, %v4617
        %v4897 = vpack.c.b16 %v4627, %v4618
        %v4898 = vpack.c.b16 %v4628, %v4619
        %v4899 = vpack.c.b16 %v4629, %v4620
        %v4900 = vpack.c.b16 %v4630, %v4621
        %v4901 = vpack.c.b16 %v4631, %v4622
        %v4902 = vpack.c.b16 %v4641, %v4632
        %v4903 = vpack.c.b16 %v4642, %v4633
        %v4904 = vpack.c.b16 %v4643, %v4634
        %v4905 = vpack.c.b16 %v4644, %v4635
        %v4906 = vpack.c.b16 %v4645, %v4636
        %v4907 = vpack.c.b16 %v4646, %v4637
        %v4908 = vpack.c.b16 %v4647, %v4638
        %v4909 = vpack.c.b16 %v4648, %v4639
        %v4910 = vpack.c.b16 %v4649, %v4640
        %v4911 = vpack.c.b16 %v4659, %v4650
        %v4912 = vpack.c.b16 %v4660, %v4651
        %v4913 = vpack.c.b16 %v4661, %v4652
        %v4914 = vpack.c.b16 %v4662, %v4653
        %v4915 = vpack.c.b16 %v4663, %v4654
        %v4916 = vpack.c.b16 %v4664, %v4655
        %v4917 = vpack.c.b16 %v4665, %v4656
        %v4918 = vpack.c.b16 %v4666, %v4657
        %v4919 = vpack.c.b16 %v4667, %v4658
        %v4920 = vpack.c.b16 %v4677, %v4668
        %v4921 = vpack.c.b16 %v4678, %v4669
        %v4922 = vpack.c.b16 %v4679, %v4670
        %v4923 = vpack.c.b16 %v4680, %v4671
        %v4924 = vpack.c.b16 %v4681, %v4672
        %v4925 = vpack.c.b16 %v4682, %v4673
        %v4926 = vpack.c.b16 %v4683, %v4674
        %v4927 = vpack.c.b16 %v4684, %v4675
        %v4928 = vpack.c.b16 %v4685, %v4676
        %v4929 = vpack.c.b16 %v4695, %v4686
        %v4930 = vpack.c.b16 %v4696, %v4687
        %v4931 = vpack.c.b16 %v4697, %v4688
        %v4932 = vpack.c.b16 %v4698, %v4689
        %v4933 = vpack.c.b16 %v4699, %v4690
        %v4934 = vpack.c.b16 %v4700, %v4691
        %v4935 = vpack.c.b16 %v4701, %v4692
        %v4936 = vpack.c.b16 %v4702, %v4693
        %v4937 = vpack.c.b16 %v4703, %v4694
        %v4938 = vpack.c.b16 %v4713, %v4704
        %v4939 = vpack.c.b16 %v4714, %v4705
        %v4940 = vpack.c.b16 %v4715, %v4706
        %v4941 = vpack.c.b16 %v4716, %v4707
        %v4942 = vpack.c.b16 %v4717, %v4708
        %v4943 = vpack.c.b16 %v4718, %v4709
        %v4944 = vpack.c.b16 %v4719, %v4710
        %v4945 = vpack.c.b16 %v4720, %v4711
        %v4946 = vpack.c.b16 %v4721, %v4712
        %v4947 = vpack.c.b16 %v4731, %v4722
        %v4948 = vpack.c.b16 %v4732, %v4723
        %v4949 = vpack.c.b16 %v4733, %v4724
        %v4950 = vpack.c.b16 %v4734, %v4725
        %v4951 = vpack.c.b16 %v4735, %v4726
        %v4952 = vpack.c.b16 %v4736, %v4727
        %v4953 = vpack.c.b16 %v4737, %v4728
        %v4954 = vpack.c.b16 %v4738, %v4729
        %v4955 = vpack.c.b16 %v4739, %v4730
        %v4956 = vpack.c.b16 %v4749, %v4740
        %v4957 = vpack.c.b16 %v4750, %v4741
        %v4958 = vpack.c.b16 %v4751, %v4742
        %v4959 = vpack.c.b16 %v4752, %v4743
        %v4960 = vpack.c.b16 %v4753, %v4744
        %v4961 = vpack.c.b16 %v4754, %v4745
        %v4962 = vpack.c.b16 %v4755, %v4746
        %v4963 = vpack.c.b16 %v4756, %v4747
        %v4964 = vpack.c.b16 %v4757, %v4748
        %v4965 = vpack.c.b16 %v4767, %v4758
        %v4966 = vpack.c.b16 %v4768, %v4759
        %v4967 = vpack.c.b16 %v4769, %v4760
        %v4968 = vpack.c.b16 %v4770, %v4761
        %v4969 = vpack.c.b16 %v4771, %v4762
        %v4970 = vpack.c.b16 %v4772, %v4763
        %v4971 = vpack.c.b16 %v4773, %v4764
        %v4972 = vpack.c.b16 %v4774, %v4765
        %v4973 = vpack.c.b16 %v4775, %v4766
        %v4974 = vpack.c.b16 %v4785, %v4776
        %v4975 = vpack.c.b16 %v4786, %v4777
        %v4976 = vpack.c.b16 %v4787, %v4778
        %v4977 = vpack.c.b16 %v4788, %v4779
        %v4978 = vpack.c.b16 %v4789, %v4780
        %v4979 = vpack.c.b16 %v4790, %v4781
        %v4980 = vpack.c.b16 %v4791, %v4782
        %v4981 = vpack.c.b16 %v4792, %v4783
        %v4982 = vpack.c.b16 %v4793, %v4784
        %v4983 = vpack.c.b16 %v4803, %v4794
        %v4984 = vpack.c.b16 %v4804, %v4795
        %v4985 = vpack.c.b16 %v4805, %v4796
        %v4986 = vpack.c.b16 %v4806, %v4797
        %v4987 = vpack.c.b16 %v4807, %v4798
        %v4988 = vpack.c.b16 %v4808, %v4799
        %v4989 = vpack.c.b16 %v4809, %v4800
        %v4990 = vpack.c.b16 %v4810, %v4801
        %v4991 = vpack.c.b16 %v4811, %v4802
        %v4992 = vpack.c.b16 %v4821, %v4812
        %v4993 = vpack.c.b16 %v4822, %v4813
        %v4994 = vpack.c.b16 %v4823, %v4814
        %v4995 = vpack.c.b16 %v4824, %v4815
        %v4996 = vpack.c.b16 %v4825, %v4816
        %v4997 = vpack.c.b16 %v4826, %v4817
        %v4998 = vpack.c.b16 %v4827, %v4818
        %v4999 = vpack.c.b16 %v4828, %v4819
        %v5000 = vpack.c.b16 %v4829, %v4820
        %v5001 = vpack.c.b16 %v4839, %v4830
        %v5002 = vpack.c.b16 %v4840, %v4831
        %v5003 = vpack.c.b16 %v4841, %v4832
        %v5004 = vpack.c.b16 %v4842, %v4833
        %v5005 = vpack.c.b16 %v4843, %v4834
        %v5006 = vpack.c.b16 %v4844, %v4835
        %v5007 = vpack.c.b16 %v4845, %v4836
        %v5008 = vpack.c.b16 %v4846, %v4837
        %v5009 = vpack.c.b16 %v4847, %v4838
        %v5316 = vunpack.c.l.b16 %v4193
        %v5317 = vunpack.c.l.b16 %v4194
        %v5318 = vunpack.c.l.b16 %v4195
        %v5319 = vunpack.c.l.b16 %v4196
        %v5320 = vunpack.c.l.b16 %v4197
        %v5321 = vunpack.c.l.b16 %v4198
        %v5322 = vunpack.c.l.b16 %v4199
        %v5323 = vunpack.c.l.b16 %v4200
        %v5324 = vunpack.c.l.b16 %v4201
        %v5325 = vunpack.c.l.b16 %v4202
        %v5326 = vunpack.c.l.b16 %v4203
        %v5327 = vunpack.c.l.b16 %v4204
        %v5328 = vunpack.c.l.b16 %v4205
        %v5329 = vunpack.c.l.b16 %v4206
        %v5330 = vunpack.c.l.b16 %v4207
        %v5331 = vunpack.c.l.b16 %v4208
        %v5332 = vunpack.c.l.b16 %v4209
        %v5333 = vunpack.c.l.b16 %v4210
        %v5334 = vunpack.c.l.b16 %v4211
        %v5335 = vunpack.c.l.b16 %v4212
        %v5336 = vunpack.c.l.b16 %v4213
        %v5337 = vunpack.c.l.b16 %v4214
        %v5338 = vunpack.c.l.b16 %v4215
        %v5339 = vunpack.c.l.b16 %v4216
        %v5340 = vunpack.c.l.b16 %v4217
        %v5341 = vunpack.c.l.b16 %v4218
        %v5342 = vunpack.c.l.b16 %v4219
        %v5343 = vunpack.c.l.b16 %v4220
        %v5344 = vunpack.c.l.b16 %v4221
        %v5345 = vunpack.c.l.b16 %v4222
        %v5346 = vunpack.c.l.b16 %v4223
        %v5347 = vunpack.c.l.b16 %v4224
        %v5348 = vunpack.c.l.b16 %v4225
        %v5349 = vunpack.c.l.b16 %v4226
        %v5350 = vunpack.c.l.b16 %v4227
        %v5351 = vunpack.c.l.b16 %v4228
        %v5352 = vunpack.c.l.b16 %v4229
        %v5353 = vunpack.c.l.b16 %v4230
        %v5354 = vunpack.c.l.b16 %v4231
        %v5355 = vunpack.c.l.b16 %v4232
        %v5356 = vunpack.c.l.b16 %v4233
        %v5357 = vunpack.c.l.b16 %v4234
        %v5358 = vunpack.c.l.b16 %v4235
        %v5359 = vunpack.c.l.b16 %v4236
        %v5360 = vunpack.c.l.b16 %v4237
        %v5361 = vunpack.c.l.b16 %v4238
        %v5362 = vunpack.c.l.b16 %v4239
        %v5363 = vunpack.c.l.b16 %v4240
        %v5364 = vunpack.c.l.b16 %v4241
        %v5365 = vunpack.c.l.b16 %v4242
        %v5366 = vunpack.c.l.b16 %v4243
        %v5367 = vunpack.c.l.b16 %v4244
        %v5368 = vunpack.c.l.b16 %v4245
        %v5369 = vunpack.c.l.b16 %v4246
        %v5370 = vunpack.c.l.b16 %v4247
        %v5371 = vunpack.c.l.b16 %v4248
        %v5372 = vunpack.c.l.b16 %v4249
        %v5373 = vunpack.c.l.b16 %v4250
        %v5374 = vunpack.c.l.b16 %v4251
        %v5375 = vunpack.c.l.b16 %v4252
        %v5376 = vunpack.c.l.b16 %v4253
        %v5377 = vunpack.c.l.b16 %v4254
        %v5378 = vunpack.c.l.b16 %v4255
        %v5379 = vunpack.c.l.b16 %v4256
        %v5380 = vunpack.c.l.b16 %v4257
        %v5381 = vunpack.c.l.b16 %v4258
        %v5382 = vunpack.c.l.b16 %v4259
        %v5383 = vunpack.c.l.b16 %v4260
        %v5384 = vunpack.c.l.b16 %v4261
        %v5385 = vunpack.c.l.b16 %v4262
        %v5386 = vunpack.c.l.b16 %v4263
        %v5387 = vunpack.c.l.b16 %v4264
        %v5388 = vunpack.c.l.b16 %v4265
        %v5389 = vunpack.c.l.b16 %v4266
        %v5390 = vunpack.c.l.b16 %v4267
        %v5391 = vunpack.c.l.b16 %v4268
        %v5392 = vunpack.c.l.b16 %v4269
        %v5393 = vunpack.c.l.b16 %v4270
        %v5394 = vunpack.c.l.b16 %v4271
        %v5395 = vunpack.c.l.b16 %v4272
        %v5396 = vunpack.c.l.b16 %v4273
        %v5397 = vunpack.c.l.b16 %v4274
        %v5398 = vunpack.c.l.b16 %v4275
        %v5399 = vunpack.c.l.b16 %v4276
        %v5400 = vunpack.c.l.b16 %v4277
        %v5401 = vunpack.c.l.b16 %v4278
        %v5402 = vunpack.c.l.b16 %v4279
        %v5403 = vunpack.c.l.b16 %v4280
        %v5404 = vunpack.c.l.b16 %v4281
        %v5405 = vunpack.c.l.b16 %v4282
        %v5406 = vunpack.c.l.b16 %v4283
        %v5407 = vunpack.c.l.b16 %v4284
        %v5408 = vunpack.c.l.b16 %v4285
        %v5409 = vunpack.c.l.b16 %v4286
        %v5410 = vunpack.c.l.b16 %v4287
        %v5411 = vunpack.c.l.b16 %v4288
        %v5412 = vunpack.c.l.b16 %v4289
        %v5413 = vunpack.c.l.b16 %v4290
        %v5414 = vunpack.c.l.b16 %v4291
        %v5415 = vunpack.c.l.b16 %v4292
        %v5416 = vunpack.c.l.b16 %v4293
        %v5417 = vunpack.c.l.b16 %v4294
        %v5418 = vunpack.c.l.b16 %v4295
        %v5419 = vunpack.c.l.b16 %v4296
        %v5420 = vunpack.c.l.b16 %v4297
        %v5421 = vunpack.c.l.b16 %v4298
        %v5422 = vunpack.c.l.b16 %v4299
        %v5423 = vunpack.c.l.b16 %v4300
        %v5424 = vunpack.c.l.b16 %v4301
        %v5425 = vunpack.c.l.b16 %v4302
        %v5426 = vunpack.c.l.b16 %v4303
        %v5427 = vunpack.c.l.b16 %v4304
        %v5428 = vunpack.c.l.b16 %v4305
        %v5429 = vunpack.c.l.b16 %v4306
        %v5430 = vunpack.c.l.b16 %v4307
        %v5431 = vunpack.c.l.b16 %v4308
        %v5432 = vunpack.c.l.b16 %v4309
        %v5433 = vunpack.c.l.b16 %v4310
        %v5434 = vunpack.c.l.b16 %v4311
        %v5435 = vunpack.c.l.b16 %v4312
        %v5436 = vunpack.c.l.b16 %v4313
        %v5437 = vunpack.c.l.b16 %v4314
        %v5438 = vunpack.c.l.b16 %v4315
        %v5439 = vunpack.c.l.b16 %v4316
        %v5440 = vunpack.c.l.b16 %v4317
        %v5441 = vunpack.c.l.b16 %v4318
        %v5442 = vunpack.c.l.b16 %v4319
        %v5443 = vunpack.c.l.b16 %v4320
        %v5444 = vunpack.c.l.b16 %v4321
        %v5445 = vunpack.c.l.b16 %v4322
        %v5446 = vunpack.c.l.b16 %v4323
        %v5447 = vunpack.c.l.b16 %v4324
        %v5448 = vunpack.c.l.b16 %v4325
        %v5449 = vunpack.c.l.b16 %v4326
        %v5450 = vunpack.c.l.b16 %v4327
        %v5451 = vunpack.c.l.b16 %v4328
        %v5452 = vunpack.c.l.b16 %v4329
        %v5453 = vunpack.c.l.b16 %v4330
        %v5454 = vunpack.c.l.b16 %v4331
        %v5455 = vunpack.c.l.b16 %v4332
        %v5456 = vunpack.c.l.b16 %v4333
        %v5457 = vunpack.c.l.b16 %v4334
        %v5458 = vunpack.c.l.b16 %v4335
        %v5459 = vunpack.c.l.b16 %v4336
        %v5460 = vpack.c.b16 %v5317, %v5316
        %v5461 = vpack.c.b16 %v5319, %v5318
        %v5462 = vpack.c.b16 %v5321, %v5320
        %v5463 = vpack.c.b16 %v5323, %v5322
        %v5464 = vpack.c.b16 %v5325, %v5324
        %v5465 = vpack.c.b16 %v5327, %v5326
        %v5466 = vpack.c.b16 %v5329, %v5328
        %v5467 = vpack.c.b16 %v5331, %v5330
        %v5468 = vpack.c.b16 %v5333, %v5332
        %v5469 = vpack.c.b16 %v5335, %v5334
        %v5470 = vpack.c.b16 %v5337, %v5336
        %v5471 = vpack.c.b16 %v5339, %v5338
        %v5472 = vpack.c.b16 %v5341, %v5340
        %v5473 = vpack.c.b16 %v5343, %v5342
        %v5474 = vpack.c.b16 %v5345, %v5344
        %v5475 = vpack.c.b16 %v5347, %v5346
        %v5476 = vpack.c.b16 %v5349, %v5348
        %v5477 = vpack.c.b16 %v5351, %v5350
        %v5478 = vpack.c.b16 %v5353, %v5352
        %v5479 = vpack.c.b16 %v5355, %v5354
        %v5480 = vpack.c.b16 %v5357, %v5356
        %v5481 = vpack.c.b16 %v5359, %v5358
        %v5482 = vpack.c.b16 %v5361, %v5360
        %v5483 = vpack.c.b16 %v5363, %v5362
        %v5484 = vpack.c.b16 %v5365, %v5364
        %v5485 = vpack.c.b16 %v5367, %v5366
        %v5486 = vpack.c.b16 %v5369, %v5368
        %v5487 = vpack.c.b16 %v5371, %v5370
        %v5488 = vpack.c.b16 %v5373, %v5372
        %v5489 = vpack.c.b16 %v5375, %v5374
        %v5490 = vpack.c.b16 %v5377, %v5376
        %v5491 = vpack.c.b16 %v5379, %v5378
        %v5492 = vpack.c.b16 %v5381, %v5380
        %v5493 = vpack.c.b16 %v5383, %v5382
        %v5494 = vpack.c.b16 %v5385, %v5384
        %v5495 = vpack.c.b16 %v5387, %v5386
        %v5496 = vpack.c.b16 %v5389, %v5388
        %v5497 = vpack.c.b16 %v5391, %v5390
        %v5498 = vpack.c.b16 %v5393, %v5392
        %v5499 = vpack.c.b16 %v5395, %v5394
        %v5500 = vpack.c.b16 %v5397, %v5396
        %v5501 = vpack.c.b16 %v5399, %v5398
        %v5502 = vpack.c.b16 %v5401, %v5400
        %v5503 = vpack.c.b16 %v5403, %v5402
        %v5504 = vpack.c.b16 %v5405, %v5404
        %v5505 = vpack.c.b16 %v5407, %v5406
        %v5506 = vpack.c.b16 %v5409, %v5408
        %v5507 = vpack.c.b16 %v5411, %v5410
        %v5508 = vpack.c.b16 %v5413, %v5412
        %v5509 = vpack.c.b16 %v5415, %v5414
        %v5510 = vpack.c.b16 %v5417, %v5416
        %v5511 = vpack.c.b16 %v5419, %v5418
        %v5512 = vpack.c.b16 %v5421, %v5420
        %v5513 = vpack.c.b16 %v5423, %v5422
        %v5514 = vpack.c.b16 %v5425, %v5424
        %v5515 = vpack.c.b16 %v5427, %v5426
        %v5516 = vpack.c.b16 %v5429, %v5428
        %v5517 = vpack.c.b16 %v5431, %v5430
        %v5518 = vpack.c.b16 %v5433, %v5432
        %v5519 = vpack.c.b16 %v5435, %v5434
        %v5520 = vpack.c.b16 %v5437, %v5436
        %v5521 = vpack.c.b16 %v5439, %v5438
        %v5522 = vpack.c.b16 %v5441, %v5440
        %v5523 = vpack.c.b16 %v5443, %v5442
        %v5524 = vpack.c.b16 %v5445, %v5444
        %v5525 = vpack.c.b16 %v5447, %v5446
        %v5526 = vpack.c.b16 %v5449, %v5448
        %v5527 = vpack.c.b16 %v5451, %v5450
        %v5528 = vpack.c.b16 %v5453, %v5452
        %v5529 = vpack.c.b16 %v5455, %v5454
        %v5530 = vpack.c.b16 %v5457, %v5456
        %v5531 = vpack.c.b16 %v5459, %v5458
        %5604 = vmatprep.subr.bf16.mxu0 0
        %5605 = vmatpush1.bf16.msra.mxu0 %v5467
        %5606 = vmatprep.subr.bf16.mxu0 0
        %5607 = vmatpush1.bf16.msra.mxu0 %v5466
        %5608 = vmatprep.subr.bf16.mxu0 0
        %5609 = vmatpush1.bf16.msra.mxu0 %v5465
        %5610 = vmatprep.subr.bf16.mxu0 0
        %5611 = vmatpush1.bf16.msra.mxu0 %v5464
        %5612 = vmatprep.subr.bf16.mxu0 0
        %5613 = vmatpush1.bf16.msra.mxu0 %v5463
        %5614 = vmatprep.subr.bf16.mxu0 0
        %5615 = vmatpush1.bf16.msra.mxu0 %v5462
        %5616 = vmatprep.subr.bf16.mxu0 0
        %5617 = vmatpush1.bf16.msra.mxu0 %v5461
        %5618 = vmatprep.subr.bf16.mxu0 0
        %5619 = vmatpush1.bf16.msra.mxu0 %v5460
        %5620 = vmatprep.subr.bf16.mxu0 0
        %5621 = vmatpush2.bf16.msra.mxu0 %v5475
        %5622 = vmatprep.subr.bf16.mxu0 0
        %5623 = vmatpush2.bf16.msra.mxu0 %v5474
        %5624 = vmatprep.subr.bf16.mxu0 0
        %5625 = vmatpush2.bf16.msra.mxu0 %v5473
        %5626 = vmatprep.subr.bf16.mxu0 0
        %5627 = vmatpush2.bf16.msra.mxu0 %v5472
        %5628 = vmatprep.subr.bf16.mxu0 0
        %5629 = vmatpush2.bf16.msra.mxu0 %v5471
        %5630 = vmatprep.subr.bf16.mxu0 0
        %5631 = vmatpush2.bf16.msra.mxu0 %v5470
        %5632 = vmatprep.subr.bf16.mxu0 0
        %5633 = vmatpush2.bf16.msra.mxu0 %v5469
        %5634 = vmatprep.subr.bf16.mxu0 0
        %5635 = vmatpush2.bf16.msra.mxu0 %v5468
        %5636 = vmatprep.mubr.bf16.mxu0 %v4849
        %5637 = vmatmul.mubr.bf16.gmra.mxu0 %v4848
        %v5638 = vpop.f32.mrf.mxu0
        %v5639 = vadd.f32 %v4342, %v5638
        %v5640 = vpop.f32.mrf.mxu0
        %v5641 = vpop.f32.mrf.mxu0
        %v5642 = vadd.f32 %v4342, %v5641
        %v5643 = vpop.f32.mrf.mxu0
        %5644 = vmatprep.mubr.bf16.mxu0 %v4858
        %5645 = vmatmul.mubr.bf16.gmra.mxu0 %v4857
        %v5646 = vpop.f32.mrf.mxu0
        %v5647 = vadd.f32 %v4342, %v5646
        %v5648 = vpop.f32.mrf.mxu0
        %v5649 = vpop.f32.mrf.mxu0
        %v5650 = vadd.f32 %v4342, %v5649
        %v5651 = vpop.f32.mrf.mxu0
        %5652 = vmatprep.mubr.bf16.mxu0 %v4867
        %5653 = vmatmul.mubr.bf16.gmra.mxu0 %v4866
        %v5654 = vpop.f32.mrf.mxu0
        %v5655 = vadd.f32 %v4342, %v5654
        %v5656 = vpop.f32.mrf.mxu0
        %v5657 = vpop.f32.mrf.mxu0
        %v5658 = vadd.f32 %v4342, %v5657
        %v5659 = vpop.f32.mrf.mxu0
        %5660 = vmatprep.mubr.bf16.mxu0 %v4876
        %5661 = vmatmul.mubr.bf16.gmra.mxu0 %v4875
        %v5662 = vpop.f32.mrf.mxu0
        %v5663 = vadd.f32 %v4342, %v5662
        %v5664 = vpop.f32.mrf.mxu0
        %v5665 = vpop.f32.mrf.mxu0
        %v5666 = vadd.f32 %v4342, %v5665
        %v5667 = vpop.f32.mrf.mxu0
        %5668 = vmatprep.mubr.bf16.mxu0 %v4885
        %5669 = vmatmul.mubr.bf16.gmra.mxu0 %v4884
        %v5670 = vpop.f32.mrf.mxu0
        %v5671 = vadd.f32 %v4342, %v5670
        %v5672 = vpop.f32.mrf.mxu0
        %v5673 = vpop.f32.mrf.mxu0
        %v5674 = vadd.f32 %v4342, %v5673
        %v5675 = vpop.f32.mrf.mxu0
        %5676 = vmatprep.mubr.bf16.mxu0 %v4894
        %5677 = vmatmul.mubr.bf16.gmra.mxu0 %v4893
        %v5678 = vpop.f32.mrf.mxu0
        %v5679 = vadd.f32 %v4342, %v5678
        %v5680 = vpop.f32.mrf.mxu0
        %v5681 = vpop.f32.mrf.mxu0
        %v5682 = vadd.f32 %v4342, %v5681
        %v5683 = vpop.f32.mrf.mxu0
        %5684 = vmatprep.mubr.bf16.mxu0 %v4903
        %5685 = vmatmul.mubr.bf16.gmra.mxu0 %v4902
        %v5686 = vpop.f32.mrf.mxu0
        %v5687 = vadd.f32 %v4342, %v5686
        %v5688 = vpop.f32.mrf.mxu0
        %v5689 = vpop.f32.mrf.mxu0
        %v5690 = vadd.f32 %v4342, %v5689
        %v5691 = vpop.f32.mrf.mxu0
        %5692 = vmatprep.mubr.bf16.mxu0 %v4912
        %5693 = vmatmul.mubr.bf16.gmra.mxu0 %v4911
        %v5694 = vpop.f32.mrf.mxu0
        %v5695 = vadd.f32 %v4342, %v5694
        %v5696 = vpop.f32.mrf.mxu0
        %v5697 = vpop.f32.mrf.mxu0
        %v5698 = vadd.f32 %v4342, %v5697
        %v5699 = vpop.f32.mrf.mxu0
        %5700 = vmatprep.mubr.bf16.mxu0 %v4921
        %5701 = vmatmul.mubr.bf16.gmra.mxu0 %v4920
        %v5702 = vpop.f32.mrf.mxu0
        %v5703 = vadd.f32 %v4342, %v5702
        %v5704 = vpop.f32.mrf.mxu0
        %v5705 = vpop.f32.mrf.mxu0
        %v5706 = vadd.f32 %v4342, %v5705
        %v5707 = vpop.f32.mrf.mxu0
        %5708 = vmatprep.mubr.bf16.mxu0 %v4930
        %5709 = vmatmul.mubr.bf16.gmra.mxu0 %v4929
        %v5710 = vpop.f32.mrf.mxu0
        %v5711 = vadd.f32 %v4342, %v5710
        %v5712 = vpop.f32.mrf.mxu0
        %v5713 = vpop.f32.mrf.mxu0
        %v5714 = vadd.f32 %v4342, %v5713
        %v5715 = vpop.f32.mrf.mxu0
        %5716 = vmatprep.mubr.bf16.mxu0 %v4939
        %5717 = vmatmul.mubr.bf16.gmra.mxu0 %v4938
        %v5718 = vpop.f32.mrf.mxu0
        %v5719 = vadd.f32 %v4342, %v5718
        %v5720 = vpop.f32.mrf.mxu0
        %v5721 = vpop.f32.mrf.mxu0
        %v5722 = vadd.f32 %v4342, %v5721
        %v5723 = vpop.f32.mrf.mxu0
        %5724 = vmatprep.mubr.bf16.mxu0 %v4948
        %5725 = vmatmul.mubr.bf16.gmra.mxu0 %v4947
        %v5726 = vpop.f32.mrf.mxu0
        %v5727 = vadd.f32 %v4342, %v5726
        %v5728 = vpop.f32.mrf.mxu0
        %v5729 = vpop.f32.mrf.mxu0
        %v5730 = vadd.f32 %v4342, %v5729
        %v5731 = vpop.f32.mrf.mxu0
        %5732 = vmatprep.mubr.bf16.mxu0 %v4957
        %5733 = vmatmul.mubr.bf16.gmra.mxu0 %v4956
        %v5734 = vpop.f32.mrf.mxu0
        %v5735 = vadd.f32 %v4342, %v5734
        %v5736 = vpop.f32.mrf.mxu0
        %v5737 = vpop.f32.mrf.mxu0
        %v5738 = vadd.f32 %v4342, %v5737
        %v5739 = vpop.f32.mrf.mxu0
        %5740 = vmatprep.mubr.bf16.mxu0 %v4966
        %5741 = vmatmul.mubr.bf16.gmra.mxu0 %v4965
        %v5742 = vpop.f32.mrf.mxu0
        %v5743 = vadd.f32 %v4342, %v5742
        %v5744 = vpop.f32.mrf.mxu0
        %v5745 = vpop.f32.mrf.mxu0
        %v5746 = vadd.f32 %v4342, %v5745
        %v5747 = vpop.f32.mrf.mxu0
        %5748 = vmatprep.mubr.bf16.mxu0 %v4975
        %5749 = vmatmul.mubr.bf16.gmra.mxu0 %v4974
        %v5750 = vpop.f32.mrf.mxu0
        %v5751 = vadd.f32 %v4342, %v5750
        %v5752 = vpop.f32.mrf.mxu0
        %v5753 = vpop.f32.mrf.mxu0
        %v5754 = vadd.f32 %v4342, %v5753
        %v5755 = vpop.f32.mrf.mxu0
        %5756 = vmatprep.mubr.bf16.mxu0 %v4984
        %5757 = vmatmul.mubr.bf16.gmra.mxu0 %v4983
        %v5758 = vpop.f32.mrf.mxu0
        %v5759 = vadd.f32 %v4342, %v5758
        %v5760 = vpop.f32.mrf.mxu0
        %v5761 = vpop.f32.mrf.mxu0
        %v5762 = vadd.f32 %v4342, %v5761
        %v5763 = vpop.f32.mrf.mxu0
        %5764 = vmatprep.mubr.bf16.mxu0 %v4993
        %5765 = vmatmul.mubr.bf16.gmra.mxu0 %v4992
        %v5766 = vpop.f32.mrf.mxu0
        %v5767 = vadd.f32 %v4342, %v5766
        %v5768 = vpop.f32.mrf.mxu0
        %v5769 = vpop.f32.mrf.mxu0
        %v5770 = vadd.f32 %v4342, %v5769
        %v5771 = vpop.f32.mrf.mxu0
        %5772 = vmatprep.mubr.bf16.mxu0 %v5002
        %5773 = vmatmul.mubr.bf16.gmra.mxu0 %v5001
        %v5774 = vpop.f32.mrf.mxu0
        %v5775 = vadd.f32 %v4342, %v5774
        %v5776 = vpop.f32.mrf.mxu0
        %v5777 = vpop.f32.mrf.mxu0
        %v5778 = vadd.f32 %v4342, %v5777
        %v5779 = vpop.f32.mrf.mxu0
        %5780 = vdwg.mxu0
        %5781 = vmatprep.subr.bf16.mxu0 0
        %5782 = vmatpush1.bf16.msra.mxu0 %v5483
        %5783 = vmatprep.subr.bf16.mxu0 0
        %5784 = vmatpush1.bf16.msra.mxu0 %v5482
        %5785 = vmatprep.subr.bf16.mxu0 0
        %5786 = vmatpush1.bf16.msra.mxu0 %v5481
        %5787 = vmatprep.subr.bf16.mxu0 0
        %5788 = vmatpush1.bf16.msra.mxu0 %v5480
        %5789 = vmatprep.subr.bf16.mxu0 0
        %5790 = vmatpush1.bf16.msra.mxu0 %v5479
        %5791 = vmatprep.subr.bf16.mxu0 0
        %5792 = vmatpush1.bf16.msra.mxu0 %v5478
        %5793 = vmatprep.subr.bf16.mxu0 0
        %5794 = vmatpush1.bf16.msra.mxu0 %v5477
        %5795 = vmatprep.subr.bf16.mxu0 0
        %5796 = vmatpush1.bf16.msra.mxu0 %v5476
        %5797 = vmatprep.subr.bf16.mxu0 0
        %5798 = vmatpush2.bf16.msra.mxu0 %v5491
        %5799 = vmatprep.subr.bf16.mxu0 0
        %5800 = vmatpush2.bf16.msra.mxu0 %v5490
        %5801 = vmatprep.subr.bf16.mxu0 0
        %5802 = vmatpush2.bf16.msra.mxu0 %v5489
        %5803 = vmatprep.subr.bf16.mxu0 0
        %5804 = vmatpush2.bf16.msra.mxu0 %v5488
        %5805 = vmatprep.subr.bf16.mxu0 0
        %5806 = vmatpush2.bf16.msra.mxu0 %v5487
        %5807 = vmatprep.subr.bf16.mxu0 0
        %5808 = vmatpush2.bf16.msra.mxu0 %v5486
        %5809 = vmatprep.subr.bf16.mxu0 0
        %5810 = vmatpush2.bf16.msra.mxu0 %v5485
        %5811 = vmatprep.subr.bf16.mxu0 0
        %5812 = vmatpush2.bf16.msra.mxu0 %v5484
        %5813 = vmatprep.mubr.bf16.mxu0 %v4851
        %5814 = vmatmul.mubr.bf16.gmra.mxu0 %v4850
        %v5815 = vpop.f32.mrf.mxu0
        %v5816 = vadd.f32 %v5639, %v5815
        %v5817 = vpop.f32.mrf.mxu0
        %v5818 = vpop.f32.mrf.mxu0
        %v5819 = vadd.f32 %v5642, %v5818
        %v5820 = vpop.f32.mrf.mxu0
        %5821 = vmatprep.mubr.bf16.mxu0 %v4860
        %5822 = vmatmul.mubr.bf16.gmra.mxu0 %v4859
        %v5823 = vpop.f32.mrf.mxu0
        %v5824 = vadd.f32 %v5647, %v5823
        %v5825 = vpop.f32.mrf.mxu0
        %v5826 = vpop.f32.mrf.mxu0
        %v5827 = vadd.f32 %v5650, %v5826
        %v5828 = vpop.f32.mrf.mxu0
        %5829 = vmatprep.mubr.bf16.mxu0 %v4869
        %5830 = vmatmul.mubr.bf16.gmra.mxu0 %v4868
        %v5831 = vpop.f32.mrf.mxu0
        %v5832 = vadd.f32 %v5655, %v5831
        %v5833 = vpop.f32.mrf.mxu0
        %v5834 = vpop.f32.mrf.mxu0
        %v5835 = vadd.f32 %v5658, %v5834
        %v5836 = vpop.f32.mrf.mxu0
        %5837 = vmatprep.mubr.bf16.mxu0 %v4878
        %5838 = vmatmul.mubr.bf16.gmra.mxu0 %v4877
        %v5839 = vpop.f32.mrf.mxu0
        %v5840 = vadd.f32 %v5663, %v5839
        %v5841 = vpop.f32.mrf.mxu0
        %v5842 = vpop.f32.mrf.mxu0
        %v5843 = vadd.f32 %v5666, %v5842
        %v5844 = vpop.f32.mrf.mxu0
        %5845 = vmatprep.mubr.bf16.mxu0 %v4887
        %5846 = vmatmul.mubr.bf16.gmra.mxu0 %v4886
        %v5847 = vpop.f32.mrf.mxu0
        %v5848 = vadd.f32 %v5671, %v5847
        %v5849 = vpop.f32.mrf.mxu0
        %v5850 = vpop.f32.mrf.mxu0
        %v5851 = vadd.f32 %v5674, %v5850
        %v5852 = vpop.f32.mrf.mxu0
        %5853 = vmatprep.mubr.bf16.mxu0 %v4896
        %5854 = vmatmul.mubr.bf16.gmra.mxu0 %v4895
        %v5855 = vpop.f32.mrf.mxu0
        %v5856 = vadd.f32 %v5679, %v5855
        %v5857 = vpop.f32.mrf.mxu0
        %v5858 = vpop.f32.mrf.mxu0
        %v5859 = vadd.f32 %v5682, %v5858
        %v5860 = vpop.f32.mrf.mxu0
        %5861 = vmatprep.mubr.bf16.mxu0 %v4905
        %5862 = vmatmul.mubr.bf16.gmra.mxu0 %v4904
        %v5863 = vpop.f32.mrf.mxu0
        %v5864 = vadd.f32 %v5687, %v5863
        %v5865 = vpop.f32.mrf.mxu0
        %v5866 = vpop.f32.mrf.mxu0
        %v5867 = vadd.f32 %v5690, %v5866
        %v5868 = vpop.f32.mrf.mxu0
        %5869 = vmatprep.mubr.bf16.mxu0 %v4914
        %5870 = vmatmul.mubr.bf16.gmra.mxu0 %v4913
        %v5871 = vpop.f32.mrf.mxu0
        %v5872 = vadd.f32 %v5695, %v5871
        %v5873 = vpop.f32.mrf.mxu0
        %v5874 = vpop.f32.mrf.mxu0
        %v5875 = vadd.f32 %v5698, %v5874
        %v5876 = vpop.f32.mrf.mxu0
        %5877 = vmatprep.mubr.bf16.mxu0 %v4923
        %5878 = vmatmul.mubr.bf16.gmra.mxu0 %v4922
        %v5879 = vpop.f32.mrf.mxu0
        %v5880 = vadd.f32 %v5703, %v5879
        %v5881 = vpop.f32.mrf.mxu0
        %v5882 = vpop.f32.mrf.mxu0
        %v5883 = vadd.f32 %v5706, %v5882
        %v5884 = vpop.f32.mrf.mxu0
        %5885 = vmatprep.mubr.bf16.mxu0 %v4932
        %5886 = vmatmul.mubr.bf16.gmra.mxu0 %v4931
        %v5887 = vpop.f32.mrf.mxu0
        %v5888 = vadd.f32 %v5711, %v5887
        %v5889 = vpop.f32.mrf.mxu0
        %v5890 = vpop.f32.mrf.mxu0
        %v5891 = vadd.f32 %v5714, %v5890
        %v5892 = vpop.f32.mrf.mxu0
        %5893 = vmatprep.mubr.bf16.mxu0 %v4941
        %5894 = vmatmul.mubr.bf16.gmra.mxu0 %v4940
        %v5895 = vpop.f32.mrf.mxu0
        %v5896 = vadd.f32 %v5719, %v5895
        %v5897 = vpop.f32.mrf.mxu0
        %v5898 = vpop.f32.mrf.mxu0
        %v5899 = vadd.f32 %v5722, %v5898
        %v5900 = vpop.f32.mrf.mxu0
        %5901 = vmatprep.mubr.bf16.mxu0 %v4950
        %5902 = vmatmul.mubr.bf16.gmra.mxu0 %v4949
        %v5903 = vpop.f32.mrf.mxu0
        %v5904 = vadd.f32 %v5727, %v5903
        %v5905 = vpop.f32.mrf.mxu0
        %v5906 = vpop.f32.mrf.mxu0
        %v5907 = vadd.f32 %v5730, %v5906
        %v5908 = vpop.f32.mrf.mxu0
        %5909 = vmatprep.mubr.bf16.mxu0 %v4959
        %5910 = vmatmul.mubr.bf16.gmra.mxu0 %v4958
        %v5911 = vpop.f32.mrf.mxu0
        %v5912 = vadd.f32 %v5735, %v5911
        %v5913 = vpop.f32.mrf.mxu0
        %v5914 = vpop.f32.mrf.mxu0
        %v5915 = vadd.f32 %v5738, %v5914
        %v5916 = vpop.f32.mrf.mxu0
        %5917 = vmatprep.mubr.bf16.mxu0 %v4968
        %5918 = vmatmul.mubr.bf16.gmra.mxu0 %v4967
        %v5919 = vpop.f32.mrf.mxu0
        %v5920 = vadd.f32 %v5743, %v5919
        %v5921 = vpop.f32.mrf.mxu0
        %v5922 = vpop.f32.mrf.mxu0
        %v5923 = vadd.f32 %v5746, %v5922
        %v5924 = vpop.f32.mrf.mxu0
        %5925 = vmatprep.mubr.bf16.mxu0 %v4977
        %5926 = vmatmul.mubr.bf16.gmra.mxu0 %v4976
        %v5927 = vpop.f32.mrf.mxu0
        %v5928 = vadd.f32 %v5751, %v5927
        %v5929 = vpop.f32.mrf.mxu0
        %v5930 = vpop.f32.mrf.mxu0
        %v5931 = vadd.f32 %v5754, %v5930
        %v5932 = vpop.f32.mrf.mxu0
        %5933 = vmatprep.mubr.bf16.mxu0 %v4986
        %5934 = vmatmul.mubr.bf16.gmra.mxu0 %v4985
        %v5935 = vpop.f32.mrf.mxu0
        %v5936 = vadd.f32 %v5759, %v5935
        %v5937 = vpop.f32.mrf.mxu0
        %v5938 = vpop.f32.mrf.mxu0
        %v5939 = vadd.f32 %v5762, %v5938
        %v5940 = vpop.f32.mrf.mxu0
        %5941 = vmatprep.mubr.bf16.mxu0 %v4995
        %5942 = vmatmul.mubr.bf16.gmra.mxu0 %v4994
        %v5943 = vpop.f32.mrf.mxu0
        %v5944 = vadd.f32 %v5767, %v5943
        %v5945 = vpop.f32.mrf.mxu0
        %v5946 = vpop.f32.mrf.mxu0
        %v5947 = vadd.f32 %v5770, %v5946
        %v5948 = vpop.f32.mrf.mxu0
        %5949 = vmatprep.mubr.bf16.mxu0 %v5004
        %5950 = vmatmul.mubr.bf16.gmra.mxu0 %v5003
        %v5951 = vpop.f32.mrf.mxu0
        %v5952 = vadd.f32 %v5775, %v5951
        %v5953 = vpop.f32.mrf.mxu0
        %v5954 = vpop.f32.mrf.mxu0
        %v5955 = vadd.f32 %v5778, %v5954
        %v5956 = vpop.f32.mrf.mxu0
        %5957 = vdwg.mxu0
        %5958 = vmatprep.subr.bf16.mxu0 0
        %5959 = vmatpush1.bf16.msra.mxu0 %v5499
        %5960 = vmatprep.subr.bf16.mxu0 0
        %5961 = vmatpush1.bf16.msra.mxu0 %v5498
        %5962 = vmatprep.subr.bf16.mxu0 0
        %5963 = vmatpush1.bf16.msra.mxu0 %v5497
        %5964 = vmatprep.subr.bf16.mxu0 0
        %5965 = vmatpush1.bf16.msra.mxu0 %v5496
        %5966 = vmatprep.subr.bf16.mxu0 0
        %5967 = vmatpush1.bf16.msra.mxu0 %v5495
        %5968 = vmatprep.subr.bf16.mxu0 0
        %5969 = vmatpush1.bf16.msra.mxu0 %v5494
        %5970 = vmatprep.subr.bf16.mxu0 0
        %5971 = vmatpush1.bf16.msra.mxu0 %v5493
        %5972 = vmatprep.subr.bf16.mxu0 0
        %5973 = vmatpush1.bf16.msra.mxu0 %v5492
        %5974 = vmatprep.subr.bf16.mxu0 0
        %5975 = vmatpush2.bf16.msra.mxu0 %v5507
        %5976 = vmatprep.subr.bf16.mxu0 0
        %5977 = vmatpush2.bf16.msra.mxu0 %v5506
        %5978 = vmatprep.subr.bf16.mxu0 0
        %5979 = vmatpush2.bf16.msra.mxu0 %v5505
        %5980 = vmatprep.subr.bf16.mxu0 0
        %5981 = vmatpush2.bf16.msra.mxu0 %v5504
        %5982 = vmatprep.subr.bf16.mxu0 0
        %5983 = vmatpush2.bf16.msra.mxu0 %v5503
        %5984 = vmatprep.subr.bf16.mxu0 0
        %5985 = vmatpush2.bf16.msra.mxu0 %v5502
        %5986 = vmatprep.subr.bf16.mxu0 0
        %5987 = vmatpush2.bf16.msra.mxu0 %v5501
        %5988 = vmatprep.subr.bf16.mxu0 0
        %5989 = vmatpush2.bf16.msra.mxu0 %v5500
        %5990 = vmatprep.mubr.bf16.mxu0 %v4853
        %5991 = vmatmul.mubr.bf16.gmra.mxu0 %v4852
        %v5992 = vpop.f32.mrf.mxu0
        %v5993 = vadd.f32 %v5816, %v5992
        %v5994 = vpop.f32.mrf.mxu0
        %v5995 = vpop.f32.mrf.mxu0
        %v5996 = vadd.f32 %v5819, %v5995
        %v5997 = vpop.f32.mrf.mxu0
        %5998 = vmatprep.mubr.bf16.mxu0 %v4862
        %5999 = vmatmul.mubr.bf16.gmra.mxu0 %v4861
        %v6000 = vpop.f32.mrf.mxu0
        %v6001 = vadd.f32 %v5824, %v6000
        %v6002 = vpop.f32.mrf.mxu0
        %v6003 = vpop.f32.mrf.mxu0
        %v6004 = vadd.f32 %v5827, %v6003
        %v6005 = vpop.f32.mrf.mxu0
        %6006 = vmatprep.mubr.bf16.mxu0 %v4871
        %6007 = vmatmul.mubr.bf16.gmra.mxu0 %v4870
        %v6008 = vpop.f32.mrf.mxu0
        %v6009 = vadd.f32 %v5832, %v6008
        %v6010 = vpop.f32.mrf.mxu0
        %v6011 = vpop.f32.mrf.mxu0
        %v6012 = vadd.f32 %v5835, %v6011
        %v6013 = vpop.f32.mrf.mxu0
        %6014 = vmatprep.mubr.bf16.mxu0 %v4880
        %6015 = vmatmul.mubr.bf16.gmra.mxu0 %v4879
        %v6016 = vpop.f32.mrf.mxu0
        %v6017 = vadd.f32 %v5840, %v6016
        %v6018 = vpop.f32.mrf.mxu0
        %v6019 = vpop.f32.mrf.mxu0
        %v6020 = vadd.f32 %v5843, %v6019
        %v6021 = vpop.f32.mrf.mxu0
        %6022 = vmatprep.mubr.bf16.mxu0 %v4889
        %6023 = vmatmul.mubr.bf16.gmra.mxu0 %v4888
        %v6024 = vpop.f32.mrf.mxu0
        %v6025 = vadd.f32 %v5848, %v6024
        %v6026 = vpop.f32.mrf.mxu0
        %v6027 = vpop.f32.mrf.mxu0
        %v6028 = vadd.f32 %v5851, %v6027
        %v6029 = vpop.f32.mrf.mxu0
        %6030 = vmatprep.mubr.bf16.mxu0 %v4898
        %6031 = vmatmul.mubr.bf16.gmra.mxu0 %v4897
        %v6032 = vpop.f32.mrf.mxu0
        %v6033 = vadd.f32 %v5856, %v6032
        %v6034 = vpop.f32.mrf.mxu0
        %v6035 = vpop.f32.mrf.mxu0
        %v6036 = vadd.f32 %v5859, %v6035
        %v6037 = vpop.f32.mrf.mxu0
        %6038 = vmatprep.mubr.bf16.mxu0 %v4907
        %6039 = vmatmul.mubr.bf16.gmra.mxu0 %v4906
        %v6040 = vpop.f32.mrf.mxu0
        %v6041 = vadd.f32 %v5864, %v6040
        %v6042 = vpop.f32.mrf.mxu0
        %v6043 = vpop.f32.mrf.mxu0
        %v6044 = vadd.f32 %v5867, %v6043
        %v6045 = vpop.f32.mrf.mxu0
        %6046 = vmatprep.mubr.bf16.mxu0 %v4916
        %6047 = vmatmul.mubr.bf16.gmra.mxu0 %v4915
        %v6048 = vpop.f32.mrf.mxu0
        %v6049 = vadd.f32 %v5872, %v6048
        %v6050 = vpop.f32.mrf.mxu0
        %v6051 = vpop.f32.mrf.mxu0
        %v6052 = vadd.f32 %v5875, %v6051
        %v6053 = vpop.f32.mrf.mxu0
        %6054 = vmatprep.mubr.bf16.mxu0 %v4925
        %6055 = vmatmul.mubr.bf16.gmra.mxu0 %v4924
        %v6056 = vpop.f32.mrf.mxu0
        %v6057 = vadd.f32 %v5880, %v6056
        %v6058 = vpop.f32.mrf.mxu0
        %v6059 = vpop.f32.mrf.mxu0
        %v6060 = vadd.f32 %v5883, %v6059
        %v6061 = vpop.f32.mrf.mxu0
        %6062 = vmatprep.mubr.bf16.mxu0 %v4934
        %6063 = vmatmul.mubr.bf16.gmra.mxu0 %v4933
        %v6064 = vpop.f32.mrf.mxu0
        %v6065 = vadd.f32 %v5888, %v6064
        %v6066 = vpop.f32.mrf.mxu0
        %v6067 = vpop.f32.mrf.mxu0
        %v6068 = vadd.f32 %v5891, %v6067
        %v6069 = vpop.f32.mrf.mxu0
        %6070 = vmatprep.mubr.bf16.mxu0 %v4943
        %6071 = vmatmul.mubr.bf16.gmra.mxu0 %v4942
        %v6072 = vpop.f32.mrf.mxu0
        %v6073 = vadd.f32 %v5896, %v6072
        %v6074 = vpop.f32.mrf.mxu0
        %v6075 = vpop.f32.mrf.mxu0
        %v6076 = vadd.f32 %v5899, %v6075
        %v6077 = vpop.f32.mrf.mxu0
        %6078 = vmatprep.mubr.bf16.mxu0 %v4952
        %6079 = vmatmul.mubr.bf16.gmra.mxu0 %v4951
        %v6080 = vpop.f32.mrf.mxu0
        %v6081 = vadd.f32 %v5904, %v6080
        %v6082 = vpop.f32.mrf.mxu0
        %v6083 = vpop.f32.mrf.mxu0
        %v6084 = vadd.f32 %v5907, %v6083
        %v6085 = vpop.f32.mrf.mxu0
        %6086 = vmatprep.mubr.bf16.mxu0 %v4961
        %6087 = vmatmul.mubr.bf16.gmra.mxu0 %v4960
        %v6088 = vpop.f32.mrf.mxu0
        %v6089 = vadd.f32 %v5912, %v6088
        %v6090 = vpop.f32.mrf.mxu0
        %v6091 = vpop.f32.mrf.mxu0
        %v6092 = vadd.f32 %v5915, %v6091
        %v6093 = vpop.f32.mrf.mxu0
        %6094 = vmatprep.mubr.bf16.mxu0 %v4970
        %6095 = vmatmul.mubr.bf16.gmra.mxu0 %v4969
        %v6096 = vpop.f32.mrf.mxu0
        %v6097 = vadd.f32 %v5920, %v6096
        %v6098 = vpop.f32.mrf.mxu0
        %v6099 = vpop.f32.mrf.mxu0
        %v6100 = vadd.f32 %v5923, %v6099
        %v6101 = vpop.f32.mrf.mxu0
        %6102 = vmatprep.mubr.bf16.mxu0 %v4979
        %6103 = vmatmul.mubr.bf16.gmra.mxu0 %v4978
        %v6104 = vpop.f32.mrf.mxu0
        %v6105 = vadd.f32 %v5928, %v6104
        %v6106 = vpop.f32.mrf.mxu0
        %v6107 = vpop.f32.mrf.mxu0
        %v6108 = vadd.f32 %v5931, %v6107
        %v6109 = vpop.f32.mrf.mxu0
        %6110 = vmatprep.mubr.bf16.mxu0 %v4988
        %6111 = vmatmul.mubr.bf16.gmra.mxu0 %v4987
        %v6112 = vpop.f32.mrf.mxu0
        %v6113 = vadd.f32 %v5936, %v6112
        %v6114 = vpop.f32.mrf.mxu0
        %v6115 = vpop.f32.mrf.mxu0
        %v6116 = vadd.f32 %v5939, %v6115
        %v6117 = vpop.f32.mrf.mxu0
        %6118 = vmatprep.mubr.bf16.mxu0 %v4997
        %6119 = vmatmul.mubr.bf16.gmra.mxu0 %v4996
        %v6120 = vpop.f32.mrf.mxu0
        %v6121 = vadd.f32 %v5944, %v6120
        %v6122 = vpop.f32.mrf.mxu0
        %v6123 = vpop.f32.mrf.mxu0
        %v6124 = vadd.f32 %v5947, %v6123
        %v6125 = vpop.f32.mrf.mxu0
        %6126 = vmatprep.mubr.bf16.mxu0 %v5006
        %6127 = vmatmul.mubr.bf16.gmra.mxu0 %v5005
        %v6128 = vpop.f32.mrf.mxu0
        %v6129 = vadd.f32 %v5952, %v6128
        %v6130 = vpop.f32.mrf.mxu0
        %v6131 = vpop.f32.mrf.mxu0
        %v6132 = vadd.f32 %v5955, %v6131
        %v6133 = vpop.f32.mrf.mxu0
        %6134 = vdwg.mxu0
        %6135 = vmatprep.subr.bf16.mxu0 0
        %6136 = vmatpush1.bf16.msra.mxu0 %v5515
        %6137 = vmatprep.subr.bf16.mxu0 0
        %6138 = vmatpush1.bf16.msra.mxu0 %v5514
        %6139 = vmatprep.subr.bf16.mxu0 0
        %6140 = vmatpush1.bf16.msra.mxu0 %v5513
        %6141 = vmatprep.subr.bf16.mxu0 0
        %6142 = vmatpush1.bf16.msra.mxu0 %v5512
        %6143 = vmatprep.subr.bf16.mxu0 0
        %6144 = vmatpush1.bf16.msra.mxu0 %v5511
        %6145 = vmatprep.subr.bf16.mxu0 0
        %6146 = vmatpush1.bf16.msra.mxu0 %v5510
        %6147 = vmatprep.subr.bf16.mxu0 0
        %6148 = vmatpush1.bf16.msra.mxu0 %v5509
        %6149 = vmatprep.subr.bf16.mxu0 0
        %6150 = vmatpush1.bf16.msra.mxu0 %v5508
        %6151 = vmatprep.subr.bf16.mxu0 0
        %6152 = vmatpush2.bf16.msra.mxu0 %v5523
        %6153 = vmatprep.subr.bf16.mxu0 0
        %6154 = vmatpush2.bf16.msra.mxu0 %v5522
        %6155 = vmatprep.subr.bf16.mxu0 0
        %6156 = vmatpush2.bf16.msra.mxu0 %v5521
        %6157 = vmatprep.subr.bf16.mxu0 0
        %6158 = vmatpush2.bf16.msra.mxu0 %v5520
        %6159 = vmatprep.subr.bf16.mxu0 0
        %6160 = vmatpush2.bf16.msra.mxu0 %v5519
        %6161 = vmatprep.subr.bf16.mxu0 0
        %6162 = vmatpush2.bf16.msra.mxu0 %v5518
        %6163 = vmatprep.subr.bf16.mxu0 0
        %6164 = vmatpush2.bf16.msra.mxu0 %v5517
        %6165 = vmatprep.subr.bf16.mxu0 0
        %6166 = vmatpush2.bf16.msra.mxu0 %v5516
        %6167 = vmatprep.mubr.bf16.mxu0 %v4855
        %6168 = vmatmul.mubr.bf16.gmra.mxu0 %v4854
        %v6169 = vpop.f32.mrf.mxu0
        %v6170 = vadd.f32 %v5993, %v6169
        %v6171 = vpop.f32.mrf.mxu0
        %v6172 = vpop.f32.mrf.mxu0
        %v6173 = vadd.f32 %v5996, %v6172
        %v6174 = vpop.f32.mrf.mxu0
        %6175 = vmatprep.mubr.bf16.mxu0 %v4864
        %6176 = vmatmul.mubr.bf16.gmra.mxu0 %v4863
        %v6177 = vpop.f32.mrf.mxu0
        %v6178 = vadd.f32 %v6001, %v6177
        %v6179 = vpop.f32.mrf.mxu0
        %v6180 = vpop.f32.mrf.mxu0
        %v6181 = vadd.f32 %v6004, %v6180
        %v6182 = vpop.f32.mrf.mxu0
        %6183 = vmatprep.mubr.bf16.mxu0 %v4873
        %6184 = vmatmul.mubr.bf16.gmra.mxu0 %v4872
        %v6185 = vpop.f32.mrf.mxu0
        %v6186 = vadd.f32 %v6009, %v6185
        %v6187 = vpop.f32.mrf.mxu0
        %v6188 = vpop.f32.mrf.mxu0
        %v6189 = vadd.f32 %v6012, %v6188
        %v6190 = vpop.f32.mrf.mxu0
        %6191 = vmatprep.mubr.bf16.mxu0 %v4882
        %6192 = vmatmul.mubr.bf16.gmra.mxu0 %v4881
        %v6193 = vpop.f32.mrf.mxu0
        %v6194 = vadd.f32 %v6017, %v6193
        %v6195 = vpop.f32.mrf.mxu0
        %v6196 = vpop.f32.mrf.mxu0
        %v6197 = vadd.f32 %v6020, %v6196
        %v6198 = vpop.f32.mrf.mxu0
        %6199 = vmatprep.mubr.bf16.mxu0 %v4891
        %6200 = vmatmul.mubr.bf16.gmra.mxu0 %v4890
        %v6201 = vpop.f32.mrf.mxu0
        %v6202 = vadd.f32 %v6025, %v6201
        %v6203 = vpop.f32.mrf.mxu0
        %v6204 = vpop.f32.mrf.mxu0
        %v6205 = vadd.f32 %v6028, %v6204
        %v6206 = vpop.f32.mrf.mxu0
        %6207 = vmatprep.mubr.bf16.mxu0 %v4900
        %6208 = vmatmul.mubr.bf16.gmra.mxu0 %v4899
        %v6209 = vpop.f32.mrf.mxu0
        %v6210 = vadd.f32 %v6033, %v6209
        %v6211 = vpop.f32.mrf.mxu0
        %v6212 = vpop.f32.mrf.mxu0
        %v6213 = vadd.f32 %v6036, %v6212
        %v6214 = vpop.f32.mrf.mxu0
        %6215 = vmatprep.mubr.bf16.mxu0 %v4909
        %6216 = vmatmul.mubr.bf16.gmra.mxu0 %v4908
        %v6217 = vpop.f32.mrf.mxu0
        %v6218 = vadd.f32 %v6041, %v6217
        %v6219 = vpop.f32.mrf.mxu0
        %v6220 = vpop.f32.mrf.mxu0
        %v6221 = vadd.f32 %v6044, %v6220
        %v6222 = vpop.f32.mrf.mxu0
        %6223 = vmatprep.mubr.bf16.mxu0 %v4918
        %6224 = vmatmul.mubr.bf16.gmra.mxu0 %v4917
        %v6225 = vpop.f32.mrf.mxu0
        %v6226 = vadd.f32 %v6049, %v6225
        %v6227 = vpop.f32.mrf.mxu0
        %v6228 = vpop.f32.mrf.mxu0
        %v6229 = vadd.f32 %v6052, %v6228
        %v6230 = vpop.f32.mrf.mxu0
        %6231 = vmatprep.mubr.bf16.mxu0 %v4927
        %6232 = vmatmul.mubr.bf16.gmra.mxu0 %v4926
        %v6233 = vpop.f32.mrf.mxu0
        %v6234 = vadd.f32 %v6057, %v6233
        %v6235 = vpop.f32.mrf.mxu0
        %v6236 = vpop.f32.mrf.mxu0
        %v6237 = vadd.f32 %v6060, %v6236
        %v6238 = vpop.f32.mrf.mxu0
        %6239 = vmatprep.mubr.bf16.mxu0 %v4936
        %6240 = vmatmul.mubr.bf16.gmra.mxu0 %v4935
        %v6241 = vpop.f32.mrf.mxu0
        %v6242 = vadd.f32 %v6065, %v6241
        %v6243 = vpop.f32.mrf.mxu0
        %v6244 = vpop.f32.mrf.mxu0
        %v6245 = vadd.f32 %v6068, %v6244
        %v6246 = vpop.f32.mrf.mxu0
        %6247 = vmatprep.mubr.bf16.mxu0 %v4945
        %6248 = vmatmul.mubr.bf16.gmra.mxu0 %v4944
        %v6249 = vpop.f32.mrf.mxu0
        %v6250 = vadd.f32 %v6073, %v6249
        %v6251 = vpop.f32.mrf.mxu0
        %v6252 = vpop.f32.mrf.mxu0
        %v6253 = vadd.f32 %v6076, %v6252
        %v6254 = vpop.f32.mrf.mxu0
        %6255 = vmatprep.mubr.bf16.mxu0 %v4954
        %6256 = vmatmul.mubr.bf16.gmra.mxu0 %v4953
        %v6257 = vpop.f32.mrf.mxu0
        %v6258 = vadd.f32 %v6081, %v6257
        %v6259 = vpop.f32.mrf.mxu0
        %v6260 = vpop.f32.mrf.mxu0
        %v6261 = vadd.f32 %v6084, %v6260
        %v6262 = vpop.f32.mrf.mxu0
        %6263 = vmatprep.mubr.bf16.mxu0 %v4963
        %6264 = vmatmul.mubr.bf16.gmra.mxu0 %v4962
        %v6265 = vpop.f32.mrf.mxu0
        %v6266 = vadd.f32 %v6089, %v6265
        %v6267 = vpop.f32.mrf.mxu0
        %v6268 = vpop.f32.mrf.mxu0
        %v6269 = vadd.f32 %v6092, %v6268
        %v6270 = vpop.f32.mrf.mxu0
        %6271 = vmatprep.mubr.bf16.mxu0 %v4972
        %6272 = vmatmul.mubr.bf16.gmra.mxu0 %v4971
        %v6273 = vpop.f32.mrf.mxu0
        %v6274 = vadd.f32 %v6097, %v6273
        %v6275 = vpop.f32.mrf.mxu0
        %v6276 = vpop.f32.mrf.mxu0
        %v6277 = vadd.f32 %v6100, %v6276
        %v6278 = vpop.f32.mrf.mxu0
        %6279 = vmatprep.mubr.bf16.mxu0 %v4981
        %6280 = vmatmul.mubr.bf16.gmra.mxu0 %v4980
        %v6281 = vpop.f32.mrf.mxu0
        %v6282 = vadd.f32 %v6105, %v6281
        %v6283 = vpop.f32.mrf.mxu0
        %v6284 = vpop.f32.mrf.mxu0
        %v6285 = vadd.f32 %v6108, %v6284
        %v6286 = vpop.f32.mrf.mxu0
        %6287 = vmatprep.mubr.bf16.mxu0 %v4990
        %6288 = vmatmul.mubr.bf16.gmra.mxu0 %v4989
        %v6289 = vpop.f32.mrf.mxu0
        %v6290 = vadd.f32 %v6113, %v6289
        %v6291 = vpop.f32.mrf.mxu0
        %v6292 = vpop.f32.mrf.mxu0
        %v6293 = vadd.f32 %v6116, %v6292
        %v6294 = vpop.f32.mrf.mxu0
        %6295 = vmatprep.mubr.bf16.mxu0 %v4999
        %6296 = vmatmul.mubr.bf16.gmra.mxu0 %v4998
        %v6297 = vpop.f32.mrf.mxu0
        %v6298 = vadd.f32 %v6121, %v6297
        %v6299 = vpop.f32.mrf.mxu0
        %v6300 = vpop.f32.mrf.mxu0
        %v6301 = vadd.f32 %v6124, %v6300
        %v6302 = vpop.f32.mrf.mxu0
        %6303 = vmatprep.mubr.bf16.mxu0 %v5008
        %6304 = vmatmul.mubr.bf16.gmra.mxu0 %v5007
        %v6305 = vpop.f32.mrf.mxu0
        %v6306 = vadd.f32 %v6129, %v6305
        %v6307 = vpop.f32.mrf.mxu0
        %v6308 = vpop.f32.mrf.mxu0
        %v6309 = vadd.f32 %v6132, %v6308
        %v6310 = vpop.f32.mrf.mxu0
        %6311 = vdwg.mxu0
        %6312 = vmatprep.subr.bf16.mxu0 0
        %6313 = vmatpush1.bf16.msra.mxu0 %v5531
        %6314 = vmatprep.subr.bf16.mxu0 0
        %6315 = vmatpush1.bf16.msra.mxu0 %v5530
        %6316 = vmatprep.subr.bf16.mxu0 0
        %6317 = vmatpush1.bf16.msra.mxu0 %v5529
        %6318 = vmatprep.subr.bf16.mxu0 0
        %6319 = vmatpush1.bf16.msra.mxu0 %v5528
        %6320 = vmatprep.subr.bf16.mxu0 0
        %6321 = vmatpush1.bf16.msra.mxu0 %v5527
        %6322 = vmatprep.subr.bf16.mxu0 0
        %6323 = vmatpush1.bf16.msra.mxu0 %v5526
        %6324 = vmatprep.subr.bf16.mxu0 0
        %6325 = vmatpush1.bf16.msra.mxu0 %v5525
        %6326 = vmatprep.subr.bf16.mxu0 0
        %6327 = vmatpush1.bf16.msra.mxu0 %v5524
        %6328 = vmatprep.subr.bf16.mxu0 0
        %6329 = vmatpush2.bf16.msra.mxu0 0
        %6330 = vmatprep.subr.bf16.mxu0 0
        %6331 = vmatpush2.bf16.msra.mxu0 0
        %6332 = vmatprep.subr.bf16.mxu0 0
        %6333 = vmatpush2.bf16.msra.mxu0 0
        %6334 = vmatprep.subr.bf16.mxu0 0
        %6335 = vmatpush2.bf16.msra.mxu0 0
        %6336 = vmatprep.subr.bf16.mxu0 0
        %6337 = vmatpush2.bf16.msra.mxu0 0
        %6338 = vmatprep.subr.bf16.mxu0 0
        %6339 = vmatpush2.bf16.msra.mxu0 0
        %6340 = vmatprep.subr.bf16.mxu0 0
        %6341 = vmatpush2.bf16.msra.mxu0 0
        %6342 = vmatprep.subr.bf16.mxu0 0
        %6343 = vmatpush2.bf16.msra.mxu0 0
        %6344 = vmatprep.mubr.bf16.mxu0 0
        %6345 = vmatmul.mubr.bf16.gmra.mxu0 %v4856
        %v6346 = vpop.f32.mrf.mxu0
        %v6347 = vadd.f32 %v6170, %v6346
        %v6348 = vpop.f32.mrf.mxu0
        %v6349 = vpop.f32.mrf.mxu0
        %v6350 = vadd.f32 %v6173, %v6349
        %v6351 = vpop.f32.mrf.mxu0
        %6352 = vmatprep.mubr.bf16.mxu0 0
        %6353 = vmatmul.mubr.bf16.gmra.mxu0 %v4865
        %v6354 = vpop.f32.mrf.mxu0
        %v6355 = vadd.f32 %v6178, %v6354
        %v6356 = vpop.f32.mrf.mxu0
        %v6357 = vpop.f32.mrf.mxu0
        %v6358 = vadd.f32 %v6181, %v6357
        %v6359 = vpop.f32.mrf.mxu0
        %6360 = vmatprep.mubr.bf16.mxu0 0
        %6361 = vmatmul.mubr.bf16.gmra.mxu0 %v4874
        %v6362 = vpop.f32.mrf.mxu0
        %v6363 = vadd.f32 %v6186, %v6362
        %v6364 = vpop.f32.mrf.mxu0
        %v6365 = vpop.f32.mrf.mxu0
        %v6366 = vadd.f32 %v6189, %v6365
        %v6367 = vpop.f32.mrf.mxu0
        %6368 = vmatprep.mubr.bf16.mxu0 0
        %6369 = vmatmul.mubr.bf16.gmra.mxu0 %v4883
        %v6370 = vpop.f32.mrf.mxu0
        %v6371 = vadd.f32 %v6194, %v6370
        %v6372 = vpop.f32.mrf.mxu0
        %v6373 = vpop.f32.mrf.mxu0
        %v6374 = vadd.f32 %v6197, %v6373
        %v6375 = vpop.f32.mrf.mxu0
        %6376 = vmatprep.mubr.bf16.mxu0 0
        %6377 = vmatmul.mubr.bf16.gmra.mxu0 %v4892
        %v6378 = vpop.f32.mrf.mxu0
        %v6379 = vadd.f32 %v6202, %v6378
        %v6380 = vpop.f32.mrf.mxu0
        %v6381 = vpop.f32.mrf.mxu0
        %v6382 = vadd.f32 %v6205, %v6381
        %v6383 = vpop.f32.mrf.mxu0
        %6384 = vmatprep.mubr.bf16.mxu0 0
        %6385 = vmatmul.mubr.bf16.gmra.mxu0 %v4901
        %v6386 = vpop.f32.mrf.mxu0
        %v6387 = vadd.f32 %v6210, %v6386
        %v6388 = vpop.f32.mrf.mxu0
        %v6389 = vpop.f32.mrf.mxu0
        %v6390 = vadd.f32 %v6213, %v6389
        %v6391 = vpop.f32.mrf.mxu0
        %6392 = vmatprep.mubr.bf16.mxu0 0
        %6393 = vmatmul.mubr.bf16.gmra.mxu0 %v4910
        %v6394 = vpop.f32.mrf.mxu0
        %v6395 = vadd.f32 %v6218, %v6394
        %v6396 = vpop.f32.mrf.mxu0
        %v6397 = vpop.f32.mrf.mxu0
        %v6398 = vadd.f32 %v6221, %v6397
        %v6399 = vpop.f32.mrf.mxu0
        %6400 = vmatprep.mubr.bf16.mxu0 0
        %6401 = vmatmul.mubr.bf16.gmra.mxu0 %v4919
        %v6402 = vpop.f32.mrf.mxu0
        %v6403 = vadd.f32 %v6226, %v6402
        %v6404 = vpop.f32.mrf.mxu0
        %v6405 = vpop.f32.mrf.mxu0
        %v6406 = vadd.f32 %v6229, %v6405
        %v6407 = vpop.f32.mrf.mxu0
        %6408 = vmatprep.mubr.bf16.mxu0 0
        %6409 = vmatmul.mubr.bf16.gmra.mxu0 %v4928
        %v6410 = vpop.f32.mrf.mxu0
        %v6411 = vadd.f32 %v6234, %v6410
        %v6412 = vpop.f32.mrf.mxu0
        %v6413 = vpop.f32.mrf.mxu0
        %v6414 = vadd.f32 %v6237, %v6413
        %v6415 = vpop.f32.mrf.mxu0
        %6416 = vmatprep.mubr.bf16.mxu0 0
        %6417 = vmatmul.mubr.bf16.gmra.mxu0 %v4937
        %v6418 = vpop.f32.mrf.mxu0
        %v6419 = vadd.f32 %v6242, %v6418
        %v6420 = vpop.f32.mrf.mxu0
        %v6421 = vpop.f32.mrf.mxu0
        %v6422 = vadd.f32 %v6245, %v6421
        %v6423 = vpop.f32.mrf.mxu0
        %6424 = vmatprep.mubr.bf16.mxu0 0
        %6425 = vmatmul.mubr.bf16.gmra.mxu0 %v4946
        %v6426 = vpop.f32.mrf.mxu0
        %v6427 = vadd.f32 %v6250, %v6426
        %v6428 = vpop.f32.mrf.mxu0
        %v6429 = vpop.f32.mrf.mxu0
        %v6430 = vadd.f32 %v6253, %v6429
        %v6431 = vpop.f32.mrf.mxu0
        %6432 = vmatprep.mubr.bf16.mxu0 0
        %6433 = vmatmul.mubr.bf16.gmra.mxu0 %v4955
        %v6434 = vpop.f32.mrf.mxu0
        %v6435 = vadd.f32 %v6258, %v6434
        %v6436 = vpop.f32.mrf.mxu0
        %v6437 = vpop.f32.mrf.mxu0
        %v6438 = vadd.f32 %v6261, %v6437
        %v6439 = vpop.f32.mrf.mxu0
        %6440 = vmatprep.mubr.bf16.mxu0 0
        %6441 = vmatmul.mubr.bf16.gmra.mxu0 %v4964
        %v6442 = vpop.f32.mrf.mxu0
        %v6443 = vadd.f32 %v6266, %v6442
        %v6444 = vpop.f32.mrf.mxu0
        %v6445 = vpop.f32.mrf.mxu0
        %v6446 = vadd.f32 %v6269, %v6445
        %v6447 = vpop.f32.mrf.mxu0
        %6448 = vmatprep.mubr.bf16.mxu0 0
        %6449 = vmatmul.mubr.bf16.gmra.mxu0 %v4973
        %v6450 = vpop.f32.mrf.mxu0
        %v6451 = vadd.f32 %v6274, %v6450
        %v6452 = vpop.f32.mrf.mxu0
        %v6453 = vpop.f32.mrf.mxu0
        %v6454 = vadd.f32 %v6277, %v6453
        %v6455 = vpop.f32.mrf.mxu0
        %6456 = vmatprep.mubr.bf16.mxu0 0
        %6457 = vmatmul.mubr.bf16.gmra.mxu0 %v4982
        %v6458 = vpop.f32.mrf.mxu0
        %v6459 = vadd.f32 %v6282, %v6458
        %v6460 = vpop.f32.mrf.mxu0
        %v6461 = vpop.f32.mrf.mxu0
        %v6462 = vadd.f32 %v6285, %v6461
        %v6463 = vpop.f32.mrf.mxu0
        %6464 = vmatprep.mubr.bf16.mxu0 0
        %6465 = vmatmul.mubr.bf16.gmra.mxu0 %v4991
        %v6466 = vpop.f32.mrf.mxu0
        %v6467 = vadd.f32 %v6290, %v6466
        %v6468 = vpop.f32.mrf.mxu0
        %v6469 = vpop.f32.mrf.mxu0
        %v6470 = vadd.f32 %v6293, %v6469
        %v6471 = vpop.f32.mrf.mxu0
        %6472 = vmatprep.mubr.bf16.mxu0 0
        %6473 = vmatmul.mubr.bf16.gmra.mxu0 %v5000
        %v6474 = vpop.f32.mrf.mxu0
        %v6475 = vadd.f32 %v6298, %v6474
        %v6476 = vpop.f32.mrf.mxu0
        %v6477 = vpop.f32.mrf.mxu0
        %v6478 = vadd.f32 %v6301, %v6477
        %v6479 = vpop.f32.mrf.mxu0
        %6480 = vmatprep.mubr.bf16.mxu0 0
        %6481 = vmatmul.mubr.bf16.gmra.mxu0 %v5009
        %v6482 = vpop.f32.mrf.mxu0
        %v6483 = vadd.f32 %v6306, %v6482
        %v6484 = vpop.f32.mrf.mxu0
        %v6485 = vpop.f32.mrf.mxu0
        %v6486 = vadd.f32 %v6309, %v6485
        %v6487 = vpop.f32.mrf.mxu0
        %6488 = vdwg.mxu0
        %v6489 = vmax.f32 %v6347, 0.0
        %v6490 = vmax.f32 %v6350, 0.0
        %v6491 = vmax.f32 %v6355, 0.0
        %v6492 = vmax.f32 %v6358, 0.0
        %v6493 = vmax.f32 %v6363, 0.0
        %v6494 = vmax.f32 %v6366, 0.0
        %v6495 = vmax.f32 %v6371, 0.0
        %v6496 = vmax.f32 %v6374, 0.0
        %v6497 = vmax.f32 %v6379, 0.0
        %v6498 = vmax.f32 %v6382, 0.0
        %v6499 = vmax.f32 %v6387, 0.0
        %v6500 = vmax.f32 %v6390, 0.0
        %v6501 = vmax.f32 %v6395, 0.0
        %v6502 = vmax.f32 %v6398, 0.0
        %v6503 = vmax.f32 %v6403, 0.0
        %v6504 = vmax.f32 %v6406, 0.0
        %v6505 = vmax.f32 %v6411, 0.0
        %v6506 = vmax.f32 %v6414, 0.0
        %v6507 = vmax.f32 %v6419, 0.0
        %v6508 = vmax.f32 %v6422, 0.0
        %v6509 = vmax.f32 %v6427, 0.0
        %v6510 = vmax.f32 %v6430, 0.0
        %v6511 = vmax.f32 %v6435, 0.0
        %v6512 = vmax.f32 %v6438, 0.0
        %v6513 = vmax.f32 %v6443, 0.0
        %v6514 = vmax.f32 %v6446, 0.0
        %v6515 = vmax.f32 %v6451, 0.0
        %v6516 = vmax.f32 %v6454, 0.0
        %v6517 = vmax.f32 %v6459, 0.0
        %v6518 = vmax.f32 %v6462, 0.0
        %v6519 = vmax.f32 %v6467, 0.0
        %v6520 = vmax.f32 %v6470, 0.0
        %v6521 = vmax.f32 %v6475, 0.0
        %v6522 = vmax.f32 %v6478, 0.0
        %v6523 = vmax.f32 %v6483, 0.0
        %v6524 = vmax.f32 %v6486, 0.0
        %v6525 = vpack.c.bf16 %v6490, %v6489
        %v6526 = vpack.c.bf16 %v6492, %v6491
        %v6527 = vpack.c.bf16 %v6494, %v6493
        %v6528 = vpack.c.bf16 %v6496, %v6495
        %v6529 = vpack.c.bf16 %v6498, %v6497
        %v6530 = vpack.c.bf16 %v6500, %v6499
        %v6531 = vpack.c.bf16 %v6502, %v6501
        %v6532 = vpack.c.bf16 %v6504, %v6503
        %v6533 = vpack.c.bf16 %v6506, %v6505
        %v6534 = vpack.c.bf16 %v6508, %v6507
        %v6535 = vpack.c.bf16 %v6510, %v6509
        %v6536 = vpack.c.bf16 %v6512, %v6511
        %v6537 = vpack.c.bf16 %v6514, %v6513
        %v6538 = vpack.c.bf16 %v6516, %v6515
        %v6539 = vpack.c.bf16 %v6518, %v6517
        %v6540 = vpack.c.bf16 %v6520, %v6519
        %v6541 = vpack.c.bf16 %v6522, %v6521
        %v6542 = vpack.c.bf16 %v6524, %v6523
        %v6543 = vld [vmem:[%s4] sm:$0xf]
        %v6544 = vld [vmem:[%s4 + $0x4] sm:$0xf]
        %v6545 = vld [vmem:[%s4 + $0x8] sm:$0xf]
        %v6546 = vld [vmem:[%s4 + $0xc] sm:$0xf]
        %v6547 = vld [vmem:[%s4 + $0x10] sm:$0xf]
        %v6548 = vld [vmem:[%s4 + $0x14] sm:$0xf]
        %v6549 = vld [vmem:[%s4 + $0x18] sm:$0xf]
        %v6550 = vld [vmem:[%s4 + $0x1c] sm:$0xf]
        %v6551 = vld [vmem:[%s4 + $0x20] sm:$0xf]
        %v6552 = vld [vmem:[%s4 + $0x24] sm:$0xf]
        %v6553 = vld [vmem:[%s4 + $0x28] sm:$0xf]
        %v6554 = vld [vmem:[%s4 + $0x2c] sm:$0xf]
        %v6555 = vld [vmem:[%s4 + $0x30] sm:$0xf]
        %v6556 = vld [vmem:[%s4 + $0x34] sm:$0xf]
        %v6557 = vld [vmem:[%s4 + $0x38] sm:$0xf]
        %v6558 = vld [vmem:[%s4 + $0x3c] sm:$0xf]
        %v6559 = vld [vmem:[%s302 + $0x13] sm:$0xff]
        %v6560 = vld [vmem:[%s302 + $0x1b] sm:$0xff]
        %v6561 = vld [vmem:[%s302 + $0x23] sm:$0xff]
        %v6562 = vld [vmem:[%s302 + $0x2b] sm:$0xff]
        %v6563 = vld [vmem:[%s302 + $0x33] sm:$0xff]
        %v6564 = vld [vmem:[%s302 + $0x3b] sm:$0xff]
        %v6565 = vld [vmem:[%s302 + $0x43] sm:$0xff]
        %v6566 = vld [vmem:[%s302 + $0x4b] sm:$0xff]
        %v6567 = vld [vmem:[%s302 + $0x53] sm:$0xff]
        %v6568 = vld [vmem:[%s302 + $0x5b] sm:$0xff]
        %v6569 = vld [vmem:[%s302 + $0x63] sm:$0xff]
        %v6570 = vld [vmem:[%s302 + $0x6b] sm:$0xff]
        %v6571 = vld [vmem:[%s302 + $0x73] sm:$0xff]
        %v6572 = vld [vmem:[%s302 + $0x7b] sm:$0xff]
        %v6573 = vld [vmem:[%s302 + $0x83] sm:$0xff]
        %v6574 = vld [vmem:[%s302 + $0x8b] sm:$0xff]
        %v6575 = vld [vmem:[%s302 + $0x93] sm:$0xff]
        %v6576 = vld [vmem:[%s302 + $0x9b] sm:$0xff]
        %v6577 = vld [vmem:[%s302 + $0xa3] sm:$0xff]
        %v6578 = vld [vmem:[%s302 + $0xab] sm:$0xff]
        %v6579 = vld [vmem:[%s302 + $0xb3] sm:$0xff]
        %v6580 = vld [vmem:[%s302 + $0xbb] sm:$0xff]
        %v6581 = vld [vmem:[%s302 + $0xc3] sm:$0xff]
        %v6582 = vld [vmem:[%s302 + $0xcb] sm:$0xff]
        %v6583 = vld [vmem:[%s302 + $0xd3] sm:$0xff]
        %v6584 = vld [vmem:[%s302 + $0xdb] sm:$0xff]
        %v6585 = vld [vmem:[%s302 + $0xe3] sm:$0xff]
        %v6586 = vld [vmem:[%s302 + $0xeb] sm:$0xff]
        %v6587 = vld [vmem:[%s302 + $0xf3] sm:$0xff]
        %v6588 = vld [vmem:[%s302 + $0xfb] sm:$0xff]
        %v6589 = vld [vmem:[%s302 + $0x103] sm:$0xff]
        %v6590 = vld [vmem:[%s302 + $0x10b] sm:$0xff]
        %v6591 = vld [vmem:[%s302 + $0x113] sm:$0xff]
        %v6592 = vld [vmem:[%s302 + $0x11b] sm:$0xff]
        %v6593 = vld [vmem:[%s302 + $0x123] sm:$0xff]
        %v6594 = vld [vmem:[%s302 + $0x12b] sm:$0xff]
        %v6595 = vld [vmem:[%s7] sm:$0x1]
        %v6597 = vlaneseq
        %v6598 = vshrl.u32 %v6597, 7
        %v6599 = vsub.s32 0, %v6598
        %v6600 = vrot.slane %v6595, %v6599
        %v6618 = vunpack.c.l.b16 %v6543
        %v6619 = vunpack.c.l.b16 %v6544
        %v6620 = vunpack.c.l.b16 %v6545
        %v6621 = vunpack.c.l.b16 %v6546
        %v6622 = vunpack.c.l.b16 %v6547
        %v6623 = vunpack.c.l.b16 %v6548
        %v6624 = vunpack.c.l.b16 %v6549
        %v6625 = vunpack.c.l.b16 %v6550
        %v6626 = vunpack.c.l.b16 %v6551
        %v6627 = vunpack.c.l.b16 %v6552
        %v6628 = vunpack.c.l.b16 %v6553
        %v6629 = vunpack.c.l.b16 %v6554
        %v6630 = vunpack.c.l.b16 %v6555
        %v6631 = vunpack.c.l.b16 %v6556
        %v6632 = vunpack.c.l.b16 %v6557
        %v6633 = vunpack.c.l.b16 %v6558
        %v6634 = vpack.c.b16 %v6619, %v6618
        %v6635 = vpack.c.b16 %v6621, %v6620
        %v6636 = vpack.c.b16 %v6623, %v6622
        %v6637 = vpack.c.b16 %v6625, %v6624
        %v6638 = vpack.c.b16 %v6627, %v6626
        %v6639 = vpack.c.b16 %v6629, %v6628
        %v6640 = vpack.c.b16 %v6631, %v6630
        %v6641 = vpack.c.b16 %v6633, %v6632
        %6650 = vmatprep.subr.bf16.mxu0 0
        %6651 = vmatpush1.bf16.msra.mxu0 %v6641
        %6652 = vmatprep.subr.bf16.mxu0 0
        %6653 = vmatpush1.bf16.msra.mxu0 %v6640
        %6654 = vmatprep.subr.bf16.mxu0 0
        %6655 = vmatpush1.bf16.msra.mxu0 %v6639
        %6656 = vmatprep.subr.bf16.mxu0 0
        %6657 = vmatpush1.bf16.msra.mxu0 %v6638
        %6658 = vmatprep.subr.bf16.mxu0 0
        %6659 = vmatpush1.bf16.msra.mxu0 %v6637
        %6660 = vmatprep.subr.bf16.mxu0 0
        %6661 = vmatpush1.bf16.msra.mxu0 %v6636
        %6662 = vmatprep.subr.bf16.mxu0 0
        %6663 = vmatpush1.bf16.msra.mxu0 %v6635
        %6664 = vmatprep.subr.bf16.mxu0 0
        %6665 = vmatpush1.bf16.msra.mxu0 %v6634
        %6666 = vmatprep.subr.bf16.mxu0 0
        %6667 = vmatpush2.bf16.msra.mxu0 0
        %6668 = vmatprep.subr.bf16.mxu0 0
        %6669 = vmatpush2.bf16.msra.mxu0 0
        %6670 = vmatprep.subr.bf16.mxu0 0
        %6671 = vmatpush2.bf16.msra.mxu0 0
        %6672 = vmatprep.subr.bf16.mxu0 0
        %6673 = vmatpush2.bf16.msra.mxu0 0
        %6674 = vmatprep.subr.bf16.mxu0 0
        %6675 = vmatpush2.bf16.msra.mxu0 0
        %6676 = vmatprep.subr.bf16.mxu0 0
        %6677 = vmatpush2.bf16.msra.mxu0 0
        %6678 = vmatprep.subr.bf16.mxu0 0
        %6679 = vmatpush2.bf16.msra.mxu0 0
        %6680 = vmatprep.subr.bf16.mxu0 0
        %6681 = vmatpush2.bf16.msra.mxu0 0
        %6682 = vmatprep.mubr.bf16.mxu0 0
        %6683 = vmatmul.mubr.bf16.gmra.mxu0 %v6525
        %v6684 = vpop.f32.mrf.mxu0
        %v6685 = vadd.f32 %v6600, %v6684
        %v6686 = vpop.f32.mrf.mxu0
        %v6687 = vpop.f32.mrf.mxu0
        %v6688 = vadd.f32 %v6600, %v6687
        %v6689 = vpop.f32.mrf.mxu0
        %6690 = vmatprep.mubr.bf16.mxu0 0
        %6691 = vmatmul.mubr.bf16.gmra.mxu0 %v6526
        %v6692 = vpop.f32.mrf.mxu0
        %v6693 = vadd.f32 %v6600, %v6692
        %v6694 = vpop.f32.mrf.mxu0
        %v6695 = vpop.f32.mrf.mxu0
        %v6696 = vadd.f32 %v6600, %v6695
        %v6697 = vpop.f32.mrf.mxu0
        %6698 = vmatprep.mubr.bf16.mxu0 0
        %6699 = vmatmul.mubr.bf16.gmra.mxu0 %v6527
        %v6700 = vpop.f32.mrf.mxu0
        %v6701 = vadd.f32 %v6600, %v6700
        %v6702 = vpop.f32.mrf.mxu0
        %v6703 = vpop.f32.mrf.mxu0
        %v6704 = vadd.f32 %v6600, %v6703
        %v6705 = vpop.f32.mrf.mxu0
        %6706 = vmatprep.mubr.bf16.mxu0 0
        %6707 = vmatmul.mubr.bf16.gmra.mxu0 %v6528
        %v6708 = vpop.f32.mrf.mxu0
        %v6709 = vadd.f32 %v6600, %v6708
        %v6710 = vpop.f32.mrf.mxu0
        %v6711 = vpop.f32.mrf.mxu0
        %v6712 = vadd.f32 %v6600, %v6711
        %v6713 = vpop.f32.mrf.mxu0
        %6714 = vmatprep.mubr.bf16.mxu0 0
        %6715 = vmatmul.mubr.bf16.gmra.mxu0 %v6529
        %v6716 = vpop.f32.mrf.mxu0
        %v6717 = vadd.f32 %v6600, %v6716
        %v6718 = vpop.f32.mrf.mxu0
        %v6719 = vpop.f32.mrf.mxu0
        %v6720 = vadd.f32 %v6600, %v6719
        %v6721 = vpop.f32.mrf.mxu0
        %6722 = vmatprep.mubr.bf16.mxu0 0
        %6723 = vmatmul.mubr.bf16.gmra.mxu0 %v6530
        %v6724 = vpop.f32.mrf.mxu0
        %v6725 = vadd.f32 %v6600, %v6724
        %v6726 = vpop.f32.mrf.mxu0
        %v6727 = vpop.f32.mrf.mxu0
        %v6728 = vadd.f32 %v6600, %v6727
        %v6729 = vpop.f32.mrf.mxu0
        %6730 = vmatprep.mubr.bf16.mxu0 0
        %6731 = vmatmul.mubr.bf16.gmra.mxu0 %v6531
        %v6732 = vpop.f32.mrf.mxu0
        %v6733 = vadd.f32 %v6600, %v6732
        %v6734 = vpop.f32.mrf.mxu0
        %v6735 = vpop.f32.mrf.mxu0
        %v6736 = vadd.f32 %v6600, %v6735
        %v6737 = vpop.f32.mrf.mxu0
        %6738 = vmatprep.mubr.bf16.mxu0 0
        %6739 = vmatmul.mubr.bf16.gmra.mxu0 %v6532
        %v6740 = vpop.f32.mrf.mxu0
        %v6741 = vadd.f32 %v6600, %v6740
        %v6742 = vpop.f32.mrf.mxu0
        %v6743 = vpop.f32.mrf.mxu0
        %v6744 = vadd.f32 %v6600, %v6743
        %v6745 = vpop.f32.mrf.mxu0
        %6746 = vmatprep.mubr.bf16.mxu0 0
        %6747 = vmatmul.mubr.bf16.gmra.mxu0 %v6533
        %v6748 = vpop.f32.mrf.mxu0
        %v6749 = vadd.f32 %v6600, %v6748
        %v6750 = vpop.f32.mrf.mxu0
        %v6751 = vpop.f32.mrf.mxu0
        %v6752 = vadd.f32 %v6600, %v6751
        %v6753 = vpop.f32.mrf.mxu0
        %6754 = vmatprep.mubr.bf16.mxu0 0
        %6755 = vmatmul.mubr.bf16.gmra.mxu0 %v6534
        %v6756 = vpop.f32.mrf.mxu0
        %v6757 = vadd.f32 %v6600, %v6756
        %v6758 = vpop.f32.mrf.mxu0
        %v6759 = vpop.f32.mrf.mxu0
        %v6760 = vadd.f32 %v6600, %v6759
        %v6761 = vpop.f32.mrf.mxu0
        %6762 = vmatprep.mubr.bf16.mxu0 0
        %6763 = vmatmul.mubr.bf16.gmra.mxu0 %v6535
        %v6764 = vpop.f32.mrf.mxu0
        %v6765 = vadd.f32 %v6600, %v6764
        %v6766 = vpop.f32.mrf.mxu0
        %v6767 = vpop.f32.mrf.mxu0
        %v6768 = vadd.f32 %v6600, %v6767
        %v6769 = vpop.f32.mrf.mxu0
        %6770 = vmatprep.mubr.bf16.mxu0 0
        %6771 = vmatmul.mubr.bf16.gmra.mxu0 %v6536
        %v6772 = vpop.f32.mrf.mxu0
        %v6773 = vadd.f32 %v6600, %v6772
        %v6774 = vpop.f32.mrf.mxu0
        %v6775 = vpop.f32.mrf.mxu0
        %v6776 = vadd.f32 %v6600, %v6775
        %v6777 = vpop.f32.mrf.mxu0
        %6778 = vmatprep.mubr.bf16.mxu0 0
        %6779 = vmatmul.mubr.bf16.gmra.mxu0 %v6537
        %v6780 = vpop.f32.mrf.mxu0
        %v6781 = vadd.f32 %v6600, %v6780
        %v6782 = vpop.f32.mrf.mxu0
        %v6783 = vpop.f32.mrf.mxu0
        %v6784 = vadd.f32 %v6600, %v6783
        %v6785 = vpop.f32.mrf.mxu0
        %6786 = vmatprep.mubr.bf16.mxu0 0
        %6787 = vmatmul.mubr.bf16.gmra.mxu0 %v6538
        %v6788 = vpop.f32.mrf.mxu0
        %v6789 = vadd.f32 %v6600, %v6788
        %v6790 = vpop.f32.mrf.mxu0
        %v6791 = vpop.f32.mrf.mxu0
        %v6792 = vadd.f32 %v6600, %v6791
        %v6793 = vpop.f32.mrf.mxu0
        %6794 = vmatprep.mubr.bf16.mxu0 0
        %6795 = vmatmul.mubr.bf16.gmra.mxu0 %v6539
        %v6796 = vpop.f32.mrf.mxu0
        %v6797 = vadd.f32 %v6600, %v6796
        %v6798 = vpop.f32.mrf.mxu0
        %v6799 = vpop.f32.mrf.mxu0
        %v6800 = vadd.f32 %v6600, %v6799
        %v6801 = vpop.f32.mrf.mxu0
        %6802 = vmatprep.mubr.bf16.mxu0 0
        %6803 = vmatmul.mubr.bf16.gmra.mxu0 %v6540
        %v6804 = vpop.f32.mrf.mxu0
        %v6805 = vadd.f32 %v6600, %v6804
        %v6806 = vpop.f32.mrf.mxu0
        %v6807 = vpop.f32.mrf.mxu0
        %v6808 = vadd.f32 %v6600, %v6807
        %v6809 = vpop.f32.mrf.mxu0
        %6810 = vmatprep.mubr.bf16.mxu0 0
        %6811 = vmatmul.mubr.bf16.gmra.mxu0 %v6541
        %v6812 = vpop.f32.mrf.mxu0
        %v6813 = vadd.f32 %v6600, %v6812
        %v6814 = vpop.f32.mrf.mxu0
        %v6815 = vpop.f32.mrf.mxu0
        %v6816 = vadd.f32 %v6600, %v6815
        %v6817 = vpop.f32.mrf.mxu0
        %6818 = vmatprep.mubr.bf16.mxu0 0
        %6819 = vmatmul.mubr.bf16.gmra.mxu0 %v6542
        %v6820 = vpop.f32.mrf.mxu0
        %v6821 = vadd.f32 %v6600, %v6820
        %v6822 = vpop.f32.mrf.mxu0
        %v6823 = vpop.f32.mrf.mxu0
        %v6824 = vadd.f32 %v6600, %v6823
        %v6825 = vpop.f32.mrf.mxu0
        %6826 = vdwg.mxu0
        %v6827 = vadd.f32 %v6685, %v6559
        %v6828 = vadd.f32 %v6688, %v6560
        %v6829 = vadd.f32 %v6693, %v6561
        %v6830 = vadd.f32 %v6696, %v6562
        %v6831 = vadd.f32 %v6701, %v6563
        %v6832 = vadd.f32 %v6704, %v6564
        %v6833 = vadd.f32 %v6709, %v6565
        %v6834 = vadd.f32 %v6712, %v6566
        %v6835 = vadd.f32 %v6717, %v6567
        %v6836 = vadd.f32 %v6720, %v6568
        %v6837 = vadd.f32 %v6725, %v6569
        %v6838 = vadd.f32 %v6728, %v6570
        %v6839 = vadd.f32 %v6733, %v6571
        %v6840 = vadd.f32 %v6736, %v6572
        %v6841 = vadd.f32 %v6741, %v6573
        %v6842 = vadd.f32 %v6744, %v6574
        %v6843 = vadd.f32 %v6749, %v6575
        %v6844 = vadd.f32 %v6752, %v6576
        %v6845 = vadd.f32 %v6757, %v6577
        %v6846 = vadd.f32 %v6760, %v6578
        %v6847 = vadd.f32 %v6765, %v6579
        %v6848 = vadd.f32 %v6768, %v6580
        %v6849 = vadd.f32 %v6773, %v6581
        %v6850 = vadd.f32 %v6776, %v6582
        %v6851 = vadd.f32 %v6781, %v6583
        %v6852 = vadd.f32 %v6784, %v6584
        %v6853 = vadd.f32 %v6789, %v6585
        %v6854 = vadd.f32 %v6792, %v6586
        %v6855 = vadd.f32 %v6797, %v6587
        %v6856 = vadd.f32 %v6800, %v6588
        %v6857 = vadd.f32 %v6805, %v6589
        %v6858 = vadd.f32 %v6808, %v6590
        %v6859 = vadd.f32 %v6813, %v6591
        %v6860 = vadd.f32 %v6816, %v6592
        %v6861 = vadd.f32 %v6821, %v6593
        %v6862 = vadd.f32 %v6824, %v6594
        %v6863 = vmax.f32 %v6827, 0.0
        %v6864 = vmax.f32 %v6828, 0.0
        %v6865 = vmax.f32 %v6829, 0.0
        %v6866 = vmax.f32 %v6830, 0.0
        %v6867 = vmax.f32 %v6831, 0.0
        %v6868 = vmax.f32 %v6832, 0.0
        %v6869 = vmax.f32 %v6833, 0.0
        %v6870 = vmax.f32 %v6834, 0.0
        %v6871 = vmax.f32 %v6835, 0.0
        %v6872 = vmax.f32 %v6836, 0.0
        %v6873 = vmax.f32 %v6837, 0.0
        %v6874 = vmax.f32 %v6838, 0.0
        %v6875 = vmax.f32 %v6839, 0.0
        %v6876 = vmax.f32 %v6840, 0.0
        %v6877 = vmax.f32 %v6841, 0.0
        %v6878 = vmax.f32 %v6842, 0.0
        %v6879 = vmax.f32 %v6843, 0.0
        %v6880 = vmax.f32 %v6844, 0.0
        %v6881 = vmax.f32 %v6845, 0.0
        %v6882 = vmax.f32 %v6846, 0.0
        %v6883 = vmax.f32 %v6847, 0.0
        %v6884 = vmax.f32 %v6848, 0.0
        %v6885 = vmax.f32 %v6849, 0.0
        %v6886 = vmax.f32 %v6850, 0.0
        %v6887 = vmax.f32 %v6851, 0.0
        %v6888 = vmax.f32 %v6852, 0.0
        %v6889 = vmax.f32 %v6853, 0.0
        %v6890 = vmax.f32 %v6854, 0.0
        %v6891 = vmax.f32 %v6855, 0.0
        %v6892 = vmax.f32 %v6856, 0.0
        %v6893 = vmax.f32 %v6857, 0.0
        %v6894 = vmax.f32 %v6858, 0.0
        %v6895 = vmax.f32 %v6859, 0.0
        %v6896 = vmax.f32 %v6860, 0.0
        %v6897 = vmax.f32 %v6861, 0.0
        %v6898 = vmax.f32 %v6862, 0.0
        %6899 = vst [vmem:[%s338] sm:$0xff] %v6863
        %6900 = vst [vmem:[%s338 + $0x8] sm:$0xff] %v6864
        %6901 = vst [vmem:[%s338 + $0x10] sm:$0xff] %v6865
        %6902 = vst [vmem:[%s338 + $0x18] sm:$0xff] %v6866
        %6903 = vst [vmem:[%s338 + $0x20] sm:$0xff] %v6867
        %6904 = vst [vmem:[%s338 + $0x28] sm:$0xff] %v6868
        %6905 = vst [vmem:[%s338 + $0x30] sm:$0xff] %v6869
        %6906 = vst [vmem:[%s338 + $0x38] sm:$0xff] %v6870
        %6907 = vst [vmem:[%s338 + $0x40] sm:$0xff] %v6871
        %6908 = vst [vmem:[%s338 + $0x48] sm:$0xff] %v6872
        %6909 = vst [vmem:[%s338 + $0x50] sm:$0xff] %v6873
        %6910 = vst [vmem:[%s338 + $0x58] sm:$0xff] %v6874
        %6911 = vst [vmem:[%s338 + $0x60] sm:$0xff] %v6875
        %6912 = vst [vmem:[%s338 + $0x68] sm:$0xff] %v6876
        %6913 = vst [vmem:[%s338 + $0x70] sm:$0xff] %v6877
        %6914 = vst [vmem:[%s338 + $0x78] sm:$0xff] %v6878
        %6915 = vst [vmem:[%s338 + $0x80] sm:$0xff] %v6879
        %6916 = vst [vmem:[%s338 + $0x88] sm:$0xff] %v6880
        %6917 = vst [vmem:[%s338 + $0x90] sm:$0xff] %v6881
        %6918 = vst [vmem:[%s338 + $0x98] sm:$0xff] %v6882
        %6919 = vst [vmem:[%s338 + $0xa0] sm:$0xff] %v6883
        %6920 = vst [vmem:[%s338 + $0xa8] sm:$0xff] %v6884
        %6921 = vst [vmem:[%s338 + $0xb0] sm:$0xff] %v6885
        %6922 = vst [vmem:[%s338 + $0xb8] sm:$0xff] %v6886
        %6923 = vst [vmem:[%s338 + $0xc0] sm:$0xff] %v6887
        %6924 = vst [vmem:[%s338 + $0xc8] sm:$0xff] %v6888
        %6925 = vst [vmem:[%s338 + $0xd0] sm:$0xff] %v6889
        %6926 = vst [vmem:[%s338 + $0xd8] sm:$0xff] %v6890
        %6927 = vst [vmem:[%s338 + $0xe0] sm:$0xff] %v6891
        %6928 = vst [vmem:[%s338 + $0xe8] sm:$0xff] %v6892
        %6929 = vst [vmem:[%s338 + $0xf0] sm:$0xff] %v6893
        %6930 = vst [vmem:[%s338 + $0xf8] sm:$0xff] %v6894
        %6931 = vst [vmem:[%s338 + $0x100] sm:$0xff] %v6895
        %6932 = vst [vmem:[%s338 + $0x108] sm:$0xff] %v6896
        %6933 = vst [vmem:[%s338 + $0x110] sm:$0xff] %v6897
        %6934 = vst [vmem:[%s338 + $0x118] sm:$0xff] %v6898
        %s6935 = sand.u32 %s207, 1
        %s6936 = scalar_lea.sflag [#allocation6], %s6935
        %s6937 = sand.u32 %s207, 1
        %s6938 = smul.addr %s6937, 288
        %s6939 = scalar_lea.vmem [#allocation9], %s6938
        // Predicated region
        $region61: #{tpu_custom_call.1} parent=51 // pred_check
          %p6940 = pneg %p217
        $region62: #{tpu_custom_call.1} parent=51 // pred_check_branch
          %6942 = sbr.rel (%p6940) target = $region64
        $region63: #{tpu_custom_call.1} parent=51 // pred_region
          %s6944 = ssub.s32 4608, 4608
          %6945 = vsyncadd %s6936, %s6944
          %s6946 = smul.addr %s26, 36
          %s6947 = smul.addr %s6946, 128
          %s6948 = scalar_lea.hbm %s8, %s6947
          %s6949 = sshll.u32 %s6939, 4
          %s6950 = int_to_ptr.vmem [resolvable:$true] %s6949
          %6955 = dma.vmem_to_hbm [thread:$0]  %s6950, 4608, %s6948, %s6936, 128, 128, 8
        $region64: #{tpu_custom_call.1} parent=51 // pred_fallthru
          _
      $region52: #{tpu_custom_call.1} parent=5 // pred_fallthru
        _
      %p6956 = scmp.le.s32.totalorder 2, %s21
      // Predicated region
      $region65: #{tpu_custom_call.1} parent=5 // pred_check
        %p6957 = pneg %p6956
      $region66: #{tpu_custom_call.1} parent=5 // pred_check_branch
        %6959 = sbr.rel (%p6957) target = $region68
      $region67: #{tpu_custom_call.1} parent=5 // pred_region
        %s6960 = ssub.s32 %s21, 2
        // Predicated region
        $region69: #{tpu_custom_call.1} parent=67 // pred_check
          %p6961 = pneg %p223
        $region70: #{tpu_custom_call.1} parent=67 // pred_check_branch
          %6963 = sbr.rel (%p6961) target = $region72
        $region71: #{tpu_custom_call.1} parent=67 // pred_region
          %s6964 = sand.u32 %s208, 1
          %s6965 = scalar_lea.sflag [#allocation6], %s6964
          %s6966 = sand.u32 %s208, 1
          %s6967 = smul.addr %s6966, 288
          %s6968 = scalar_lea.vmem [#allocation9], %s6967
          %6969 = dma.done %s6965, 4608
        $region72: #{tpu_custom_call.1} parent=67 // pred_fallthru
          _
      $region68: #{tpu_custom_call.1} parent=5 // pred_fallthru
        _
    $region6: #{tpu_custom_call.1} parent=1 // loop_footer
      %s25 = sadd.s32 1, %s21
    $region7: #{tpu_custom_call.1} parent=1 // loop_footer_branch
      %20 = sbr.rel target = $region3
    $region8: #{tpu_custom_call.1} parent=1 // loop_exit
      _
    %6970 = vsyncpa [#allocation5], 1
    %s6971 = scalar_lea.sflag [#allocation5], 1
    %6972 = vsyncpa %s6971, 1
    %6973 = vsyncpa [#allocation8], 1
    %6974 = vsyncpa [#allocation6], 1
    %s6975 = scalar_lea.sflag [#allocation6], 1
    %6976 = vsyncpa %s6975, 1

</llo_original>
